<compile_context>
chip_gen: v5e
topology: v5e:2x2
jax: 0.10.0
libtpu: 0.0.40
codegen_flags: <defaults>
</compile_context>

<pallas_src>
import math

import jax
import jax.numpy as jnp
from jax.experimental import pallas as pl
from jax.experimental.pallas import tpu as pltpu


# ----------------------------------------------------------------------------
# Pallas kernels
# ----------------------------------------------------------------------------
def _conv_bn_relu_pool_kernel(p_ref, w_ref, scale_ref, shift_ref, o_ref):
    """Fused conv (as im2col matmul) + BN(eval) + ReLU + 2x2x2 max-pool.

    p_ref:     (8, tg, K) bf16  -- axis 0 = the 8 pool-window offsets,
                                   tg = pooled output positions in this block,
                                   K  = Cin * k^3 patch features.
    w_ref:     (K, 128) bf16    -- conv weight, output channels padded to 128 lanes.
    scale_ref: (1, 128) f32     -- folded BN scale  (gamma / sqrt(var+eps)).
    shift_ref: (1, 128) f32     -- folded BN shift  (beta + scale*(bias-mean)).
    o_ref:     (tg, 128) f32    -- pooled activations, lane-dense store.
    """
    w = w_ref[...]
    scale = scale_ref[...]
    shift = shift_ref[...]

    def conv_at_offset(j):
        a = jnp.dot(p_ref[j], w, preferred_element_type=jnp.float32)
        return jnp.maximum(a * scale + shift, 0.0)

    m = conv_at_offset(0)
    for j in range(1, 8):                       # unrolled: 8 MXU dots + VPU max
        m = jnp.maximum(m, conv_at_offset(j))
    o_ref[...] = m


def _fc_tail_kernel(xf_ref, ya_ref, w0_ref, b0_ref,
                    w1x_ref, w1y_ref, b1_ref, w2_ref, b2_ref, o_ref):
    """Fused fc0+ReLU, fc1+ReLU, fc2.  fc1 weight is pre-split so the PyTorch
    cat((xout, yout), 1) becomes two dots instead of an in-kernel concat."""
    y0 = jnp.dot(ya_ref[...], w0_ref[...], preferred_element_type=jnp.float32)
    y0 = jnp.maximum(y0 + b0_ref[...], 0.0)

    h = (jnp.dot(xf_ref[...], w1x_ref[...], preferred_element_type=jnp.float32)
         + jnp.dot(y0.astype(w1y_ref.dtype), w1y_ref[...],
                   preferred_element_type=jnp.float32)
         + b1_ref[...])
    h = jnp.maximum(h, 0.0)

    q = jnp.dot(h.astype(w2_ref.dtype), w2_ref[...],
                preferred_element_type=jnp.float32) + b2_ref[...]
    o_ref[...] = q


# ----------------------------------------------------------------------------
# Wrappers
# ----------------------------------------------------------------------------
def _pool_grouped_patches(x_cl, k=2, pad=1):
    """x_cl: (B, D, H, W, Cin) channels-last.

    Returns patches of shape (8, G, Cin*k^3) where axis 0 enumerates the 2x2x2
    max-pool window offsets (dd, hh, ww) and G = B*Pd*Ph*Pw pooled output
    positions (row order b, dp, hp, wp).  Conv outputs dropped by floor-mode
    pooling are never materialised.  Patch features are ordered
    (cin, kd, kh, kw) to match PyTorch Conv3d weight flattening.
    """
    xp = jnp.pad(x_cl, ((0, 0), (pad, pad), (pad, pad), (pad, pad), (0, 0)))
    B, Dp, Hp, Wp, C = xp.shape
    Do, Ho, Wo = Dp - k + 1, Hp - k + 1, Wp - k + 1
    Pd, Ph, Pw = Do // 2, Ho // 2, Wo // 2
    D2, H2, W2 = 2 * Pd, 2 * Ph, 2 * Pw
    taps = []
    for kd in range(k):
        for kh in range(k):
            for kw in range(k):
                taps.append(xp[:, kd:kd + D2, kh:kh + H2, kw:kw + W2, :])
    p = jnp.stack(taps, axis=-1)                              # (B,D2,H2,W2,C,k^3)
    p = p.reshape(B, Pd, 2, Ph, 2, Pw, 2, C * k ** 3)          # split conv coords
    p = jnp.transpose(p, (2, 4, 6, 0, 1, 3, 5, 7))             # (dd,hh,ww,b,dp,hp,wp,K)
    return p.reshape(8, B * Pd * Ph * Pw, C * k ** 3), (Pd, Ph, Pw)


def conv_bn_relu_pool(x_cl, w, b, gamma, beta, mean, var, *, eps=1e-5, lanes=128):
    """Conv3d(k=2,s=1,p=1) + BatchNorm3d(eval) + ReLU + MaxPool3d(2,2), fused.

    x_cl: (B, D, H, W, Cin) channels-last -> (B, Pd, Ph, Pw, Cout) channels-last.
    """
    B = x_cl.shape[0]
    Cout, Cin = w.shape[0], w.shape[1]
    N = ((Cout + lanes - 1) // lanes) * lanes                 # lane-dense out channels

    patches, (Pd, Ph, Pw) = _pool_grouped_patches(x_cl)
    _, G, K = patches.shape
    patches = patches.astype(jnp.bfloat16)                    # bf16 MXU operands

    w_mat = jnp.transpose(w.reshape(Cout, K))                 # (K, Cout), PT flatten order
    w_mat = jnp.pad(w_mat, ((0, 0), (0, N - Cout))).astype(jnp.bfloat16)
    scale = gamma / jnp.sqrt(var + eps)
    shift = beta - scale * mean + scale * b                   # fold conv bias + BN(eval)
    scale_p = jnp.pad(scale, (0, N - Cout)).reshape(1, N).astype(jnp.float32)
    shift_p = jnp.pad(shift, (0, N - Cout)).reshape(1, N).astype(jnp.float32)

    # >=2 parallel grid steps so both v7x TensorCores get work (harmless on v5e/v6e).
    nblk = 2 if G % 16 == 0 else 1
    tg = G // nblk

    out = pl.pallas_call(
        _conv_bn_relu_pool_kernel,
        out_shape=jax.ShapeDtypeStruct((G, N), jnp.float32),
        grid_spec=pltpu.PrefetchScalarGridSpec(
            num_scalar_prefetch=0,
            grid=(nblk,),
            in_specs=[
                pl.BlockSpec((8, tg, K), lambda i: (0, i, 0)),
                pl.BlockSpec((K, N), lambda i: (0, 0)),
                pl.BlockSpec((1, N), lambda i: (0, 0)),
                pl.BlockSpec((1, N), lambda i: (0, 0)),
            ],
            out_specs=pl.BlockSpec((tg, N), lambda i: (i, 0)),
        ),
        compiler_params=pltpu.CompilerParams(
            dimension_semantics=("parallel",)),
    )(patches, w_mat, scale_p, shift_p)

    # Slice padded lanes off BEFORE any NCDHW-order flatten / next conv block.
    return out.reshape(B, Pd, Ph, Pw, N)[..., :Cout]


def fc_tail(xf, ya, params):
    """Single fused pallas_call for fc0+ReLU, fc1+ReLU, fc2.  All weights are
    tiny and stay resident in VMEM for the whole call."""
    B = xf.shape[0]
    F = xf.shape[1]
    w0 = jnp.transpose(params['fc0_w']).astype(jnp.bfloat16)          # (9, 256)
    b0 = params['fc0_b'].reshape(1, -1).astype(jnp.float32)
    w1 = jnp.transpose(params['fc1_w'])                                # (F+256, H)
    w1x = w1[:F].astype(jnp.bfloat16)
    w1y = w1[F:].astype(jnp.bfloat16)
    b1 = params['fc1_b'].reshape(1, -1).astype(jnp.float32)
    w2 = jnp.transpose(params['fc2_w']).astype(jnp.bfloat16)           # (H, 1)
    b2 = params['fc2_b'].reshape(1, -1).astype(jnp.float32)

    return pl.pallas_call(
        _fc_tail_kernel,
        out_shape=jax.ShapeDtypeStruct((B, 1), jnp.float32),
    )(xf.astype(jnp.bfloat16), ya.astype(jnp.bfloat16),
      w0, b0, w1x, w1y, b1, w2, b2)


def critic_forward(params, sensor, target, action):
    """sensor: (B, 1, W, W, W) NCDHW; target: (B, 6); action: (B, num_action)."""
    x = jnp.transpose(sensor, (0, 2, 3, 4, 1)).astype(jnp.float32)    # -> channels-last
    x = conv_bn_relu_pool(x, params['conv1_w'], params['conv1_b'],
                          params['bn1_gamma'], params['bn1_beta'],
                          params['bn1_mean'], params['bn1_var'])
    x = conv_bn_relu_pool(x, params['conv2_w'], params['conv2_b'],
                          params['bn2_gamma'], params['bn2_beta'],
                          params['bn2_mean'], params['bn2_var'])
    B = x.shape[0]
    # match PyTorch .reshape(B, -1) on NCDHW layout
    xf = jnp.transpose(x, (0, 4, 1, 2, 3)).reshape(B, -1)
    ya = jnp.concatenate([target, action], axis=1).astype(jnp.float32)
    return fc_tail(xf, ya, params)


# ----------------------------------------------------------------------------
# Pure-JAX f32 reference (for correctness check)
# ----------------------------------------------------------------------------
def reference_forward(params, sensor, target, action, eps=1e-5):
    def block(x, w, b, gamma, beta, mean, var):
        y = jax.lax.conv_general_dilated(
            x, w, window_strides=(1, 1, 1), padding=[(1, 1)] * 3,
            dimension_numbers=('NCDHW', 'OIDHW', 'NCDHW'))
        y = y + b[None, :, None, None, None]
        y = (y - mean[None, :, None, None, None]) / jnp.sqrt(var + eps)[None, :, None, None, None]
        y = y * gamma[None, :, None, None, None] + beta[None, :, None, None, None]
        y = jnp.maximum(y, 0.0)
        y = jax.lax.reduce_window(y, -jnp.inf, jax.lax.max,
                                  (1, 1, 2, 2, 2), (1, 1, 2, 2, 2), 'VALID')
        return y

    x = block(sensor.astype(jnp.float32),
              params['conv1_w'], params['conv1_b'], params['bn1_gamma'],
              params['bn1_beta'], params['bn1_mean'], params['bn1_var'])
    x = block(x, params['conv2_w'], params['conv2_b'], params['bn2_gamma'],
              params['bn2_beta'], params['bn2_mean'], params['bn2_var'])
    xout = x.reshape(x.shape[0], -1)
    ya = jnp.concatenate([target, action], axis=1).astype(jnp.float32)
    yout = jnp.maximum(ya @ params['fc0_w'].T + params['fc0_b'], 0.0)
    out = jnp.concatenate([xout, yout], axis=1)
    h = jnp.maximum(out @ params['fc1_w'].T + params['fc1_b'], 0.0)
    return h @ params['fc2_w'].T + params['fc2_b']


# ----------------------------------------------------------------------------
# Deterministic parameter init (xavier-like for conv/linear, BN eval stats)
# ----------------------------------------------------------------------------
def init_params(key, num_hidden, num_action, feat_size):
    ks = jax.random.split(key, 16)

    def xavier(k, shape, fan_in, fan_out):
        limit = math.sqrt(6.0 / (fan_in + fan_out))
        return jax.random.uniform(k, shape, jnp.float32, -limit, limit)

    p = {}
    p['conv1_w'] = xavier(ks[0], (32, 1, 2, 2, 2), 1 * 8, 32 * 8)
    p['conv1_b'] = 0.01 * jax.random.normal(ks[1], (32,), jnp.float32)
    p['bn1_gamma'] = 1.0 + 0.1 * jax.random.normal(ks[2], (32,), jnp.float32)
    p['bn1_beta'] = 0.1 * jax.random.normal(ks[3], (32,), jnp.float32)
    p['bn1_mean'] = 0.1 * jax.random.normal(ks[4], (32,), jnp.float32)
    p['bn1_var'] = jax.random.uniform(ks[5], (32,), jnp.float32, 0.5, 1.5)
    p['conv2_w'] = xavier(ks[6], (64, 32, 2, 2, 2), 32 * 8, 64 * 8)
    p['conv2_b'] = 0.01 * jax.random.normal(ks[7], (64,), jnp.float32)
    p['bn2_gamma'] = 1.0 + 0.1 * jax.random.normal(ks[8], (64,), jnp.float32)
    p['bn2_beta'] = 0.1 * jax.random.normal(ks[9], (64,), jnp.float32)
    p['bn2_mean'] = 0.1 * jax.random.normal(ks[10], (64,), jnp.float32)
    p['bn2_var'] = jax.random.uniform(ks[11], (64,), jnp.float32, 0.5, 1.5)
    p['fc0_w'] = xavier(ks[12], (256, 6 + num_action), 6 + num_action, 256)
    p['fc0_b'] = jnp.zeros((256,), jnp.float32)
    p['fc1_w'] = xavier(ks[13], (num_hidden, feat_size + 256), feat_size + 256, num_hidden)
    p['fc1_b'] = jnp.zeros((num_hidden,), jnp.float32)
    p['fc2_w'] = xavier(ks[14], (1, num_hidden), num_hidden, 1)
    p['fc2_b'] = jnp.zeros((1,), jnp.float32)
    return p


if __name__ == "__main__":
    inputWidth, num_hidden, num_action, B = 8, 32, 3, 2
    # featureSize(): W=8 -> conv(p=1,k=2): 9 -> pool: 4 -> conv: 5 -> pool: 2 ; 64*2^3 = 512
    feat_size = 64 * (((inputWidth + 1) // 2 + 1) // 2) ** 3

    key = jax.random.PRNGKey(0)
    kp, ks, kt, ka = jax.random.split(key, 4)
    params = init_params(kp, num_hidden, num_action, feat_size)

    sensor = jax.random.normal(ks, (B, 1, inputWidth, inputWidth, inputWidth), jnp.float32)
    target = jax.random.normal(kt, (B, 6), jnp.float32)
    action = jax.random.normal(ka, (B, num_action), jnp.float32)

    q = jax.jit(critic_forward)(params, sensor, target, action)
    q = jax.block_until_ready(q)

    ref = reference_forward(params, sensor, target, action)
    assert q.shape == (B, 1), q.shape
    # bf16 MXU operands with f32 accumulation -> use a slightly wider tolerance
    # than the previous all-f32 version.
    if not jnp.allclose(q, ref, rtol=5e-2, atol=5e-2):
        raise AssertionError(f"mismatch: pallas={q} ref={ref}")

    print("KERNEL_OK")
</pallas_src>

<mosaic_0001>
module attributes {stable_mosaic.version = 11 : i64} {
  func.func @_conv_bn_relu_pool_kernel(%arg0: i32, %arg1: memref<8x64x8xbf16, #tpu.memory_space<vmem>>, %arg2: memref<8x128xbf16, #tpu.memory_space<vmem>>, %arg3: memref<1x128xf32, #tpu.memory_space<vmem>>, %arg4: memref<1x128xf32, #tpu.memory_space<vmem>>, %arg5: memref<64x128xf32, #tpu.memory_space<vmem>>) attributes {dimension_semantics = [#tpu.dimension_semantics<parallel>], iteration_bounds = array<i64: 2>, scalar_prefetch = 0 : i64, scratch_operands = 0 : i64, tpu.core_type = #tpu.core_type<tc>, window_params = [{transform_indices = @transform_0, window_bounds = array<i64: 8, 64, 8>}, {pipeline_mode = #tpu.pipeline_mode<synchronous>, transform_indices = @transform_1, window_bounds = array<i64: 8, 128>}, {pipeline_mode = #tpu.pipeline_mode<synchronous>, transform_indices = @transform_2, window_bounds = array<i64: 1, 128>}, {pipeline_mode = #tpu.pipeline_mode<synchronous>, transform_indices = @transform_3, window_bounds = array<i64: 1, 128>}, {transform_indices = @transform_4, window_bounds = array<i64: 64, 128>}]} {
    %c0 = arith.constant 0 : index
    %c0_0 = arith.constant 0 : index
    %0 = vector.load %arg2[%c0, %c0_0] : memref<8x128xbf16, #tpu.memory_space<vmem>>, vector<8x128xbf16>
    %c0_1 = arith.constant 0 : index
    %c0_2 = arith.constant 0 : index
    %1 = vector.load %arg3[%c0_1, %c0_2] : memref<1x128xf32, #tpu.memory_space<vmem>>, vector<1x128xf32>
    %c0_3 = arith.constant 0 : index
    %c0_4 = arith.constant 0 : index
    %2 = vector.load %arg4[%c0_3, %c0_4] : memref<1x128xf32, #tpu.memory_space<vmem>>, vector<1x128xf32>
    %c0_5 = arith.constant 0 : index
    %c0_6 = arith.constant 0 : index
    %c0_7 = arith.constant 0 : index
    %3 = vector.load %arg1[%c0_5, %c0_6, %c0_7] : memref<8x64x8xbf16, #tpu.memory_space<vmem>>, vector<1x64x8xbf16>
    %4 = vector.shape_cast %3 : vector<1x64x8xbf16> to vector<64x8xbf16>
    %cst = arith.constant dense<0.000000e+00> : vector<64x128xf32>
    %5 = tpu.matmul %4, %0, %cst {dimension_numbers = #tpu.dot_dimension_numbers<[1], [0], [0], [1], [0, 0, 1, 1], [], []>} : vector<64x8xbf16>, vector<8x128xbf16>, vector<64x128xf32> -> vector<64x128xf32>
    %6 = vector.broadcast %1 : vector<1x128xf32> to vector<64x128xf32>
    %7 = arith.mulf %5, %6 : vector<64x128xf32>
    %8 = vector.broadcast %2 : vector<1x128xf32> to vector<64x128xf32>
    %9 = arith.addf %7, %8 : vector<64x128xf32>
    %cst_8 = arith.constant 0.000000e+00 : f32
    %10 = vector.broadcast %cst_8 : f32 to vector<64x128xf32>
    %11 = arith.maximumf %9, %10 : vector<64x128xf32>
    %c1 = arith.constant 1 : index
    %c0_9 = arith.constant 0 : index
    %c0_10 = arith.constant 0 : index
    %12 = vector.load %arg1[%c1, %c0_9, %c0_10] : memref<8x64x8xbf16, #tpu.memory_space<vmem>>, vector<1x64x8xbf16>
    %13 = vector.shape_cast %12 : vector<1x64x8xbf16> to vector<64x8xbf16>
    %cst_11 = arith.constant dense<0.000000e+00> : vector<64x128xf32>
    %14 = tpu.matmul %13, %0, %cst_11 {dimension_numbers = #tpu.dot_dimension_numbers<[1], [0], [0], [1], [0, 0, 1, 1], [], []>} : vector<64x8xbf16>, vector<8x128xbf16>, vector<64x128xf32> -> vector<64x128xf32>
    %15 = vector.broadcast %1 : vector<1x128xf32> to vector<64x128xf32>
    %16 = arith.mulf %14, %15 : vector<64x128xf32>
    %17 = vector.broadcast %2 : vector<1x128xf32> to vector<64x128xf32>
    %18 = arith.addf %16, %17 : vector<64x128xf32>
    %cst_12 = arith.constant 0.000000e+00 : f32
    %19 = vector.broadcast %cst_12 : f32 to vector<64x128xf32>
    %20 = arith.maximumf %18, %19 : vector<64x128xf32>
    %21 = arith.maximumf %11, %20 : vector<64x128xf32>
    %c2 = arith.constant 2 : index
    %c0_13 = arith.constant 0 : index
    %c0_14 = arith.constant 0 : index
    %22 = vector.load %arg1[%c2, %c0_13, %c0_14] : memref<8x64x8xbf16, #tpu.memory_space<vmem>>, vector<1x64x8xbf16>
    %23 = vector.shape_cast %22 : vector<1x64x8xbf16> to vector<64x8xbf16>
    %cst_15 = arith.constant dense<0.000000e+00> : vector<64x128xf32>
    %24 = tpu.matmul %23, %0, %cst_15 {dimension_numbers = #tpu.dot_dimension_numbers<[1], [0], [0], [1], [0, 0, 1, 1], [], []>} : vector<64x8xbf16>, vector<8x128xbf16>, vector<64x128xf32> -> vector<64x128xf32>
    %25 = vector.broadcast %1 : vector<1x128xf32> to vector<64x128xf32>
    %26 = arith.mulf %24, %25 : vector<64x128xf32>
    %27 = vector.broadcast %2 : vector<1x128xf32> to vector<64x128xf32>
    %28 = arith.addf %26, %27 : vector<64x128xf32>
    %cst_16 = arith.constant 0.000000e+00 : f32
    %29 = vector.broadcast %cst_16 : f32 to vector<64x128xf32>
    %30 = arith.maximumf %28, %29 : vector<64x128xf32>
    %31 = arith.maximumf %21, %30 : vector<64x128xf32>
    %c3 = arith.constant 3 : index
    %c0_17 = arith.constant 0 : index
    %c0_18 = arith.constant 0 : index
    %32 = vector.load %arg1[%c3, %c0_17, %c0_18] : memref<8x64x8xbf16, #tpu.memory_space<vmem>>, vector<1x64x8xbf16>
    %33 = vector.shape_cast %32 : vector<1x64x8xbf16> to vector<64x8xbf16>
    %cst_19 = arith.constant dense<0.000000e+00> : vector<64x128xf32>
    %34 = tpu.matmul %33, %0, %cst_19 {dimension_numbers = #tpu.dot_dimension_numbers<[1], [0], [0], [1], [0, 0, 1, 1], [], []>} : vector<64x8xbf16>, vector<8x128xbf16>, vector<64x128xf32> -> vector<64x128xf32>
    %35 = vector.broadcast %1 : vector<1x128xf32> to vector<64x128xf32>
    %36 = arith.mulf %34, %35 : vector<64x128xf32>
    %37 = vector.broadcast %2 : vector<1x128xf32> to vector<64x128xf32>
    %38 = arith.addf %36, %37 : vector<64x128xf32>
    %cst_20 = arith.constant 0.000000e+00 : f32
    %39 = vector.broadcast %cst_20 : f32 to vector<64x128xf32>
    %40 = arith.maximumf %38, %39 : vector<64x128xf32>
    %41 = arith.maximumf %31, %40 : vector<64x128xf32>
    %c4 = arith.constant 4 : index
    %c0_21 = arith.constant 0 : index
    %c0_22 = arith.constant 0 : index
    %42 = vector.load %arg1[%c4, %c0_21, %c0_22] : memref<8x64x8xbf16, #tpu.memory_space<vmem>>, vector<1x64x8xbf16>
    %43 = vector.shape_cast %42 : vector<1x64x8xbf16> to vector<64x8xbf16>
    %cst_23 = arith.constant dense<0.000000e+00> : vector<64x128xf32>
    %44 = tpu.matmul %43, %0, %cst_23 {dimension_numbers = #tpu.dot_dimension_numbers<[1], [0], [0], [1], [0, 0, 1, 1], [], []>} : vector<64x8xbf16>, vector<8x128xbf16>, vector<64x128xf32> -> vector<64x128xf32>
    %45 = vector.broadcast %1 : vector<1x128xf32> to vector<64x128xf32>
    %46 = arith.mulf %44, %45 : vector<64x128xf32>
    %47 = vector.broadcast %2 : vector<1x128xf32> to vector<64x128xf32>
    %48 = arith.addf %46, %47 : vector<64x128xf32>
    %cst_24 = arith.constant 0.000000e+00 : f32
    %49 = vector.broadcast %cst_24 : f32 to vector<64x128xf32>
    %50 = arith.maximumf %48, %49 : vector<64x128xf32>
    %51 = arith.maximumf %41, %50 : vector<64x128xf32>
    %c5 = arith.constant 5 : index
    %c0_25 = arith.constant 0 : index
    %c0_26 = arith.constant 0 : index
    %52 = vector.load %arg1[%c5, %c0_25, %c0_26] : memref<8x64x8xbf16, #tpu.memory_space<vmem>>, vector<1x64x8xbf16>
    %53 = vector.shape_cast %52 : vector<1x64x8xbf16> to vector<64x8xbf16>
    %cst_27 = arith.constant dense<0.000000e+00> : vector<64x128xf32>
    %54 = tpu.matmul %53, %0, %cst_27 {dimension_numbers = #tpu.dot_dimension_numbers<[1], [0], [0], [1], [0, 0, 1, 1], [], []>} : vector<64x8xbf16>, vector<8x128xbf16>, vector<64x128xf32> -> vector<64x128xf32>
    %55 = vector.broadcast %1 : vector<1x128xf32> to vector<64x128xf32>
    %56 = arith.mulf %54, %55 : vector<64x128xf32>
    %57 = vector.broadcast %2 : vector<1x128xf32> to vector<64x128xf32>
    %58 = arith.addf %56, %57 : vector<64x128xf32>
    %cst_28 = arith.constant 0.000000e+00 : f32
    %59 = vector.broadcast %cst_28 : f32 to vector<64x128xf32>
    %60 = arith.maximumf %58, %59 : vector<64x128xf32>
    %61 = arith.maximumf %51, %60 : vector<64x128xf32>
    %c6 = arith.constant 6 : index
    %c0_29 = arith.constant 0 : index
    %c0_30 = arith.constant 0 : index
    %62 = vector.load %arg1[%c6, %c0_29, %c0_30] : memref<8x64x8xbf16, #tpu.memory_space<vmem>>, vector<1x64x8xbf16>
    %63 = vector.shape_cast %62 : vector<1x64x8xbf16> to vector<64x8xbf16>
    %cst_31 = arith.constant dense<0.000000e+00> : vector<64x128xf32>
    %64 = tpu.matmul %63, %0, %cst_31 {dimension_numbers = #tpu.dot_dimension_numbers<[1], [0], [0], [1], [0, 0, 1, 1], [], []>} : vector<64x8xbf16>, vector<8x128xbf16>, vector<64x128xf32> -> vector<64x128xf32>
    %65 = vector.broadcast %1 : vector<1x128xf32> to vector<64x128xf32>
    %66 = arith.mulf %64, %65 : vector<64x128xf32>
    %67 = vector.broadcast %2 : vector<1x128xf32> to vector<64x128xf32>
    %68 = arith.addf %66, %67 : vector<64x128xf32>
    %cst_32 = arith.constant 0.000000e+00 : f32
    %69 = vector.broadcast %cst_32 : f32 to vector<64x128xf32>
    %70 = arith.maximumf %68, %69 : vector<64x128xf32>
    %71 = arith.maximumf %61, %70 : vector<64x128xf32>
    %c7 = arith.constant 7 : index
    %c0_33 = arith.constant 0 : index
    %c0_34 = arith.constant 0 : index
    %72 = vector.load %arg1[%c7, %c0_33, %c0_34] : memref<8x64x8xbf16, #tpu.memory_space<vmem>>, vector<1x64x8xbf16>
    %73 = vector.shape_cast %72 : vector<1x64x8xbf16> to vector<64x8xbf16>
    %cst_35 = arith.constant dense<0.000000e+00> : vector<64x128xf32>
    %74 = tpu.matmul %73, %0, %cst_35 {dimension_numbers = #tpu.dot_dimension_numbers<[1], [0], [0], [1], [0, 0, 1, 1], [], []>} : vector<64x8xbf16>, vector<8x128xbf16>, vector<64x128xf32> -> vector<64x128xf32>
    %75 = vector.broadcast %1 : vector<1x128xf32> to vector<64x128xf32>
    %76 = arith.mulf %74, %75 : vector<64x128xf32>
    %77 = vector.broadcast %2 : vector<1x128xf32> to vector<64x128xf32>
    %78 = arith.addf %76, %77 : vector<64x128xf32>
    %cst_36 = arith.constant 0.000000e+00 : f32
    %79 = vector.broadcast %cst_36 : f32 to vector<64x128xf32>
    %80 = arith.maximumf %78, %79 : vector<64x128xf32>
    %81 = arith.maximumf %71, %80 : vector<64x128xf32>
    %c0_37 = arith.constant 0 : index
    %c0_38 = arith.constant 0 : index
    %82 = vector.load %arg5[%c0_37, %c0_38] : memref<64x128xf32, #tpu.memory_space<vmem>>, vector<64x128xf32>
    tpu.vector_store %arg5[%c0_37, %c0_38], %81 {strides = array<i32>} : memref<64x128xf32, #tpu.memory_space<vmem>>, vector<64x128xf32>,
    return
  }
  func.func @transform_0(%arg0: i32) -> (i32, i32, i32) {
    %c0_i32 = arith.constant 0 : i32
    %c0_i32_0 = arith.constant 0 : i32
    %c0_i32_1 = arith.constant 0 : i32
    return %c0_i32, %arg0, %c0_i32_0 : i32, i32, i32
  }
  func.func @transform_1(%arg0: i32) -> (i32, i32) {
    %c0_i32 = arith.constant 0 : i32
    %c0_i32_0 = arith.constant 0 : i32
    %c0_i32_1 = arith.constant 0 : i32
    return %c0_i32, %c0_i32_0 : i32, i32
  }
  func.func @transform_2(%arg0: i32) -> (i32, i32) {
    %c0_i32 = arith.constant 0 : i32
    %c0_i32_0 = arith.constant 0 : i32
    %c0_i32_1 = arith.constant 0 : i32
    return %c0_i32, %c0_i32_0 : i32, i32
  }
  func.func @transform_3(%arg0: i32) -> (i32, i32) {
    %c0_i32 = arith.constant 0 : i32
    %c0_i32_0 = arith.constant 0 : i32
    %c0_i32_1 = arith.constant 0 : i32
    return %c0_i32, %c0_i32_0 : i32, i32
  }
  func.func @transform_4(%arg0: i32) -> (i32, i32) {
    %c0_i32 = arith.constant 0 : i32
    %c0_i32_0 = arith.constant 0 : i32
    return %arg0, %c0_i32 : i32, i32
  }
}

module attributes {stable_mosaic.version = 11 : i64} {
  func.func @_conv_bn_relu_pool_kernel(%arg0: i32, %arg1: memref<8x8x256xbf16, #tpu.memory_space<vmem>>, %arg2: memref<256x128xbf16, #tpu.memory_space<vmem>>, %arg3: memref<1x128xf32, #tpu.memory_space<vmem>>, %arg4: memref<1x128xf32, #tpu.memory_space<vmem>>, %arg5: memref<8x128xf32, #tpu.memory_space<vmem>>) attributes {dimension_semantics = [#tpu.dimension_semantics<parallel>], iteration_bounds = array<i64: 2>, scalar_prefetch = 0 : i64, scratch_operands = 0 : i64, tpu.core_type = #tpu.core_type<tc>, window_params = [{transform_indices = @transform_0, window_bounds = array<i64: 8, 8, 256>}, {pipeline_mode = #tpu.pipeline_mode<synchronous>, transform_indices = @transform_1, window_bounds = array<i64: 256, 128>}, {pipeline_mode = #tpu.pipeline_mode<synchronous>, transform_indices = @transform_2, window_bounds = array<i64: 1, 128>}, {pipeline_mode = #tpu.pipeline_mode<synchronous>, transform_indices = @transform_3, window_bounds = array<i64: 1, 128>}, {transform_indices = @transform_4, window_bounds = array<i64: 8, 128>}]} {
    %c0 = arith.constant 0 : index
    %c0_0 = arith.constant 0 : index
    %0 = vector.load %arg2[%c0, %c0_0] : memref<256x128xbf16, #tpu.memory_space<vmem>>, vector<256x128xbf16>
    %c0_1 = arith.constant 0 : index
    %c0_2 = arith.constant 0 : index
    %1 = vector.load %arg3[%c0_1, %c0_2] : memref<1x128xf32, #tpu.memory_space<vmem>>, vector<1x128xf32>
    %c0_3 = arith.constant 0 : index
    %c0_4 = arith.constant 0 : index
    %2 = vector.load %arg4[%c0_3, %c0_4] : memref<1x128xf32, #tpu.memory_space<vmem>>, vector<1x128xf32>
    %c0_5 = arith.constant 0 : index
    %c0_6 = arith.constant 0 : index
    %c0_7 = arith.constant 0 : index
    %3 = vector.load %arg1[%c0_5, %c0_6, %c0_7] : memref<8x8x256xbf16, #tpu.memory_space<vmem>>, vector<1x8x256xbf16>
    %4 = vector.shape_cast %3 : vector<1x8x256xbf16> to vector<8x256xbf16>
    %cst = arith.constant dense<0.000000e+00> : vector<8x128xf32>
    %5 = tpu.matmul %4, %0, %cst {dimension_numbers = #tpu.dot_dimension_numbers<[1], [0], [0], [1], [0, 0, 1, 1], [], []>} : vector<8x256xbf16>, vector<256x128xbf16>, vector<8x128xf32> -> vector<8x128xf32>
    %6 = vector.broadcast %1 : vector<1x128xf32> to vector<8x128xf32>
    %7 = arith.mulf %5, %6 : vector<8x128xf32>
    %8 = vector.broadcast %2 : vector<1x128xf32> to vector<8x128xf32>
    %9 = arith.addf %7, %8 : vector<8x128xf32>
    %cst_8 = arith.constant 0.000000e+00 : f32
    %10 = vector.broadcast %cst_8 : f32 to vector<8x128xf32>
    %11 = arith.maximumf %9, %10 : vector<8x128xf32>
    %c1 = arith.constant 1 : index
    %c0_9 = arith.constant 0 : index
    %c0_10 = arith.constant 0 : index
    %12 = vector.load %arg1[%c1, %c0_9, %c0_10] : memref<8x8x256xbf16, #tpu.memory_space<vmem>>, vector<1x8x256xbf16>
    %13 = vector.shape_cast %12 : vector<1x8x256xbf16> to vector<8x256xbf16>
    %cst_11 = arith.constant dense<0.000000e+00> : vector<8x128xf32>
    %14 = tpu.matmul %13, %0, %cst_11 {dimension_numbers = #tpu.dot_dimension_numbers<[1], [0], [0], [1], [0, 0, 1, 1], [], []>} : vector<8x256xbf16>, vector<256x128xbf16>, vector<8x128xf32> -> vector<8x128xf32>
    %15 = vector.broadcast %1 : vector<1x128xf32> to vector<8x128xf32>
    %16 = arith.mulf %14, %15 : vector<8x128xf32>
    %17 = vector.broadcast %2 : vector<1x128xf32> to vector<8x128xf32>
    %18 = arith.addf %16, %17 : vector<8x128xf32>
    %cst_12 = arith.constant 0.000000e+00 : f32
    %19 = vector.broadcast %cst_12 : f32 to vector<8x128xf32>
    %20 = arith.maximumf %18, %19 : vector<8x128xf32>
    %21 = arith.maximumf %11, %20 : vector<8x128xf32>
    %c2 = arith.constant 2 : index
    %c0_13 = arith.constant 0 : index
    %c0_14 = arith.constant 0 : index
    %22 = vector.load %arg1[%c2, %c0_13, %c0_14] : memref<8x8x256xbf16, #tpu.memory_space<vmem>>, vector<1x8x256xbf16>
    %23 = vector.shape_cast %22 : vector<1x8x256xbf16> to vector<8x256xbf16>
    %cst_15 = arith.constant dense<0.000000e+00> : vector<8x128xf32>
    %24 = tpu.matmul %23, %0, %cst_15 {dimension_numbers = #tpu.dot_dimension_numbers<[1], [0], [0], [1], [0, 0, 1, 1], [], []>} : vector<8x256xbf16>, vector<256x128xbf16>, vector<8x128xf32> -> vector<8x128xf32>
    %25 = vector.broadcast %1 : vector<1x128xf32> to vector<8x128xf32>
    %26 = arith.mulf %24, %25 : vector<8x128xf32>
    %27 = vector.broadcast %2 : vector<1x128xf32> to vector<8x128xf32>
    %28 = arith.addf %26, %27 : vector<8x128xf32>
    %cst_16 = arith.constant 0.000000e+00 : f32
    %29 = vector.broadcast %cst_16 : f32 to vector<8x128xf32>
    %30 = arith.maximumf %28, %29 : vector<8x128xf32>
    %31 = arith.maximumf %21, %30 : vector<8x128xf32>
    %c3 = arith.constant 3 : index
    %c0_17 = arith.constant 0 : index
    %c0_18 = arith.constant 0 : index
    %32 = vector.load %arg1[%c3, %c0_17, %c0_18] : memref<8x8x256xbf16, #tpu.memory_space<vmem>>, vector<1x8x256xbf16>
    %33 = vector.shape_cast %32 : vector<1x8x256xbf16> to vector<8x256xbf16>
    %cst_19 = arith.constant dense<0.000000e+00> : vector<8x128xf32>
    %34 = tpu.matmul %33, %0, %cst_19 {dimension_numbers = #tpu.dot_dimension_numbers<[1], [0], [0], [1], [0, 0, 1, 1], [], []>} : vector<8x256xbf16>, vector<256x128xbf16>, vector<8x128xf32> -> vector<8x128xf32>
    %35 = vector.broadcast %1 : vector<1x128xf32> to vector<8x128xf32>
    %36 = arith.mulf %34, %35 : vector<8x128xf32>
    %37 = vector.broadcast %2 : vector<1x128xf32> to vector<8x128xf32>
    %38 = arith.addf %36, %37 : vector<8x128xf32>
    %cst_20 = arith.constant 0.000000e+00 : f32
    %39 = vector.broadcast %cst_20 : f32 to vector<8x128xf32>
    %40 = arith.maximumf %38, %39 : vector<8x128xf32>
    %41 = arith.maximumf %31, %40 : vector<8x128xf32>
    %c4 = arith.constant 4 : index
    %c0_21 = arith.constant 0 : index
    %c0_22 = arith.constant 0 : index
    %42 = vector.load %arg1[%c4, %c0_21, %c0_22] : memref<8x8x256xbf16, #tpu.memory_space<vmem>>, vector<1x8x256xbf16>
    %43 = vector.shape_cast %42 : vector<1x8x256xbf16> to vector<8x256xbf16>
    %cst_23 = arith.constant dense<0.000000e+00> : vector<8x128xf32>
    %44 = tpu.matmul %43, %0, %cst_23 {dimension_numbers = #tpu.dot_dimension_numbers<[1], [0], [0], [1], [0, 0, 1, 1], [], []>} : vector<8x256xbf16>, vector<256x128xbf16>, vector<8x128xf32> -> vector<8x128xf32>
    %45 = vector.broadcast %1 : vector<1x128xf32> to vector<8x128xf32>
    %46 = arith.mulf %44, %45 : vector<8x128xf32>
    %47 = vector.broadcast %2 : vector<1x128xf32> to vector<8x128xf32>
    %48 = arith.addf %46, %47 : vector<8x128xf32>
    %cst_24 = arith.constant 0.000000e+00 : f32
    %49 = vector.broadcast %cst_24 : f32 to vector<8x128xf32>
    %50 = arith.maximumf %48, %49 : vector<8x128xf32>
    %51 = arith.maximumf %41, %50 : vector<8x128xf32>
    %c5 = arith.constant 5 : index
    %c0_25 = arith.constant 0 : index
    %c0_26 = arith.constant 0 : index
    %52 = vector.load %arg1[%c5, %c0_25, %c0_26] : memref<8x8x256xbf16, #tpu.memory_space<vmem>>, vector<1x8x256xbf16>
    %53 = vector.shape_cast %52 : vector<1x8x256xbf16> to vector<8x256xbf16>
    %cst_27 = arith.constant dense<0.000000e+00> : vector<8x128xf32>
    %54 = tpu.matmul %53, %0, %cst_27 {dimension_numbers = #tpu.dot_dimension_numbers<[1], [0], [0], [1], [0, 0, 1, 1], [], []>} : vector<8x256xbf16>, vector<256x128xbf16>, vector<8x128xf32> -> vector<8x128xf32>
    %55 = vector.broadcast %1 : vector<1x128xf32> to vector<8x128xf32>
    %56 = arith.mulf %54, %55 : vector<8x128xf32>
    %57 = vector.broadcast %2 : vector<1x128xf32> to vector<8x128xf32>
    %58 = arith.addf %56, %57 : vector<8x128xf32>
    %cst_28 = arith.constant 0.000000e+00 : f32
    %59 = vector.broadcast %cst_28 : f32 to vector<8x128xf32>
    %60 = arith.maximumf %58, %59 : vector<8x128xf32>
    %61 = arith.maximumf %51, %60 : vector<8x128xf32>
    %c6 = arith.constant 6 : index
    %c0_29 = arith.constant 0 : index
    %c0_30 = arith.constant 0 : index
    %62 = vector.load %arg1[%c6, %c0_29, %c0_30] : memref<8x8x256xbf16, #tpu.memory_space<vmem>>, vector<1x8x256xbf16>
    %63 = vector.shape_cast %62 : vector<1x8x256xbf16> to vector<8x256xbf16>
    %cst_31 = arith.constant dense<0.000000e+00> : vector<8x128xf32>
    %64 = tpu.matmul %63, %0, %cst_31 {dimension_numbers = #tpu.dot_dimension_numbers<[1], [0], [0], [1], [0, 0, 1, 1], [], []>} : vector<8x256xbf16>, vector<256x128xbf16>, vector<8x128xf32> -> vector<8x128xf32>
    %65 = vector.broadcast %1 : vector<1x128xf32> to vector<8x128xf32>
    %66 = arith.mulf %64, %65 : vector<8x128xf32>
    %67 = vector.broadcast %2 : vector<1x128xf32> to vector<8x128xf32>
    %68 = arith.addf %66, %67 : vector<8x128xf32>
    %cst_32 = arith.constant 0.000000e+00 : f32
    %69 = vector.broadcast %cst_32 : f32 to vector<8x128xf32>
    %70 = arith.maximumf %68, %69 : vector<8x128xf32>
    %71 = arith.maximumf %61, %70 : vector<8x128xf32>
    %c7 = arith.constant 7 : index
    %c0_33 = arith.constant 0 : index
    %c0_34 = arith.constant 0 : index
    %72 = vector.load %arg1[%c7, %c0_33, %c0_34] : memref<8x8x256xbf16, #tpu.memory_space<vmem>>, vector<1x8x256xbf16>
    %73 = vector.shape_cast %72 : vector<1x8x256xbf16> to vector<8x256xbf16>
    %cst_35 = arith.constant dense<0.000000e+00> : vector<8x128xf32>
    %74 = tpu.matmul %73, %0, %cst_35 {dimension_numbers = #tpu.dot_dimension_numbers<[1], [0], [0], [1], [0, 0, 1, 1], [], []>} : vector<8x256xbf16>, vector<256x128xbf16>, vector<8x128xf32> -> vector<8x128xf32>
    %75 = vector.broadcast %1 : vector<1x128xf32> to vector<8x128xf32>
    %76 = arith.mulf %74, %75 : vector<8x128xf32>
    %77 = vector.broadcast %2 : vector<1x128xf32> to vector<8x128xf32>
    %78 = arith.addf %76, %77 : vector<8x128xf32>
    %cst_36 = arith.constant 0.000000e+00 : f32
    %79 = vector.broadcast %cst_36 : f32 to vector<8x128xf32>
    %80 = arith.maximumf %78, %79 : vector<8x128xf32>
    %81 = arith.maximumf %71, %80 : vector<8x128xf32>
    %c0_37 = arith.constant 0 : index
    %c0_38 = arith.constant 0 : index
    %82 = vector.load %arg5[%c0_37, %c0_38] : memref<8x128xf32, #tpu.memory_space<vmem>>, vector<8x128xf32>
    tpu.vector_store %arg5[%c0_37, %c0_38], %81 {strides = array<i32>} : memref<8x128xf32, #tpu.memory_space<vmem>>, vector<8x128xf32>,
    return
  }
  func.func @transform_0(%arg0: i32) -> (i32, i32, i32) {
    %c0_i32 = arith.constant 0 : i32
    %c0_i32_0 = arith.constant 0 : i32
    %c0_i32_1 = arith.constant 0 : i32
    return %c0_i32, %arg0, %c0_i32_0 : i32, i32, i32
  }
  func.func @transform_1(%arg0: i32) -> (i32, i32) {
    %c0_i32 = arith.constant 0 : i32
    %c0_i32_0 = arith.constant 0 : i32
    %c0_i32_1 = arith.constant 0 : i32
    return %c0_i32, %c0_i32_0 : i32, i32
  }
  func.func @transform_2(%arg0: i32) -> (i32, i32) {
    %c0_i32 = arith.constant 0 : i32
    %c0_i32_0 = arith.constant 0 : i32
    %c0_i32_1 = arith.constant 0 : i32
    return %c0_i32, %c0_i32_0 : i32, i32
  }
  func.func @transform_3(%arg0: i32) -> (i32, i32) {
    %c0_i32 = arith.constant 0 : i32
    %c0_i32_0 = arith.constant 0 : i32
    %c0_i32_1 = arith.constant 0 : i32
    return %c0_i32, %c0_i32_0 : i32, i32
  }
  func.func @transform_4(%arg0: i32) -> (i32, i32) {
    %c0_i32 = arith.constant 0 : i32
    %c0_i32_0 = arith.constant 0 : i32
    return %arg0, %c0_i32 : i32, i32
  }
}

module attributes {stable_mosaic.version = 11 : i64} {
  func.func @_fc_tail_kernel(%arg0: memref<2x512xbf16, #tpu.memory_space<vmem>>, %arg1: memref<2x9xbf16, #tpu.memory_space<vmem>>, %arg2: memref<9x256xbf16, #tpu.memory_space<vmem>>, %arg3: memref<1x256xf32, #tpu.memory_space<vmem>>, %arg4: memref<512x32xbf16, #tpu.memory_space<vmem>>, %arg5: memref<256x32xbf16, #tpu.memory_space<vmem>>, %arg6: memref<1x32xf32, #tpu.memory_space<vmem>>, %arg7: memref<32x1xbf16, #tpu.memory_space<vmem>>, %arg8: memref<1x1xf32, #tpu.memory_space<vmem>>, %arg9: memref<2x1xf32, #tpu.memory_space<vmem>>) attributes {dimension_semantics = [], scalar_prefetch = 0 : i64, scratch_operands = 0 : i64, tpu.core_type = #tpu.core_type<tc>} {
    %c0 = arith.constant 0 : index
    %c0_0 = arith.constant 0 : index
    %0 = vector.load %arg1[%c0, %c0_0] : memref<2x9xbf16, #tpu.memory_space<vmem>>, vector<2x9xbf16>
    %c0_1 = arith.constant 0 : index
    %c0_2 = arith.constant 0 : index
    %1 = vector.load %arg2[%c0_1, %c0_2] : memref<9x256xbf16, #tpu.memory_space<vmem>>, vector<9x256xbf16>
    %cst = arith.constant dense<0.000000e+00> : vector<2x256xf32>
    %2 = tpu.matmul %0, %1, %cst {dimension_numbers = #tpu.dot_dimension_numbers<[1], [0], [0], [1], [0, 0, 1, 1], [], []>} : vector<2x9xbf16>, vector<9x256xbf16>, vector<2x256xf32> -> vector<2x256xf32>
    %c0_3 = arith.constant 0 : index
    %c0_4 = arith.constant 0 : index
    %3 = vector.load %arg3[%c0_3, %c0_4] : memref<1x256xf32, #tpu.memory_space<vmem>>, vector<1x256xf32>
    %4 = vector.broadcast %3 : vector<1x256xf32> to vector<2x256xf32>
    %5 = arith.addf %2, %4 : vector<2x256xf32>
    %cst_5 = arith.constant 0.000000e+00 : f32
    %6 = vector.broadcast %cst_5 : f32 to vector<2x256xf32>
    %7 = arith.maximumf %5, %6 : vector<2x256xf32>
    %c0_6 = arith.constant 0 : index
    %c0_7 = arith.constant 0 : index
    %8 = vector.load %arg0[%c0_6, %c0_7] : memref<2x512xbf16, #tpu.memory_space<vmem>>, vector<2x512xbf16>
    %c0_8 = arith.constant 0 : index
    %c0_9 = arith.constant 0 : index
    %9 = vector.load %arg4[%c0_8, %c0_9] : memref<512x32xbf16, #tpu.memory_space<vmem>>, vector<512x32xbf16>
    %cst_10 = arith.constant dense<0.000000e+00> : vector<2x32xf32>
    %10 = tpu.matmul %8, %9, %cst_10 {dimension_numbers = #tpu.dot_dimension_numbers<[1], [0], [0], [1], [0, 0, 1, 1], [], []>} : vector<2x512xbf16>, vector<512x32xbf16>, vector<2x32xf32> -> vector<2x32xf32>
    %11 = arith.truncf %7 : vector<2x256xf32> to vector<2x256xbf16>
    %c0_11 = arith.constant 0 : index
    %c0_12 = arith.constant 0 : index
    %12 = vector.load %arg5[%c0_11, %c0_12] : memref<256x32xbf16, #tpu.memory_space<vmem>>, vector<256x32xbf16>
    %cst_13 = arith.constant dense<0.000000e+00> : vector<2x32xf32>
    %13 = tpu.matmul %11, %12, %cst_13 {dimension_numbers = #tpu.dot_dimension_numbers<[1], [0], [0], [1], [0, 0, 1, 1], [], []>} : vector<2x256xbf16>, vector<256x32xbf16>, vector<2x32xf32> -> vector<2x32xf32>
    %14 = arith.addf %10, %13 : vector<2x32xf32>
    %c0_14 = arith.constant 0 : index
    %c0_15 = arith.constant 0 : index
    %15 = vector.load %arg6[%c0_14, %c0_15] : memref<1x32xf32, #tpu.memory_space<vmem>>, vector<1x32xf32>
    %16 = vector.broadcast %15 : vector<1x32xf32> to vector<2x32xf32>
    %17 = arith.addf %14, %16 : vector<2x32xf32>
    %cst_16 = arith.constant 0.000000e+00 : f32
    %18 = vector.broadcast %cst_16 : f32 to vector<2x32xf32>
    %19 = arith.maximumf %17, %18 : vector<2x32xf32>
    %20 = arith.truncf %19 : vector<2x32xf32> to vector<2x32xbf16>
    %c0_17 = arith.constant 0 : index
    %c0_18 = arith.constant 0 : index
    %21 = vector.load %arg7[%c0_17, %c0_18] : memref<32x1xbf16, #tpu.memory_space<vmem>>, vector<32x1xbf16>
    %cst_19 = arith.constant dense<0.000000e+00> : vector<2x1xf32>
    %22 = tpu.matmul %20, %21, %cst_19 {dimension_numbers = #tpu.dot_dimension_numbers<[1], [0], [0], [1], [0, 0, 1, 1], [], []>} : vector<2x32xbf16>, vector<32x1xbf16>, vector<2x1xf32> -> vector<2x1xf32>
    %c0_20 = arith.constant 0 : index
    %c0_21 = arith.constant 0 : index
    %23 = vector.load %arg8[%c0_20, %c0_21] : memref<1x1xf32, #tpu.memory_space<vmem>>, vector<1x1xf32>
    %24 = vector.broadcast %23 : vector<1x1xf32> to vector<2x1xf32>
    %25 = arith.addf %22, %24 : vector<2x1xf32>
    %c0_22 = arith.constant 0 : index
    %c0_23 = arith.constant 0 : index
    %26 = vector.load %arg9[%c0_22, %c0_23] : memref<2x1xf32, #tpu.memory_space<vmem>>, vector<2x1xf32>
    tpu.vector_store %arg9[%c0_22, %c0_23], %25 {strides = array<i32>} : memref<2x1xf32, #tpu.memory_space<vmem>>, vector<2x1xf32>,
    return
  }
}

</mosaic_0001>

<llo_original>
// kernel: critic_forward.3
$region0: #{critic_forward.3}
  #allocation0 [shape = 'u32[]', space=smem, size = 0x4, offset = 0x4, fixed_abs, tag = 'smem constant byte address 0x4 - core index']
  #allocation1 [shape = 'u32[72,128]{1,0:T(1,128)}', space=vmem, size = 0x9000, scoped, tag = 'internal scratch']
  %s0 = inlined_call_operand.vmem [shape: bf16[8,128,8], index: 0, kind: input, shape index: {}]
  %s1 = inlined_call_operand.vmem [shape: bf16[8,128], index: 1, kind: input, shape index: {}]
  %s2 = inlined_call_operand.vmem [shape: f32[1,128], index: 2, kind: input, shape index: {}]
  %s3 = inlined_call_operand.vmem [shape: f32[1,128], index: 3, kind: input, shape index: {}]
  %s4 = inlined_call_operand.vmem [shape: f32[128,128], index: 4, kind: output, shape index: {}]
  %s5 = sld [smem:[#allocation0]]
  $region90: #{critic_forward.3} parent=0
    _
  %s7 = ssub.s32 1, %s5
  %s8 = scalar_select 0, %s7, %s5
  $region1: #{critic_forward.3} parent=0
    #allocation2 [shape = 'u8[262144]{0}', space=vmem, size = 0x40000, scoped, tag = 'input window, operand 0']
    loop: start=0, step=1, limit=4
    $region2: #{critic_forward.3} parent=1 // loop_pre_header
      _
    $region3: #{critic_forward.3} parent=1 // loop_header
      %s10 = sphi 0, %s14
      %p11 = scmp.ge.s32.totalorder %s10, 4
      %s20 = sphi 0, %s22
      %s23 = sphi 0, %s20
      %s24 = sphi 0, %s23
      %s40 = sphi 0, %s24
      %s44 = sphi 0, %s44
      %s46 = sphi 0, %s44
      %s47 = sphi 0, %s46
      %s61 = sphi 0, %s47
      %s65 = sphi 0, %s65
      %s67 = sphi 0, %s65
      %s68 = sphi 0, %s67
      %s82 = sphi 0, %s68
      %s86 = sphi 0, %s86
      %s88 = sphi 0, %s86
      %s89 = sphi 0, %s88
      %s103 = sphi 0, %s89
      %s109 = sphi 0, %s111
      %s112 = sphi 0, %s109
      %s113 = sphi 0, %s112
      %s129 = sphi 0, %s113
    $region4: #{critic_forward.3} parent=1 // loop_header_branch
      %13 = sbr.rel (%p11) target = $region8
    $region5: #{critic_forward.3} parent=1 // loop_body
      %s15 = ssub.s32 %s10, 1
      %s16 = ssub.s32 %s10, 2
      %s17 = sadd.s32 %s10, 1
      %s18 = ssub.s32 %s10, %s17
      %p19 = scmp.eq.s32.totalorder %s18, 0
      %s21 = sadd.s32 %s20, 1
      %s22 = scalar_select %p19, %s20, %s21
      %p25 = pneg %p19
      %p26 = scmp.eq.s32.totalorder %s10, 1
      %p27 = por %p25, %p26
      %p28 = scmp.ne.s32.totalorder %s20, %s23
      %p29 = scmp.eq.s32.totalorder %s10, 0
      %p30 = por %p28, %p29
      %p31 = scmp.ne.s32.totalorder %s20, %s23
      %p32 = scmp.eq.s32.totalorder %s15, 1
      %p33 = por %p31, %p32
      %p34 = scmp.ne.s32.totalorder %s23, %s24
      %p35 = scmp.eq.s32.totalorder %s15, 0
      %p36 = por %p34, %p35
      %p37 = scmp.ne.s32.totalorder %s23, %s24
      %p38 = scmp.eq.s32.totalorder %s16, 1
      %p39 = por %p37, %p38
      %p41 = scmp.ne.s32.totalorder %s24, %s40
      %p42 = scmp.eq.s32.totalorder %s16, 0
      %p43 = por %p41, %p42
      %s45 = sadd.s32 %s44, 1
      %p48 = scmp.eq.s32.totalorder %s10, 1
      %p49 = scmp.ne.s32.totalorder %s44, %s46
      %p50 = scmp.eq.s32.totalorder %s10, 0
      %p51 = por %p49, %p50
      %p52 = scmp.ne.s32.totalorder %s44, %s46
      %p53 = scmp.eq.s32.totalorder %s15, 1
      %p54 = por %p52, %p53
      %p55 = scmp.ne.s32.totalorder %s46, %s47
      %p56 = scmp.eq.s32.totalorder %s15, 0
      %p57 = por %p55, %p56
      %p58 = scmp.ne.s32.totalorder %s46, %s47
      %p59 = scmp.eq.s32.totalorder %s16, 1
      %p60 = por %p58, %p59
      %p62 = scmp.ne.s32.totalorder %s47, %s61
      %p63 = scmp.eq.s32.totalorder %s16, 0
      %p64 = por %p62, %p63
      %s66 = sadd.s32 %s65, 1
      %p69 = scmp.eq.s32.totalorder %s10, 1
      %p70 = scmp.ne.s32.totalorder %s65, %s67
      %p71 = scmp.eq.s32.totalorder %s10, 0
      %p72 = por %p70, %p71
      %p73 = scmp.ne.s32.totalorder %s65, %s67
      %p74 = scmp.eq.s32.totalorder %s15, 1
      %p75 = por %p73, %p74
      %p76 = scmp.ne.s32.totalorder %s67, %s68
      %p77 = scmp.eq.s32.totalorder %s15, 0
      %p78 = por %p76, %p77
      %p79 = scmp.ne.s32.totalorder %s67, %s68
      %p80 = scmp.eq.s32.totalorder %s16, 1
      %p81 = por %p79, %p80
      %p83 = scmp.ne.s32.totalorder %s68, %s82
      %p84 = scmp.eq.s32.totalorder %s16, 0
      %p85 = por %p83, %p84
      %s87 = sadd.s32 %s86, 1
      %p90 = scmp.eq.s32.totalorder %s10, 1
      %p91 = scmp.ne.s32.totalorder %s86, %s88
      %p92 = scmp.eq.s32.totalorder %s10, 0
      %p93 = por %p91, %p92
      %p94 = scmp.ne.s32.totalorder %s86, %s88
      %p95 = scmp.eq.s32.totalorder %s15, 1
      %p96 = por %p94, %p95
      %p97 = scmp.ne.s32.totalorder %s88, %s89
      %p98 = scmp.eq.s32.totalorder %s15, 0
      %p99 = por %p97, %p98
      %p100 = scmp.ne.s32.totalorder %s88, %s89
      %p101 = scmp.eq.s32.totalorder %s16, 1
      %p102 = por %p100, %p101
      %p104 = scmp.ne.s32.totalorder %s89, %s103
      %p105 = scmp.eq.s32.totalorder %s16, 0
      %p106 = por %p104, %p105
      %s107 = ssub.s32 %s10, %s17
      %p108 = scmp.eq.s32.totalorder %s107, 0
      %s110 = sadd.s32 %s109, 1
      %s111 = scalar_select %p108, %s109, %s110
      %p114 = pneg %p108
      %p115 = scmp.eq.s32.totalorder %s10, 1
      %p116 = por %p114, %p115
      %p117 = scmp.ne.s32.totalorder %s109, %s112
      %p118 = scmp.eq.s32.totalorder %s10, 0
      %p119 = por %p117, %p118
      %p120 = scmp.ne.s32.totalorder %s109, %s112
      %p121 = scmp.eq.s32.totalorder %s15, 1
      %p122 = por %p120, %p121
      %p123 = scmp.ne.s32.totalorder %s112, %s113
      %p124 = scmp.eq.s32.totalorder %s15, 0
      %p125 = por %p123, %p124
      %p126 = scmp.ne.s32.totalorder %s112, %s113
      %p127 = scmp.eq.s32.totalorder %s16, 1
      %p128 = por %p126, %p127
      %p130 = scmp.ne.s32.totalorder %s113, %s129
      %p131 = scmp.eq.s32.totalorder %s16, 0
      %p132 = por %p130, %p131
      %p133 = scmp.le.s32.totalorder 1, %s10
      %p134 = scmp.lt.s32.totalorder %s10, 3
      %p135 = pnand %p133, %p134
      %p136 = pneg %p135
      // Predicated region
      $region9: #{critic_forward.3} parent=5 // pred_check
        _
      $region10: #{critic_forward.3} parent=5 // pred_check_branch
        %138 = sbr.rel (%p135) target = $region12
      $region11: #{critic_forward.3} parent=5 // pred_region
        %s139 = ssub.s32 %s10, 1
        // Predicated region
        $region13: #{critic_forward.3} parent=11 // pred_check
          %p140 = pneg %p57
        $region14: #{critic_forward.3} parent=11 // pred_check_branch
          %142 = sbr.rel (%p140) target = $region16
        $region15: #{critic_forward.3} parent=11 // pred_region
          _
        $region16: #{critic_forward.3} parent=11 // pred_fallthru
          _
        // Predicated region
        $region17: #{critic_forward.3} parent=11 // pred_check
          %p143 = pneg %p78
        $region18: #{critic_forward.3} parent=11 // pred_check_branch
          %145 = sbr.rel (%p143) target = $region20
        $region19: #{critic_forward.3} parent=11 // pred_region
          _
        $region20: #{critic_forward.3} parent=11 // pred_fallthru
          _
        // Predicated region
        $region21: #{critic_forward.3} parent=11 // pred_check
          %p146 = pneg %p99
        $region22: #{critic_forward.3} parent=11 // pred_check_branch
          %148 = sbr.rel (%p146) target = $region24
        $region23: #{critic_forward.3} parent=11 // pred_region
          _
        $region24: #{critic_forward.3} parent=11 // pred_fallthru
          _
      $region12: #{critic_forward.3} parent=5 // pred_fallthru
        _
      %p149 = scmp.lt.s32.totalorder %s10, 2
      // Predicated region
      $region25: #{critic_forward.3} parent=5 // pred_check
        %p150 = pneg %p149
      $region26: #{critic_forward.3} parent=5 // pred_check_branch
        %152 = sbr.rel (%p150) target = $region28
      $region27: #{critic_forward.3} parent=5 // pred_region
        // Predicated region
        $region29: #{critic_forward.3} parent=27 // pred_check
          %p153 = pneg %p30
        $region30: #{critic_forward.3} parent=27 // pred_check_branch
          %155 = sbr.rel (%p153) target = $region32
        $region31: #{critic_forward.3} parent=27 // pred_region
          %s156 = sand.u32 %s20, 1
          %s157 = sand.u32 %s20, 1
          %s158 = smul.addr %s157, 256
          %s159 = scalar_lea.vmem [#allocation2], %s158
          %s160 = smul.u32 8, %s10
          %s161 = smul.addr %s160, 4
          %s162 = scalar_lea.vmem %s0, %s161
          // Predicated region
          $region33: #{critic_forward.3} parent=31 // pred_check
            _
          $region34: #{critic_forward.3} parent=31 // pred_check_branch
            %164 = sbr.rel (0) target = $region36
          $region35: #{critic_forward.3} parent=31 // pred_region
            // Predicated region
            $region37: #{critic_forward.3} parent=35 // pred_check
              _
            $region38: #{critic_forward.3} parent=35 // pred_check_branch
              %166 = sbr.rel target = $region40
            $region39: #{critic_forward.3} parent=35 // pred_region
              // Predicated region
              $region52: #{critic_forward.3} parent=39 // pred_check
                _
              $region53: #{critic_forward.3} parent=39 // pred_check_branch
                %308 = sbr.rel (0) target = $region55
              $region54: #{critic_forward.3} parent=39 // pred_region
                loop: start=0, step=1, limit=1
                $region56: #{critic_forward.3} parent=54 // loop_pre_header
                  _
                $region57: #{critic_forward.3} parent=54 // loop_header
                  %s310 = sphi 0, %s314
                  %p311 = scmp.ge.s32.totalorder %s310, 1
                  %s315 = sphi %s162, %s162
                  %s316 = sphi %s159, %s159
                $region58: #{critic_forward.3} parent=54 // loop_header_branch
                  %313 = sbr.rel (%p311) target = $region62
                $region59: #{critic_forward.3} parent=54 // loop_body
                  _
                $region60: #{critic_forward.3} parent=54 // loop_footer
                  %s314 = sadd.s32 1, %s310
                $region61: #{critic_forward.3} parent=54 // loop_footer_branch
                  %309 = sbr.rel target = $region57
                $region62: #{critic_forward.3} parent=54 // loop_exit
                  _
                %s318 = ssub.s32 16, 1
                loop: start=0, step=1, limit=1
                $region63: #{critic_forward.3} parent=54 // loop_pre_header
                  _
                $region64: #{critic_forward.3} parent=54 // loop_header
                  %s320 = sphi 0, %s324
                  %p321 = scmp.ge.s32.totalorder %s320, 1
                  %s325 = sphi %s162, %s162
                  %s326 = sphi %s159, %s159
                $region65: #{critic_forward.3} parent=54 // loop_header_branch
                  %323 = sbr.rel (%p321) target = $region69
                $region66: #{critic_forward.3} parent=54 // loop_body
                  %v327 = vld [vmem:[%s325] sm:%s318]
                  %328 = vst [vmem:[%s326] sm:%s318] %v327
                  %v329 = vld [vmem:[%s325 + $0x4] sm:%s318]
                  %330 = vst [vmem:[%s326 + $0x4] sm:%s318] %v329
                  %v331 = vld [vmem:[%s325 + $0x8] sm:%s318]
                  %332 = vst [vmem:[%s326 + $0x8] sm:%s318] %v331
                  %v333 = vld [vmem:[%s325 + $0xc] sm:%s318]
                  %334 = vst [vmem:[%s326 + $0xc] sm:%s318] %v333
                  %v335 = vld [vmem:[%s325 + $0x10] sm:%s318]
                  %336 = vst [vmem:[%s326 + $0x10] sm:%s318] %v335
                  %v337 = vld [vmem:[%s325 + $0x14] sm:%s318]
                  %338 = vst [vmem:[%s326 + $0x14] sm:%s318] %v337
                  %v339 = vld [vmem:[%s325 + $0x18] sm:%s318]
                  %340 = vst [vmem:[%s326 + $0x18] sm:%s318] %v339
                  %v341 = vld [vmem:[%s325 + $0x1c] sm:%s318]
                  %342 = vst [vmem:[%s326 + $0x1c] sm:%s318] %v341
                  %v343 = vld [vmem:[%s325 + $0x40] sm:%s318]
                  %344 = vst [vmem:[%s326 + $0x20] sm:%s318] %v343
                  %v345 = vld [vmem:[%s325 + $0x44] sm:%s318]
                  %346 = vst [vmem:[%s326 + $0x24] sm:%s318] %v345
                  %v347 = vld [vmem:[%s325 + $0x48] sm:%s318]
                  %348 = vst [vmem:[%s326 + $0x28] sm:%s318] %v347
                  %v349 = vld [vmem:[%s325 + $0x4c] sm:%s318]
                  %350 = vst [vmem:[%s326 + $0x2c] sm:%s318] %v349
                  %v351 = vld [vmem:[%s325 + $0x50] sm:%s318]
                  %352 = vst [vmem:[%s326 + $0x30] sm:%s318] %v351
                  %v353 = vld [vmem:[%s325 + $0x54] sm:%s318]
                  %354 = vst [vmem:[%s326 + $0x34] sm:%s318] %v353
                  %v355 = vld [vmem:[%s325 + $0x58] sm:%s318]
                  %356 = vst [vmem:[%s326 + $0x38] sm:%s318] %v355
                  %v357 = vld [vmem:[%s325 + $0x5c] sm:%s318]
                  %358 = vst [vmem:[%s326 + $0x3c] sm:%s318] %v357
                  %v359 = vld [vmem:[%s325 + $0x80] sm:%s318]
                  %360 = vst [vmem:[%s326 + $0x40] sm:%s318] %v359
                  %v361 = vld [vmem:[%s325 + $0x84] sm:%s318]
                  %362 = vst [vmem:[%s326 + $0x44] sm:%s318] %v361
                  %v363 = vld [vmem:[%s325 + $0x88] sm:%s318]
                  %364 = vst [vmem:[%s326 + $0x48] sm:%s318] %v363
                  %v365 = vld [vmem:[%s325 + $0x8c] sm:%s318]
                  %366 = vst [vmem:[%s326 + $0x4c] sm:%s318] %v365
                  %v367 = vld [vmem:[%s325 + $0x90] sm:%s318]
                  %368 = vst [vmem:[%s326 + $0x50] sm:%s318] %v367
                  %v369 = vld [vmem:[%s325 + $0x94] sm:%s318]
                  %370 = vst [vmem:[%s326 + $0x54] sm:%s318] %v369
                  %v371 = vld [vmem:[%s325 + $0x98] sm:%s318]
                  %372 = vst [vmem:[%s326 + $0x58] sm:%s318] %v371
                  %v373 = vld [vmem:[%s325 + $0x9c] sm:%s318]
                  %374 = vst [vmem:[%s326 + $0x5c] sm:%s318] %v373
                  %v375 = vld [vmem:[%s325 + $0xc0] sm:%s318]
                  %376 = vst [vmem:[%s326 + $0x60] sm:%s318] %v375
                  %v377 = vld [vmem:[%s325 + $0xc4] sm:%s318]
                  %378 = vst [vmem:[%s326 + $0x64] sm:%s318] %v377
                  %v379 = vld [vmem:[%s325 + $0xc8] sm:%s318]
                  %380 = vst [vmem:[%s326 + $0x68] sm:%s318] %v379
                  %v381 = vld [vmem:[%s325 + $0xcc] sm:%s318]
                  %382 = vst [vmem:[%s326 + $0x6c] sm:%s318] %v381
                  %v383 = vld [vmem:[%s325 + $0xd0] sm:%s318]
                  %384 = vst [vmem:[%s326 + $0x70] sm:%s318] %v383
                  %v385 = vld [vmem:[%s325 + $0xd4] sm:%s318]
                  %386 = vst [vmem:[%s326 + $0x74] sm:%s318] %v385
                  %v387 = vld [vmem:[%s325 + $0xd8] sm:%s318]
                  %388 = vst [vmem:[%s326 + $0x78] sm:%s318] %v387
                  %v389 = vld [vmem:[%s325 + $0xdc] sm:%s318]
                  %390 = vst [vmem:[%s326 + $0x7c] sm:%s318] %v389
                  %v391 = vld [vmem:[%s325 + $0x100] sm:%s318]
                  %392 = vst [vmem:[%s326 + $0x80] sm:%s318] %v391
                  %v393 = vld [vmem:[%s325 + $0x104] sm:%s318]
                  %394 = vst [vmem:[%s326 + $0x84] sm:%s318] %v393
                  %v395 = vld [vmem:[%s325 + $0x108] sm:%s318]
                  %396 = vst [vmem:[%s326 + $0x88] sm:%s318] %v395
                  %v397 = vld [vmem:[%s325 + $0x10c] sm:%s318]
                  %398 = vst [vmem:[%s326 + $0x8c] sm:%s318] %v397
                  %v399 = vld [vmem:[%s325 + $0x110] sm:%s318]
                  %400 = vst [vmem:[%s326 + $0x90] sm:%s318] %v399
                  %v401 = vld [vmem:[%s325 + $0x114] sm:%s318]
                  %402 = vst [vmem:[%s326 + $0x94] sm:%s318] %v401
                  %v403 = vld [vmem:[%s325 + $0x118] sm:%s318]
                  %404 = vst [vmem:[%s326 + $0x98] sm:%s318] %v403
                  %v405 = vld [vmem:[%s325 + $0x11c] sm:%s318]
                  %406 = vst [vmem:[%s326 + $0x9c] sm:%s318] %v405
                  %v407 = vld [vmem:[%s325 + $0x140] sm:%s318]
                  %408 = vst [vmem:[%s326 + $0xa0] sm:%s318] %v407
                  %v409 = vld [vmem:[%s325 + $0x144] sm:%s318]
                  %410 = vst [vmem:[%s326 + $0xa4] sm:%s318] %v409
                  %v411 = vld [vmem:[%s325 + $0x148] sm:%s318]
                  %412 = vst [vmem:[%s326 + $0xa8] sm:%s318] %v411
                  %v413 = vld [vmem:[%s325 + $0x14c] sm:%s318]
                  %414 = vst [vmem:[%s326 + $0xac] sm:%s318] %v413
                  %v415 = vld [vmem:[%s325 + $0x150] sm:%s318]
                  %416 = vst [vmem:[%s326 + $0xb0] sm:%s318] %v415
                  %v417 = vld [vmem:[%s325 + $0x154] sm:%s318]
                  %418 = vst [vmem:[%s326 + $0xb4] sm:%s318] %v417
                  %v419 = vld [vmem:[%s325 + $0x158] sm:%s318]
                  %420 = vst [vmem:[%s326 + $0xb8] sm:%s318] %v419
                  %v421 = vld [vmem:[%s325 + $0x15c] sm:%s318]
                  %422 = vst [vmem:[%s326 + $0xbc] sm:%s318] %v421
                  %v423 = vld [vmem:[%s325 + $0x180] sm:%s318]
                  %424 = vst [vmem:[%s326 + $0xc0] sm:%s318] %v423
                  %v425 = vld [vmem:[%s325 + $0x184] sm:%s318]
                  %426 = vst [vmem:[%s326 + $0xc4] sm:%s318] %v425
                  %v427 = vld [vmem:[%s325 + $0x188] sm:%s318]
                  %428 = vst [vmem:[%s326 + $0xc8] sm:%s318] %v427
                  %v429 = vld [vmem:[%s325 + $0x18c] sm:%s318]
                  %430 = vst [vmem:[%s326 + $0xcc] sm:%s318] %v429
                  %v431 = vld [vmem:[%s325 + $0x190] sm:%s318]
                  %432 = vst [vmem:[%s326 + $0xd0] sm:%s318] %v431
                  %v433 = vld [vmem:[%s325 + $0x194] sm:%s318]
                  %434 = vst [vmem:[%s326 + $0xd4] sm:%s318] %v433
                  %v435 = vld [vmem:[%s325 + $0x198] sm:%s318]
                  %436 = vst [vmem:[%s326 + $0xd8] sm:%s318] %v435
                  %v437 = vld [vmem:[%s325 + $0x19c] sm:%s318]
                  %438 = vst [vmem:[%s326 + $0xdc] sm:%s318] %v437
                  %v439 = vld [vmem:[%s325 + $0x1c0] sm:%s318]
                  %440 = vst [vmem:[%s326 + $0xe0] sm:%s318] %v439
                  %v441 = vld [vmem:[%s325 + $0x1c4] sm:%s318]
                  %442 = vst [vmem:[%s326 + $0xe4] sm:%s318] %v441
                  %v443 = vld [vmem:[%s325 + $0x1c8] sm:%s318]
                  %444 = vst [vmem:[%s326 + $0xe8] sm:%s318] %v443
                  %v445 = vld [vmem:[%s325 + $0x1cc] sm:%s318]
                  %446 = vst [vmem:[%s326 + $0xec] sm:%s318] %v445
                  %v447 = vld [vmem:[%s325 + $0x1d0] sm:%s318]
                  %448 = vst [vmem:[%s326 + $0xf0] sm:%s318] %v447
                  %v449 = vld [vmem:[%s325 + $0x1d4] sm:%s318]
                  %450 = vst [vmem:[%s326 + $0xf4] sm:%s318] %v449
                  %v451 = vld [vmem:[%s325 + $0x1d8] sm:%s318]
                  %452 = vst [vmem:[%s326 + $0xf8] sm:%s318] %v451
                  %v453 = vld [vmem:[%s325 + $0x1dc] sm:%s318]
                  %454 = vst [vmem:[%s326 + $0xfc] sm:%s318] %v453
                $region67: #{critic_forward.3} parent=54 // loop_footer
                  %s324 = sadd.s32 1, %s320
                $region68: #{critic_forward.3} parent=54 // loop_footer_branch
                  %319 = sbr.rel target = $region64
                $region69: #{critic_forward.3} parent=54 // loop_exit
                  _
              $region55: #{critic_forward.3} parent=39 // pred_fallthru
                _
            $region40: #{critic_forward.3} parent=35 // pred_fallthru
              _
            // Predicated region
            $region41: #{critic_forward.3} parent=35 // pred_check
              _
            $region42: #{critic_forward.3} parent=35 // pred_check_branch
              %168 = sbr.rel (0) target = $region44
            $region43: #{critic_forward.3} parent=35 // pred_region
              %s170 = ssub.s32 16, 1
              loop: start=0, step=1, limit=1
              $region45: #{critic_forward.3} parent=43 // loop_pre_header
                _
              $region46: #{critic_forward.3} parent=43 // loop_header
                %s172 = sphi 0, %s176
                %p173 = scmp.ge.s32.totalorder %s172, 1
                %s177 = sphi %s162, %s162
                %s178 = sphi %s159, %s159
              $region47: #{critic_forward.3} parent=43 // loop_header_branch
                %175 = sbr.rel (%p173) target = $region51
              $region48: #{critic_forward.3} parent=43 // loop_body
                %v179 = vld [vmem:[%s177] sm:%s170]
                %180 = vst [vmem:[%s178] sm:%s170] %v179
                %v181 = vld [vmem:[%s177 + $0x4] sm:%s170]
                %182 = vst [vmem:[%s178 + $0x4] sm:%s170] %v181
                %v183 = vld [vmem:[%s177 + $0x8] sm:%s170]
                %184 = vst [vmem:[%s178 + $0x8] sm:%s170] %v183
                %v185 = vld [vmem:[%s177 + $0xc] sm:%s170]
                %186 = vst [vmem:[%s178 + $0xc] sm:%s170] %v185
                %v187 = vld [vmem:[%s177 + $0x10] sm:%s170]
                %188 = vst [vmem:[%s178 + $0x10] sm:%s170] %v187
                %v189 = vld [vmem:[%s177 + $0x14] sm:%s170]
                %190 = vst [vmem:[%s178 + $0x14] sm:%s170] %v189
                %v191 = vld [vmem:[%s177 + $0x18] sm:%s170]
                %192 = vst [vmem:[%s178 + $0x18] sm:%s170] %v191
                %v193 = vld [vmem:[%s177 + $0x1c] sm:%s170]
                %194 = vst [vmem:[%s178 + $0x1c] sm:%s170] %v193
                %v195 = vld [vmem:[%s177 + $0x40] sm:%s170]
                %196 = vst [vmem:[%s178 + $0x20] sm:%s170] %v195
                %v197 = vld [vmem:[%s177 + $0x44] sm:%s170]
                %198 = vst [vmem:[%s178 + $0x24] sm:%s170] %v197
                %v199 = vld [vmem:[%s177 + $0x48] sm:%s170]
                %200 = vst [vmem:[%s178 + $0x28] sm:%s170] %v199
                %v201 = vld [vmem:[%s177 + $0x4c] sm:%s170]
                %202 = vst [vmem:[%s178 + $0x2c] sm:%s170] %v201
                %v203 = vld [vmem:[%s177 + $0x50] sm:%s170]
                %204 = vst [vmem:[%s178 + $0x30] sm:%s170] %v203
                %v205 = vld [vmem:[%s177 + $0x54] sm:%s170]
                %206 = vst [vmem:[%s178 + $0x34] sm:%s170] %v205
                %v207 = vld [vmem:[%s177 + $0x58] sm:%s170]
                %208 = vst [vmem:[%s178 + $0x38] sm:%s170] %v207
                %v209 = vld [vmem:[%s177 + $0x5c] sm:%s170]
                %210 = vst [vmem:[%s178 + $0x3c] sm:%s170] %v209
                %v211 = vld [vmem:[%s177 + $0x80] sm:%s170]
                %212 = vst [vmem:[%s178 + $0x40] sm:%s170] %v211
                %v213 = vld [vmem:[%s177 + $0x84] sm:%s170]
                %214 = vst [vmem:[%s178 + $0x44] sm:%s170] %v213
                %v215 = vld [vmem:[%s177 + $0x88] sm:%s170]
                %216 = vst [vmem:[%s178 + $0x48] sm:%s170] %v215
                %v217 = vld [vmem:[%s177 + $0x8c] sm:%s170]
                %218 = vst [vmem:[%s178 + $0x4c] sm:%s170] %v217
                %v219 = vld [vmem:[%s177 + $0x90] sm:%s170]
                %220 = vst [vmem:[%s178 + $0x50] sm:%s170] %v219
                %v221 = vld [vmem:[%s177 + $0x94] sm:%s170]
                %222 = vst [vmem:[%s178 + $0x54] sm:%s170] %v221
                %v223 = vld [vmem:[%s177 + $0x98] sm:%s170]
                %224 = vst [vmem:[%s178 + $0x58] sm:%s170] %v223
                %v225 = vld [vmem:[%s177 + $0x9c] sm:%s170]
                %226 = vst [vmem:[%s178 + $0x5c] sm:%s170] %v225
                %v227 = vld [vmem:[%s177 + $0xc0] sm:%s170]
                %228 = vst [vmem:[%s178 + $0x60] sm:%s170] %v227
                %v229 = vld [vmem:[%s177 + $0xc4] sm:%s170]
                %230 = vst [vmem:[%s178 + $0x64] sm:%s170] %v229
                %v231 = vld [vmem:[%s177 + $0xc8] sm:%s170]
                %232 = vst [vmem:[%s178 + $0x68] sm:%s170] %v231
                %v233 = vld [vmem:[%s177 + $0xcc] sm:%s170]
                %234 = vst [vmem:[%s178 + $0x6c] sm:%s170] %v233
                %v235 = vld [vmem:[%s177 + $0xd0] sm:%s170]
                %236 = vst [vmem:[%s178 + $0x70] sm:%s170] %v235
                %v237 = vld [vmem:[%s177 + $0xd4] sm:%s170]
                %238 = vst [vmem:[%s178 + $0x74] sm:%s170] %v237
                %v239 = vld [vmem:[%s177 + $0xd8] sm:%s170]
                %240 = vst [vmem:[%s178 + $0x78] sm:%s170] %v239
                %v241 = vld [vmem:[%s177 + $0xdc] sm:%s170]
                %242 = vst [vmem:[%s178 + $0x7c] sm:%s170] %v241
                %v243 = vld [vmem:[%s177 + $0x100] sm:%s170]
                %244 = vst [vmem:[%s178 + $0x80] sm:%s170] %v243
                %v245 = vld [vmem:[%s177 + $0x104] sm:%s170]
                %246 = vst [vmem:[%s178 + $0x84] sm:%s170] %v245
                %v247 = vld [vmem:[%s177 + $0x108] sm:%s170]
                %248 = vst [vmem:[%s178 + $0x88] sm:%s170] %v247
                %v249 = vld [vmem:[%s177 + $0x10c] sm:%s170]
                %250 = vst [vmem:[%s178 + $0x8c] sm:%s170] %v249
                %v251 = vld [vmem:[%s177 + $0x110] sm:%s170]
                %252 = vst [vmem:[%s178 + $0x90] sm:%s170] %v251
                %v253 = vld [vmem:[%s177 + $0x114] sm:%s170]
                %254 = vst [vmem:[%s178 + $0x94] sm:%s170] %v253
                %v255 = vld [vmem:[%s177 + $0x118] sm:%s170]
                %256 = vst [vmem:[%s178 + $0x98] sm:%s170] %v255
                %v257 = vld [vmem:[%s177 + $0x11c] sm:%s170]
                %258 = vst [vmem:[%s178 + $0x9c] sm:%s170] %v257
                %v259 = vld [vmem:[%s177 + $0x140] sm:%s170]
                %260 = vst [vmem:[%s178 + $0xa0] sm:%s170] %v259
                %v261 = vld [vmem:[%s177 + $0x144] sm:%s170]
                %262 = vst [vmem:[%s178 + $0xa4] sm:%s170] %v261
                %v263 = vld [vmem:[%s177 + $0x148] sm:%s170]
                %264 = vst [vmem:[%s178 + $0xa8] sm:%s170] %v263
                %v265 = vld [vmem:[%s177 + $0x14c] sm:%s170]
                %266 = vst [vmem:[%s178 + $0xac] sm:%s170] %v265
                %v267 = vld [vmem:[%s177 + $0x150] sm:%s170]
                %268 = vst [vmem:[%s178 + $0xb0] sm:%s170] %v267
                %v269 = vld [vmem:[%s177 + $0x154] sm:%s170]
                %270 = vst [vmem:[%s178 + $0xb4] sm:%s170] %v269
                %v271 = vld [vmem:[%s177 + $0x158] sm:%s170]
                %272 = vst [vmem:[%s178 + $0xb8] sm:%s170] %v271
                %v273 = vld [vmem:[%s177 + $0x15c] sm:%s170]
                %274 = vst [vmem:[%s178 + $0xbc] sm:%s170] %v273
                %v275 = vld [vmem:[%s177 + $0x180] sm:%s170]
                %276 = vst [vmem:[%s178 + $0xc0] sm:%s170] %v275
                %v277 = vld [vmem:[%s177 + $0x184] sm:%s170]
                %278 = vst [vmem:[%s178 + $0xc4] sm:%s170] %v277
                %v279 = vld [vmem:[%s177 + $0x188] sm:%s170]
                %280 = vst [vmem:[%s178 + $0xc8] sm:%s170] %v279
                %v281 = vld [vmem:[%s177 + $0x18c] sm:%s170]
                %282 = vst [vmem:[%s178 + $0xcc] sm:%s170] %v281
                %v283 = vld [vmem:[%s177 + $0x190] sm:%s170]
                %284 = vst [vmem:[%s178 + $0xd0] sm:%s170] %v283
                %v285 = vld [vmem:[%s177 + $0x194] sm:%s170]
                %286 = vst [vmem:[%s178 + $0xd4] sm:%s170] %v285
                %v287 = vld [vmem:[%s177 + $0x198] sm:%s170]
                %288 = vst [vmem:[%s178 + $0xd8] sm:%s170] %v287
                %v289 = vld [vmem:[%s177 + $0x19c] sm:%s170]
                %290 = vst [vmem:[%s178 + $0xdc] sm:%s170] %v289
                %v291 = vld [vmem:[%s177 + $0x1c0] sm:%s170]
                %292 = vst [vmem:[%s178 + $0xe0] sm:%s170] %v291
                %v293 = vld [vmem:[%s177 + $0x1c4] sm:%s170]
                %294 = vst [vmem:[%s178 + $0xe4] sm:%s170] %v293
                %v295 = vld [vmem:[%s177 + $0x1c8] sm:%s170]
                %296 = vst [vmem:[%s178 + $0xe8] sm:%s170] %v295
                %v297 = vld [vmem:[%s177 + $0x1cc] sm:%s170]
                %298 = vst [vmem:[%s178 + $0xec] sm:%s170] %v297
                %v299 = vld [vmem:[%s177 + $0x1d0] sm:%s170]
                %300 = vst [vmem:[%s178 + $0xf0] sm:%s170] %v299
                %v301 = vld [vmem:[%s177 + $0x1d4] sm:%s170]
                %302 = vst [vmem:[%s178 + $0xf4] sm:%s170] %v301
                %v303 = vld [vmem:[%s177 + $0x1d8] sm:%s170]
                %304 = vst [vmem:[%s178 + $0xf8] sm:%s170] %v303
                %v305 = vld [vmem:[%s177 + $0x1dc] sm:%s170]
                %306 = vst [vmem:[%s178 + $0xfc] sm:%s170] %v305
              $region49: #{critic_forward.3} parent=43 // loop_footer
                %s176 = sadd.s32 1, %s172
              $region50: #{critic_forward.3} parent=43 // loop_footer_branch
                %171 = sbr.rel target = $region46
              $region51: #{critic_forward.3} parent=43 // loop_exit
                _
            $region44: #{critic_forward.3} parent=35 // pred_fallthru
              _
          $region36: #{critic_forward.3} parent=31 // pred_fallthru
            _
          %455 = vnop
        $region32: #{critic_forward.3} parent=27 // pred_fallthru
          _
      $region28: #{critic_forward.3} parent=5 // pred_fallthru
        _
      %p456 = scmp.le.s32.totalorder 1, %s10
      %p457 = scmp.lt.s32.totalorder %s10, 3
      %p458 = pnand %p456, %p457
      %p459 = pneg %p458
      // Predicated region
      $region70: #{critic_forward.3} parent=5 // pred_check
        _
      $region71: #{critic_forward.3} parent=5 // pred_check_branch
        %461 = sbr.rel (%p458) target = $region73
      $region72: #{critic_forward.3} parent=5 // pred_region
        %s462 = ssub.s32 %s10, 1
        %s463 = sand.u32 %s23, 1
        %s464 = sand.u32 %s23, 1
        %s465 = smul.addr %s464, 256
        %s466 = scalar_lea.vmem [#allocation2], %s465
        // Predicated region
        $region74: #{critic_forward.3} parent=72 // pred_check
          %p467 = pneg %p36
        $region75: #{critic_forward.3} parent=72 // pred_check_branch
          %469 = sbr.rel (%p467) target = $region77
        $region76: #{critic_forward.3} parent=72 // pred_region
          _
        $region77: #{critic_forward.3} parent=72 // pred_fallthru
          _
        %s470 = sand.u32 %s23, 1
        %s471 = sand.u32 %s23, 1
        %s472 = smul.addr %s471, 256
        %s473 = scalar_lea.vmem [#allocation2], %s472
        %p474 = pneg %p36
        %p475 = pneg %p33
        %p476 = pneg %p57
        %p477 = pneg %p54
        %p478 = pneg %p78
        %p479 = pneg %p75
        %p480 = pneg %p99
        %p481 = pneg %p96
        %p482 = pneg %p125
        %p483 = pneg %p122
        %s484 = smul.u32 8, %s15
        %p485 = scmp.lt.s32.totalorder %s484, 15
        %s486 = scalar_select %p485, %s484, 15
        %s487 = smul.addr %s486, 8
        %s488 = scalar_lea.vmem %s4, %s487
        %s489 = smul.u32 8, %s15
        %s490 = smul.u32 8, %s15
        %p491 = scmp.lt.s32.totalorder %s490, 15
        %s492 = scalar_select %p491, %s490, 15
        %s493 = smul.addr %s492, 8
        %s494 = scalar_lea.vmem %s4, %s493
        %s495 = smul.u32 8, %s15
        %v497 = vld [vmem:[%s1] sm:$0xf]
        %v498 = vld [vmem:[%s2] sm:$0x1]
        %v499 = vld [vmem:[%s3] sm:$0x1]
        %v500 = vld [vmem:[%s466] sm:$0xf]
        %v501 = vld [vmem:[%s466 + $0x4] sm:$0xf]
        %v502 = vld [vmem:[%s466 + $0x8] sm:$0xf]
        %v503 = vld [vmem:[%s466 + $0xc] sm:$0xf]
        %v504 = vld [vmem:[%s466 + $0x10] sm:$0xf]
        %v505 = vld [vmem:[%s466 + $0x14] sm:$0xf]
        %v506 = vld [vmem:[%s466 + $0x18] sm:$0xf]
        %v507 = vld [vmem:[%s466 + $0x1c] sm:$0xf]
        %v516 = vunpack.c.l.b16 %v500
        %v517 = vunpack.c.l.b16 %v501
        %v518 = vunpack.c.l.b16 %v502
        %v519 = vunpack.c.l.b16 %v503
        %v520 = vunpack.c.l.b16 %v504
        %v521 = vunpack.c.l.b16 %v505
        %v522 = vunpack.c.l.b16 %v506
        %v523 = vunpack.c.l.b16 %v507
        %v524 = vpack.c.b16 %v517, %v516
        %v525 = vpack.c.b16 %v519, %v518
        %v526 = vpack.c.b16 %v521, %v520
        %v527 = vpack.c.b16 %v523, %v522
        %vm528 = vcmask 64512
        %v530 = vsel %vm528, %v524, 0
        %v533 = vsel %vm528, %v525, 0
        %v536 = vsel %vm528, %v526, 0
        %v539 = vsel %vm528, %v527, 0
        %vm541 = vcmask 1043456
        %v543 = vsel %vm541, %v497, 0
        %545 = vmatpush.bf16.msra.mxu0 0
        %546 = vmatpush.bf16.msra.mxu0 0
        %547 = vmatpush.bf16.msra.mxu0 0
        %548 = vmatpush.bf16.msra.mxu0 0
        %549 = vmatpush.bf16.msra.mxu0 0
        %550 = vmatpush.bf16.msra.mxu0 0
        %551 = vmatpush.bf16.msra.mxu0 0
        %552 = vmatpush.bf16.msra.mxu0 %v543
        %553 = vmatmul.bf16.gmra.mxu0 %v530
        %v554 = vpop.f32.mrf.mxu0
        %v555 = vadd.f32 0.0, %v554
        %v556 = vpop.f32.mrf.mxu0
        %v557 = vadd.f32 0.0, %v556
        %558 = vmatmul.bf16.gmra.mxu0 %v533
        %v559 = vpop.f32.mrf.mxu0
        %v560 = vadd.f32 0.0, %v559
        %v561 = vpop.f32.mrf.mxu0
        %v562 = vadd.f32 0.0, %v561
        %563 = vmatmul.bf16.gmra.mxu0 %v536
        %v564 = vpop.f32.mrf.mxu0
        %v565 = vadd.f32 0.0, %v564
        %v566 = vpop.f32.mrf.mxu0
        %v567 = vadd.f32 0.0, %v566
        %568 = vmatmul.bf16.gmra.mxu0 %v539
        %v569 = vpop.f32.mrf.mxu0
        %v570 = vadd.f32 0.0, %v569
        %v571 = vpop.f32.mrf.mxu0
        %v572 = vadd.f32 0.0, %v571
        %573 = vdwg.mxu0
        %v575 = vperm.slane %v498, 0
        %v577 = vmul.f32 %v555, %v575
        %v578 = vmul.f32 %v557, %v575
        %v579 = vmul.f32 %v560, %v575
        %v580 = vmul.f32 %v562, %v575
        %v581 = vmul.f32 %v565, %v575
        %v582 = vmul.f32 %v567, %v575
        %v583 = vmul.f32 %v570, %v575
        %v584 = vmul.f32 %v572, %v575
        %v586 = vperm.slane %v499, 0
        %v588 = vadd.f32 %v577, %v586
        %v589 = vadd.f32 %v578, %v586
        %v590 = vadd.f32 %v579, %v586
        %v591 = vadd.f32 %v580, %v586
        %v592 = vadd.f32 %v581, %v586
        %v593 = vadd.f32 %v582, %v586
        %v594 = vadd.f32 %v583, %v586
        %v595 = vadd.f32 %v584, %v586
        %v596 = vmax.f32 %v588, 0.0
        %v597 = vmax.f32 %v589, 0.0
        %v598 = vmax.f32 %v590, 0.0
        %v599 = vmax.f32 %v591, 0.0
        %v600 = vmax.f32 %v592, 0.0
        %v601 = vmax.f32 %v593, 0.0
        %v602 = vmax.f32 %v594, 0.0
        %v603 = vmax.f32 %v595, 0.0
        %s604 = scalar_lea.vmem %s466, 32 [#allocation2]
        %v605 = vld [vmem:[%s604] sm:$0xf]
        %v606 = vld [vmem:[%s604 + $0x4] sm:$0xf]
        %v607 = vld [vmem:[%s604 + $0x8] sm:$0xf]
        %v608 = vld [vmem:[%s604 + $0xc] sm:$0xf]
        %v609 = vld [vmem:[%s604 + $0x10] sm:$0xf]
        %v610 = vld [vmem:[%s604 + $0x14] sm:$0xf]
        %v611 = vld [vmem:[%s604 + $0x18] sm:$0xf]
        %v612 = vld [vmem:[%s604 + $0x1c] sm:$0xf]
        %v621 = vunpack.c.l.b16 %v605
        %v622 = vunpack.c.l.b16 %v606
        %v623 = vunpack.c.l.b16 %v607
        %v624 = vunpack.c.l.b16 %v608
        %v625 = vunpack.c.l.b16 %v609
        %v626 = vunpack.c.l.b16 %v610
        %v627 = vunpack.c.l.b16 %v611
        %v628 = vunpack.c.l.b16 %v612
        %v629 = vpack.c.b16 %v622, %v621
        %v630 = vpack.c.b16 %v624, %v623
        %v631 = vpack.c.b16 %v626, %v625
        %v632 = vpack.c.b16 %v628, %v627
        %v634 = vsel %vm528, %v629, 0
        %v637 = vsel %vm528, %v630, 0
        %v640 = vsel %vm528, %v631, 0
        %v643 = vsel %vm528, %v632, 0
        %645 = vmatpush.bf16.msra.mxu0 0
        %646 = vmatpush.bf16.msra.mxu0 0
        %647 = vmatpush.bf16.msra.mxu0 0
        %648 = vmatpush.bf16.msra.mxu0 0
        %649 = vmatpush.bf16.msra.mxu0 0
        %650 = vmatpush.bf16.msra.mxu0 0
        %651 = vmatpush.bf16.msra.mxu0 0
        %652 = vmatpush.bf16.msra.mxu0 %v543
        %653 = vmatmul.bf16.gmra.mxu0 %v634
        %v654 = vpop.f32.mrf.mxu0
        %v655 = vadd.f32 0.0, %v654
        %v656 = vpop.f32.mrf.mxu0
        %v657 = vadd.f32 0.0, %v656
        %658 = vmatmul.bf16.gmra.mxu0 %v637
        %v659 = vpop.f32.mrf.mxu0
        %v660 = vadd.f32 0.0, %v659
        %v661 = vpop.f32.mrf.mxu0
        %v662 = vadd.f32 0.0, %v661
        %663 = vmatmul.bf16.gmra.mxu0 %v640
        %v664 = vpop.f32.mrf.mxu0
        %v665 = vadd.f32 0.0, %v664
        %v666 = vpop.f32.mrf.mxu0
        %v667 = vadd.f32 0.0, %v666
        %668 = vmatmul.bf16.gmra.mxu0 %v643
        %v669 = vpop.f32.mrf.mxu0
        %v670 = vadd.f32 0.0, %v669
        %v671 = vpop.f32.mrf.mxu0
        %v672 = vadd.f32 0.0, %v671
        %673 = vdwg.mxu0
        %v674 = vmul.f32 %v655, %v575
        %v675 = vmul.f32 %v657, %v575
        %v676 = vmul.f32 %v660, %v575
        %v677 = vmul.f32 %v662, %v575
        %v678 = vmul.f32 %v665, %v575
        %v679 = vmul.f32 %v667, %v575
        %v680 = vmul.f32 %v670, %v575
        %v681 = vmul.f32 %v672, %v575
        %v682 = vadd.f32 %v674, %v586
        %v683 = vadd.f32 %v675, %v586
        %v684 = vadd.f32 %v676, %v586
        %v685 = vadd.f32 %v677, %v586
        %v686 = vadd.f32 %v678, %v586
        %v687 = vadd.f32 %v679, %v586
        %v688 = vadd.f32 %v680, %v586
        %v689 = vadd.f32 %v681, %v586
        %v690 = vmax.f32 %v682, 0.0
        %v691 = vmax.f32 %v683, 0.0
        %v692 = vmax.f32 %v684, 0.0
        %v693 = vmax.f32 %v685, 0.0
        %v694 = vmax.f32 %v686, 0.0
        %v695 = vmax.f32 %v687, 0.0
        %v696 = vmax.f32 %v688, 0.0
        %v697 = vmax.f32 %v689, 0.0
        %v698 = vmax.f32 %v596, %v690
        %v699 = vmax.f32 %v597, %v691
        %v700 = vmax.f32 %v598, %v692
        %v701 = vmax.f32 %v599, %v693
        %v702 = vmax.f32 %v600, %v694
        %v703 = vmax.f32 %v601, %v695
        %v704 = vmax.f32 %v602, %v696
        %v705 = vmax.f32 %v603, %v697
        %s706 = scalar_lea.vmem %s466, 64 [#allocation2]
        %v707 = vld [vmem:[%s706] sm:$0xf]
        %v708 = vld [vmem:[%s706 + $0x4] sm:$0xf]
        %v709 = vld [vmem:[%s706 + $0x8] sm:$0xf]
        %v710 = vld [vmem:[%s706 + $0xc] sm:$0xf]
        %v711 = vld [vmem:[%s706 + $0x10] sm:$0xf]
        %v712 = vld [vmem:[%s706 + $0x14] sm:$0xf]
        %v713 = vld [vmem:[%s706 + $0x18] sm:$0xf]
        %v714 = vld [vmem:[%s706 + $0x1c] sm:$0xf]
        %v723 = vunpack.c.l.b16 %v707
        %v724 = vunpack.c.l.b16 %v708
        %v725 = vunpack.c.l.b16 %v709
        %v726 = vunpack.c.l.b16 %v710
        %v727 = vunpack.c.l.b16 %v711
        %v728 = vunpack.c.l.b16 %v712
        %v729 = vunpack.c.l.b16 %v713
        %v730 = vunpack.c.l.b16 %v714
        %v731 = vpack.c.b16 %v724, %v723
        %v732 = vpack.c.b16 %v726, %v725
        %v733 = vpack.c.b16 %v728, %v727
        %v734 = vpack.c.b16 %v730, %v729
        %v736 = vsel %vm528, %v731, 0
        %v739 = vsel %vm528, %v732, 0
        %v742 = vsel %vm528, %v733, 0
        %v745 = vsel %vm528, %v734, 0
        %747 = vmatpush.bf16.msra.mxu0 0
        %748 = vmatpush.bf16.msra.mxu0 0
        %749 = vmatpush.bf16.msra.mxu0 0
        %750 = vmatpush.bf16.msra.mxu0 0
        %751 = vmatpush.bf16.msra.mxu0 0
        %752 = vmatpush.bf16.msra.mxu0 0
        %753 = vmatpush.bf16.msra.mxu0 0
        %754 = vmatpush.bf16.msra.mxu0 %v543
        %755 = vmatmul.bf16.gmra.mxu0 %v736
        %v756 = vpop.f32.mrf.mxu0
        %v757 = vadd.f32 0.0, %v756
        %v758 = vpop.f32.mrf.mxu0
        %v759 = vadd.f32 0.0, %v758
        %760 = vmatmul.bf16.gmra.mxu0 %v739
        %v761 = vpop.f32.mrf.mxu0
        %v762 = vadd.f32 0.0, %v761
        %v763 = vpop.f32.mrf.mxu0
        %v764 = vadd.f32 0.0, %v763
        %765 = vmatmul.bf16.gmra.mxu0 %v742
        %v766 = vpop.f32.mrf.mxu0
        %v767 = vadd.f32 0.0, %v766
        %v768 = vpop.f32.mrf.mxu0
        %v769 = vadd.f32 0.0, %v768
        %770 = vmatmul.bf16.gmra.mxu0 %v745
        %v771 = vpop.f32.mrf.mxu0
        %v772 = vadd.f32 0.0, %v771
        %v773 = vpop.f32.mrf.mxu0
        %v774 = vadd.f32 0.0, %v773
        %775 = vdwg.mxu0
        %v776 = vmul.f32 %v757, %v575
        %v777 = vmul.f32 %v759, %v575
        %v778 = vmul.f32 %v762, %v575
        %v779 = vmul.f32 %v764, %v575
        %v780 = vmul.f32 %v767, %v575
        %v781 = vmul.f32 %v769, %v575
        %v782 = vmul.f32 %v772, %v575
        %v783 = vmul.f32 %v774, %v575
        %v784 = vadd.f32 %v776, %v586
        %v785 = vadd.f32 %v777, %v586
        %v786 = vadd.f32 %v778, %v586
        %v787 = vadd.f32 %v779, %v586
        %v788 = vadd.f32 %v780, %v586
        %v789 = vadd.f32 %v781, %v586
        %v790 = vadd.f32 %v782, %v586
        %v791 = vadd.f32 %v783, %v586
        %v792 = vmax.f32 %v784, 0.0
        %v793 = vmax.f32 %v785, 0.0
        %v794 = vmax.f32 %v786, 0.0
        %v795 = vmax.f32 %v787, 0.0
        %v796 = vmax.f32 %v788, 0.0
        %v797 = vmax.f32 %v789, 0.0
        %v798 = vmax.f32 %v790, 0.0
        %v799 = vmax.f32 %v791, 0.0
        %v800 = vmax.f32 %v698, %v792
        %v801 = vmax.f32 %v699, %v793
        %v802 = vmax.f32 %v700, %v794
        %v803 = vmax.f32 %v701, %v795
        %v804 = vmax.f32 %v702, %v796
        %v805 = vmax.f32 %v703, %v797
        %v806 = vmax.f32 %v704, %v798
        %v807 = vmax.f32 %v705, %v799
        %s808 = scalar_lea.vmem %s466, 96 [#allocation2]
        %v809 = vld [vmem:[%s808] sm:$0xf]
        %v810 = vld [vmem:[%s808 + $0x4] sm:$0xf]
        %v811 = vld [vmem:[%s808 + $0x8] sm:$0xf]
        %v812 = vld [vmem:[%s808 + $0xc] sm:$0xf]
        %v813 = vld [vmem:[%s808 + $0x10] sm:$0xf]
        %v814 = vld [vmem:[%s808 + $0x14] sm:$0xf]
        %v815 = vld [vmem:[%s808 + $0x18] sm:$0xf]
        %v816 = vld [vmem:[%s808 + $0x1c] sm:$0xf]
        %v825 = vunpack.c.l.b16 %v809
        %v826 = vunpack.c.l.b16 %v810
        %v827 = vunpack.c.l.b16 %v811
        %v828 = vunpack.c.l.b16 %v812
        %v829 = vunpack.c.l.b16 %v813
        %v830 = vunpack.c.l.b16 %v814
        %v831 = vunpack.c.l.b16 %v815
        %v832 = vunpack.c.l.b16 %v816
        %v833 = vpack.c.b16 %v826, %v825
        %v834 = vpack.c.b16 %v828, %v827
        %v835 = vpack.c.b16 %v830, %v829
        %v836 = vpack.c.b16 %v832, %v831
        %v838 = vsel %vm528, %v833, 0
        %v841 = vsel %vm528, %v834, 0
        %v844 = vsel %vm528, %v835, 0
        %v847 = vsel %vm528, %v836, 0
        %849 = vmatpush.bf16.msra.mxu0 0
        %850 = vmatpush.bf16.msra.mxu0 0
        %851 = vmatpush.bf16.msra.mxu0 0
        %852 = vmatpush.bf16.msra.mxu0 0
        %853 = vmatpush.bf16.msra.mxu0 0
        %854 = vmatpush.bf16.msra.mxu0 0
        %855 = vmatpush.bf16.msra.mxu0 0
        %856 = vmatpush.bf16.msra.mxu0 %v543
        %857 = vmatmul.bf16.gmra.mxu0 %v838
        %v858 = vpop.f32.mrf.mxu0
        %v859 = vadd.f32 0.0, %v858
        %v860 = vpop.f32.mrf.mxu0
        %v861 = vadd.f32 0.0, %v860
        %862 = vmatmul.bf16.gmra.mxu0 %v841
        %v863 = vpop.f32.mrf.mxu0
        %v864 = vadd.f32 0.0, %v863
        %v865 = vpop.f32.mrf.mxu0
        %v866 = vadd.f32 0.0, %v865
        %867 = vmatmul.bf16.gmra.mxu0 %v844
        %v868 = vpop.f32.mrf.mxu0
        %v869 = vadd.f32 0.0, %v868
        %v870 = vpop.f32.mrf.mxu0
        %v871 = vadd.f32 0.0, %v870
        %872 = vmatmul.bf16.gmra.mxu0 %v847
        %v873 = vpop.f32.mrf.mxu0
        %v874 = vadd.f32 0.0, %v873
        %v875 = vpop.f32.mrf.mxu0
        %v876 = vadd.f32 0.0, %v875
        %877 = vdwg.mxu0
        %v878 = vmul.f32 %v859, %v575
        %v879 = vmul.f32 %v861, %v575
        %v880 = vmul.f32 %v864, %v575
        %v881 = vmul.f32 %v866, %v575
        %v882 = vmul.f32 %v869, %v575
        %v883 = vmul.f32 %v871, %v575
        %v884 = vmul.f32 %v874, %v575
        %v885 = vmul.f32 %v876, %v575
        %v886 = vadd.f32 %v878, %v586
        %v887 = vadd.f32 %v879, %v586
        %v888 = vadd.f32 %v880, %v586
        %v889 = vadd.f32 %v881, %v586
        %v890 = vadd.f32 %v882, %v586
        %v891 = vadd.f32 %v883, %v586
        %v892 = vadd.f32 %v884, %v586
        %v893 = vadd.f32 %v885, %v586
        %v894 = vmax.f32 %v886, 0.0
        %v895 = vmax.f32 %v887, 0.0
        %v896 = vmax.f32 %v888, 0.0
        %v897 = vmax.f32 %v889, 0.0
        %v898 = vmax.f32 %v890, 0.0
        %v899 = vmax.f32 %v891, 0.0
        %v900 = vmax.f32 %v892, 0.0
        %v901 = vmax.f32 %v893, 0.0
        %v902 = vmax.f32 %v800, %v894
        %v903 = vmax.f32 %v801, %v895
        %v904 = vmax.f32 %v802, %v896
        %v905 = vmax.f32 %v803, %v897
        %v906 = vmax.f32 %v804, %v898
        %v907 = vmax.f32 %v805, %v899
        %v908 = vmax.f32 %v806, %v900
        %v909 = vmax.f32 %v807, %v901
        %s910 = scalar_lea.vmem %s466, 128 [#allocation2]
        %v911 = vld [vmem:[%s910] sm:$0xf]
        %v912 = vld [vmem:[%s910 + $0x4] sm:$0xf]
        %v913 = vld [vmem:[%s910 + $0x8] sm:$0xf]
        %v914 = vld [vmem:[%s910 + $0xc] sm:$0xf]
        %v915 = vld [vmem:[%s910 + $0x10] sm:$0xf]
        %v916 = vld [vmem:[%s910 + $0x14] sm:$0xf]
        %v917 = vld [vmem:[%s910 + $0x18] sm:$0xf]
        %v918 = vld [vmem:[%s910 + $0x1c] sm:$0xf]
        %v927 = vunpack.c.l.b16 %v911
        %v928 = vunpack.c.l.b16 %v912
        %v929 = vunpack.c.l.b16 %v913
        %v930 = vunpack.c.l.b16 %v914
        %v931 = vunpack.c.l.b16 %v915
        %v932 = vunpack.c.l.b16 %v916
        %v933 = vunpack.c.l.b16 %v917
        %v934 = vunpack.c.l.b16 %v918
        %v935 = vpack.c.b16 %v928, %v927
        %v936 = vpack.c.b16 %v930, %v929
        %v937 = vpack.c.b16 %v932, %v931
        %v938 = vpack.c.b16 %v934, %v933
        %v940 = vsel %vm528, %v935, 0
        %v943 = vsel %vm528, %v936, 0
        %v946 = vsel %vm528, %v937, 0
        %v949 = vsel %vm528, %v938, 0
        %951 = vmatpush.bf16.msra.mxu0 0
        %952 = vmatpush.bf16.msra.mxu0 0
        %953 = vmatpush.bf16.msra.mxu0 0
        %954 = vmatpush.bf16.msra.mxu0 0
        %955 = vmatpush.bf16.msra.mxu0 0
        %956 = vmatpush.bf16.msra.mxu0 0
        %957 = vmatpush.bf16.msra.mxu0 0
        %958 = vmatpush.bf16.msra.mxu0 %v543
        %959 = vmatmul.bf16.gmra.mxu0 %v940
        %v960 = vpop.f32.mrf.mxu0
        %v961 = vadd.f32 0.0, %v960
        %v962 = vpop.f32.mrf.mxu0
        %v963 = vadd.f32 0.0, %v962
        %964 = vmatmul.bf16.gmra.mxu0 %v943
        %v965 = vpop.f32.mrf.mxu0
        %v966 = vadd.f32 0.0, %v965
        %v967 = vpop.f32.mrf.mxu0
        %v968 = vadd.f32 0.0, %v967
        %969 = vmatmul.bf16.gmra.mxu0 %v946
        %v970 = vpop.f32.mrf.mxu0
        %v971 = vadd.f32 0.0, %v970
        %v972 = vpop.f32.mrf.mxu0
        %v973 = vadd.f32 0.0, %v972
        %974 = vmatmul.bf16.gmra.mxu0 %v949
        %v975 = vpop.f32.mrf.mxu0
        %v976 = vadd.f32 0.0, %v975
        %v977 = vpop.f32.mrf.mxu0
        %v978 = vadd.f32 0.0, %v977
        %979 = vdwg.mxu0
        %v980 = vmul.f32 %v961, %v575
        %v981 = vmul.f32 %v963, %v575
        %v982 = vmul.f32 %v966, %v575
        %v983 = vmul.f32 %v968, %v575
        %v984 = vmul.f32 %v971, %v575
        %v985 = vmul.f32 %v973, %v575
        %v986 = vmul.f32 %v976, %v575
        %v987 = vmul.f32 %v978, %v575
        %v988 = vadd.f32 %v980, %v586
        %v989 = vadd.f32 %v981, %v586
        %v990 = vadd.f32 %v982, %v586
        %v991 = vadd.f32 %v983, %v586
        %v992 = vadd.f32 %v984, %v586
        %v993 = vadd.f32 %v985, %v586
        %v994 = vadd.f32 %v986, %v586
        %v995 = vadd.f32 %v987, %v586
        %v996 = vmax.f32 %v988, 0.0
        %v997 = vmax.f32 %v989, 0.0
        %v998 = vmax.f32 %v990, 0.0
        %v999 = vmax.f32 %v991, 0.0
        %v1000 = vmax.f32 %v992, 0.0
        %v1001 = vmax.f32 %v993, 0.0
        %v1002 = vmax.f32 %v994, 0.0
        %v1003 = vmax.f32 %v995, 0.0
        %v1004 = vmax.f32 %v902, %v996
        %v1005 = vmax.f32 %v903, %v997
        %v1006 = vmax.f32 %v904, %v998
        %v1007 = vmax.f32 %v905, %v999
        %v1008 = vmax.f32 %v906, %v1000
        %v1009 = vmax.f32 %v907, %v1001
        %v1010 = vmax.f32 %v908, %v1002
        %v1011 = vmax.f32 %v909, %v1003
        %s1012 = scalar_lea.vmem %s466, 160 [#allocation2]
        %v1013 = vld [vmem:[%s1012] sm:$0xf]
        %v1014 = vld [vmem:[%s1012 + $0x4] sm:$0xf]
        %v1015 = vld [vmem:[%s1012 + $0x8] sm:$0xf]
        %v1016 = vld [vmem:[%s1012 + $0xc] sm:$0xf]
        %v1017 = vld [vmem:[%s1012 + $0x10] sm:$0xf]
        %v1018 = vld [vmem:[%s1012 + $0x14] sm:$0xf]
        %v1019 = vld [vmem:[%s1012 + $0x18] sm:$0xf]
        %v1020 = vld [vmem:[%s1012 + $0x1c] sm:$0xf]
        %v1029 = vunpack.c.l.b16 %v1013
        %v1030 = vunpack.c.l.b16 %v1014
        %v1031 = vunpack.c.l.b16 %v1015
        %v1032 = vunpack.c.l.b16 %v1016
        %v1033 = vunpack.c.l.b16 %v1017
        %v1034 = vunpack.c.l.b16 %v1018
        %v1035 = vunpack.c.l.b16 %v1019
        %v1036 = vunpack.c.l.b16 %v1020
        %v1037 = vpack.c.b16 %v1030, %v1029
        %v1038 = vpack.c.b16 %v1032, %v1031
        %v1039 = vpack.c.b16 %v1034, %v1033
        %v1040 = vpack.c.b16 %v1036, %v1035
        %v1042 = vsel %vm528, %v1037, 0
        %v1045 = vsel %vm528, %v1038, 0
        %v1048 = vsel %vm528, %v1039, 0
        %v1051 = vsel %vm528, %v1040, 0
        %1053 = vmatpush.bf16.msra.mxu0 0
        %1054 = vmatpush.bf16.msra.mxu0 0
        %1055 = vmatpush.bf16.msra.mxu0 0
        %1056 = vmatpush.bf16.msra.mxu0 0
        %1057 = vmatpush.bf16.msra.mxu0 0
        %1058 = vmatpush.bf16.msra.mxu0 0
        %1059 = vmatpush.bf16.msra.mxu0 0
        %1060 = vmatpush.bf16.msra.mxu0 %v543
        %1061 = vmatmul.bf16.gmra.mxu0 %v1042
        %v1062 = vpop.f32.mrf.mxu0
        %v1063 = vadd.f32 0.0, %v1062
        %v1064 = vpop.f32.mrf.mxu0
        %v1065 = vadd.f32 0.0, %v1064
        %1066 = vmatmul.bf16.gmra.mxu0 %v1045
        %v1067 = vpop.f32.mrf.mxu0
        %v1068 = vadd.f32 0.0, %v1067
        %v1069 = vpop.f32.mrf.mxu0
        %v1070 = vadd.f32 0.0, %v1069
        %1071 = vmatmul.bf16.gmra.mxu0 %v1048
        %v1072 = vpop.f32.mrf.mxu0
        %v1073 = vadd.f32 0.0, %v1072
        %v1074 = vpop.f32.mrf.mxu0
        %v1075 = vadd.f32 0.0, %v1074
        %1076 = vmatmul.bf16.gmra.mxu0 %v1051
        %v1077 = vpop.f32.mrf.mxu0
        %v1078 = vadd.f32 0.0, %v1077
        %v1079 = vpop.f32.mrf.mxu0
        %v1080 = vadd.f32 0.0, %v1079
        %1081 = vdwg.mxu0
        %v1082 = vmul.f32 %v1063, %v575
        %v1083 = vmul.f32 %v1065, %v575
        %v1084 = vmul.f32 %v1068, %v575
        %v1085 = vmul.f32 %v1070, %v575
        %v1086 = vmul.f32 %v1073, %v575
        %v1087 = vmul.f32 %v1075, %v575
        %v1088 = vmul.f32 %v1078, %v575
        %v1089 = vmul.f32 %v1080, %v575
        %v1090 = vadd.f32 %v1082, %v586
        %v1091 = vadd.f32 %v1083, %v586
        %v1092 = vadd.f32 %v1084, %v586
        %v1093 = vadd.f32 %v1085, %v586
        %v1094 = vadd.f32 %v1086, %v586
        %v1095 = vadd.f32 %v1087, %v586
        %v1096 = vadd.f32 %v1088, %v586
        %v1097 = vadd.f32 %v1089, %v586
        %v1098 = vmax.f32 %v1090, 0.0
        %v1099 = vmax.f32 %v1091, 0.0
        %v1100 = vmax.f32 %v1092, 0.0
        %v1101 = vmax.f32 %v1093, 0.0
        %v1102 = vmax.f32 %v1094, 0.0
        %v1103 = vmax.f32 %v1095, 0.0
        %v1104 = vmax.f32 %v1096, 0.0
        %v1105 = vmax.f32 %v1097, 0.0
        %v1106 = vmax.f32 %v1004, %v1098
        %v1107 = vmax.f32 %v1005, %v1099
        %v1108 = vmax.f32 %v1006, %v1100
        %v1109 = vmax.f32 %v1007, %v1101
        %v1110 = vmax.f32 %v1008, %v1102
        %v1111 = vmax.f32 %v1009, %v1103
        %v1112 = vmax.f32 %v1010, %v1104
        %v1113 = vmax.f32 %v1011, %v1105
        %s1114 = scalar_lea.vmem %s466, 192 [#allocation2]
        %v1115 = vld [vmem:[%s1114] sm:$0xf]
        %v1116 = vld [vmem:[%s1114 + $0x4] sm:$0xf]
        %v1117 = vld [vmem:[%s1114 + $0x8] sm:$0xf]
        %v1118 = vld [vmem:[%s1114 + $0xc] sm:$0xf]
        %v1119 = vld [vmem:[%s1114 + $0x10] sm:$0xf]
        %v1120 = vld [vmem:[%s1114 + $0x14] sm:$0xf]
        %v1121 = vld [vmem:[%s1114 + $0x18] sm:$0xf]
        %v1122 = vld [vmem:[%s1114 + $0x1c] sm:$0xf]
        %v1131 = vunpack.c.l.b16 %v1115
        %v1132 = vunpack.c.l.b16 %v1116
        %v1133 = vunpack.c.l.b16 %v1117
        %v1134 = vunpack.c.l.b16 %v1118
        %v1135 = vunpack.c.l.b16 %v1119
        %v1136 = vunpack.c.l.b16 %v1120
        %v1137 = vunpack.c.l.b16 %v1121
        %v1138 = vunpack.c.l.b16 %v1122
        %v1139 = vpack.c.b16 %v1132, %v1131
        %v1140 = vpack.c.b16 %v1134, %v1133
        %v1141 = vpack.c.b16 %v1136, %v1135
        %v1142 = vpack.c.b16 %v1138, %v1137
        %v1144 = vsel %vm528, %v1139, 0
        %v1147 = vsel %vm528, %v1140, 0
        %v1150 = vsel %vm528, %v1141, 0
        %v1153 = vsel %vm528, %v1142, 0
        %1155 = vmatpush.bf16.msra.mxu0 0
        %1156 = vmatpush.bf16.msra.mxu0 0
        %1157 = vmatpush.bf16.msra.mxu0 0
        %1158 = vmatpush.bf16.msra.mxu0 0
        %1159 = vmatpush.bf16.msra.mxu0 0
        %1160 = vmatpush.bf16.msra.mxu0 0
        %1161 = vmatpush.bf16.msra.mxu0 0
        %1162 = vmatpush.bf16.msra.mxu0 %v543
        %1163 = vmatmul.bf16.gmra.mxu0 %v1144
        %v1164 = vpop.f32.mrf.mxu0
        %v1165 = vadd.f32 0.0, %v1164
        %v1166 = vpop.f32.mrf.mxu0
        %v1167 = vadd.f32 0.0, %v1166
        %1168 = vmatmul.bf16.gmra.mxu0 %v1147
        %v1169 = vpop.f32.mrf.mxu0
        %v1170 = vadd.f32 0.0, %v1169
        %v1171 = vpop.f32.mrf.mxu0
        %v1172 = vadd.f32 0.0, %v1171
        %1173 = vmatmul.bf16.gmra.mxu0 %v1150
        %v1174 = vpop.f32.mrf.mxu0
        %v1175 = vadd.f32 0.0, %v1174
        %v1176 = vpop.f32.mrf.mxu0
        %v1177 = vadd.f32 0.0, %v1176
        %1178 = vmatmul.bf16.gmra.mxu0 %v1153
        %v1179 = vpop.f32.mrf.mxu0
        %v1180 = vadd.f32 0.0, %v1179
        %v1181 = vpop.f32.mrf.mxu0
        %v1182 = vadd.f32 0.0, %v1181
        %1183 = vdwg.mxu0
        %v1184 = vmul.f32 %v1165, %v575
        %v1185 = vmul.f32 %v1167, %v575
        %v1186 = vmul.f32 %v1170, %v575
        %v1187 = vmul.f32 %v1172, %v575
        %v1188 = vmul.f32 %v1175, %v575
        %v1189 = vmul.f32 %v1177, %v575
        %v1190 = vmul.f32 %v1180, %v575
        %v1191 = vmul.f32 %v1182, %v575
        %v1192 = vadd.f32 %v1184, %v586
        %v1193 = vadd.f32 %v1185, %v586
        %v1194 = vadd.f32 %v1186, %v586
        %v1195 = vadd.f32 %v1187, %v586
        %v1196 = vadd.f32 %v1188, %v586
        %v1197 = vadd.f32 %v1189, %v586
        %v1198 = vadd.f32 %v1190, %v586
        %v1199 = vadd.f32 %v1191, %v586
        %v1200 = vmax.f32 %v1192, 0.0
        %v1201 = vmax.f32 %v1193, 0.0
        %v1202 = vmax.f32 %v1194, 0.0
        %v1203 = vmax.f32 %v1195, 0.0
        %v1204 = vmax.f32 %v1196, 0.0
        %v1205 = vmax.f32 %v1197, 0.0
        %v1206 = vmax.f32 %v1198, 0.0
        %v1207 = vmax.f32 %v1199, 0.0
        %v1208 = vmax.f32 %v1106, %v1200
        %v1209 = vmax.f32 %v1107, %v1201
        %v1210 = vmax.f32 %v1108, %v1202
        %v1211 = vmax.f32 %v1109, %v1203
        %v1212 = vmax.f32 %v1110, %v1204
        %v1213 = vmax.f32 %v1111, %v1205
        %v1214 = vmax.f32 %v1112, %v1206
        %v1215 = vmax.f32 %v1113, %v1207
        %s1216 = scalar_lea.vmem %s466, 224 [#allocation2]
        %v1217 = vld [vmem:[%s1216] sm:$0xf]
        %v1218 = vld [vmem:[%s1216 + $0x4] sm:$0xf]
        %v1219 = vld [vmem:[%s1216 + $0x8] sm:$0xf]
        %v1220 = vld [vmem:[%s1216 + $0xc] sm:$0xf]
        %v1221 = vld [vmem:[%s1216 + $0x10] sm:$0xf]
        %v1222 = vld [vmem:[%s1216 + $0x14] sm:$0xf]
        %v1223 = vld [vmem:[%s1216 + $0x18] sm:$0xf]
        %v1224 = vld [vmem:[%s1216 + $0x1c] sm:$0xf]
        %v1233 = vunpack.c.l.b16 %v1217
        %v1234 = vunpack.c.l.b16 %v1218
        %v1235 = vunpack.c.l.b16 %v1219
        %v1236 = vunpack.c.l.b16 %v1220
        %v1237 = vunpack.c.l.b16 %v1221
        %v1238 = vunpack.c.l.b16 %v1222
        %v1239 = vunpack.c.l.b16 %v1223
        %v1240 = vunpack.c.l.b16 %v1224
        %v1241 = vpack.c.b16 %v1234, %v1233
        %v1242 = vpack.c.b16 %v1236, %v1235
        %v1243 = vpack.c.b16 %v1238, %v1237
        %v1244 = vpack.c.b16 %v1240, %v1239
        %v1246 = vsel %vm528, %v1241, 0
        %v1249 = vsel %vm528, %v1242, 0
        %v1252 = vsel %vm528, %v1243, 0
        %v1255 = vsel %vm528, %v1244, 0
        %1257 = vmatpush.bf16.msra.mxu0 0
        %1258 = vmatpush.bf16.msra.mxu0 0
        %1259 = vmatpush.bf16.msra.mxu0 0
        %1260 = vmatpush.bf16.msra.mxu0 0
        %1261 = vmatpush.bf16.msra.mxu0 0
        %1262 = vmatpush.bf16.msra.mxu0 0
        %1263 = vmatpush.bf16.msra.mxu0 0
        %1264 = vmatpush.bf16.msra.mxu0 %v543
        %1265 = vmatmul.bf16.gmra.mxu0 %v1246
        %v1266 = vpop.f32.mrf.mxu0
        %v1267 = vadd.f32 0.0, %v1266
        %v1268 = vpop.f32.mrf.mxu0
        %v1269 = vadd.f32 0.0, %v1268
        %1270 = vmatmul.bf16.gmra.mxu0 %v1249
        %v1271 = vpop.f32.mrf.mxu0
        %v1272 = vadd.f32 0.0, %v1271
        %v1273 = vpop.f32.mrf.mxu0
        %v1274 = vadd.f32 0.0, %v1273
        %1275 = vmatmul.bf16.gmra.mxu0 %v1252
        %v1276 = vpop.f32.mrf.mxu0
        %v1277 = vadd.f32 0.0, %v1276
        %v1278 = vpop.f32.mrf.mxu0
        %v1279 = vadd.f32 0.0, %v1278
        %1280 = vmatmul.bf16.gmra.mxu0 %v1255
        %v1281 = vpop.f32.mrf.mxu0
        %v1282 = vadd.f32 0.0, %v1281
        %v1283 = vpop.f32.mrf.mxu0
        %v1284 = vadd.f32 0.0, %v1283
        %1285 = vdwg.mxu0
        %v1286 = vmul.f32 %v1267, %v575
        %v1287 = vmul.f32 %v1269, %v575
        %v1288 = vmul.f32 %v1272, %v575
        %v1289 = vmul.f32 %v1274, %v575
        %v1290 = vmul.f32 %v1277, %v575
        %v1291 = vmul.f32 %v1279, %v575
        %v1292 = vmul.f32 %v1282, %v575
        %v1293 = vmul.f32 %v1284, %v575
        %v1294 = vadd.f32 %v1286, %v586
        %v1295 = vadd.f32 %v1287, %v586
        %v1296 = vadd.f32 %v1288, %v586
        %v1297 = vadd.f32 %v1289, %v586
        %v1298 = vadd.f32 %v1290, %v586
        %v1299 = vadd.f32 %v1291, %v586
        %v1300 = vadd.f32 %v1292, %v586
        %v1301 = vadd.f32 %v1293, %v586
        %v1302 = vmax.f32 %v1294, 0.0
        %v1303 = vmax.f32 %v1295, 0.0
        %v1304 = vmax.f32 %v1296, 0.0
        %v1305 = vmax.f32 %v1297, 0.0
        %v1306 = vmax.f32 %v1298, 0.0
        %v1307 = vmax.f32 %v1299, 0.0
        %v1308 = vmax.f32 %v1300, 0.0
        %v1309 = vmax.f32 %v1301, 0.0
        %v1310 = vmax.f32 %v1208, %v1302
        %v1311 = vmax.f32 %v1209, %v1303
        %v1312 = vmax.f32 %v1210, %v1304
        %v1313 = vmax.f32 %v1211, %v1305
        %v1314 = vmax.f32 %v1212, %v1306
        %v1315 = vmax.f32 %v1213, %v1307
        %v1316 = vmax.f32 %v1214, %v1308
        %v1317 = vmax.f32 %v1215, %v1309
        %1318 = vst [vmem:[%s494] sm:$0xff] %v1310
        %1319 = vst [vmem:[%s494 + $0x8] sm:$0xff] %v1311
        %1320 = vst [vmem:[%s494 + $0x10] sm:$0xff] %v1312
        %1321 = vst [vmem:[%s494 + $0x18] sm:$0xff] %v1313
        %1322 = vst [vmem:[%s494 + $0x20] sm:$0xff] %v1314
        %1323 = vst [vmem:[%s494 + $0x28] sm:$0xff] %v1315
        %1324 = vst [vmem:[%s494 + $0x30] sm:$0xff] %v1316
        %1325 = vst [vmem:[%s494 + $0x38] sm:$0xff] %v1317
        %s1326 = smul.u32 8, %s15
        %p1327 = scmp.lt.s32.totalorder %s1326, 15
        %s1328 = scalar_select %p1327, %s1326, 15
        %s1329 = smul.addr %s1328, 8
        %s1330 = scalar_lea.vmem %s4, %s1329
        // Predicated region
        $region78: #{critic_forward.3} parent=72 // pred_check
          %p1331 = pneg %p122
        $region79: #{critic_forward.3} parent=72 // pred_check_branch
          %1333 = sbr.rel (%p1331) target = $region81
        $region80: #{critic_forward.3} parent=72 // pred_region
          %s1334 = smul.u32 8, %s15
        $region81: #{critic_forward.3} parent=72 // pred_fallthru
          _
      $region73: #{critic_forward.3} parent=5 // pred_fallthru
        _
      %p1335 = scmp.le.s32.totalorder 2, %s10
      // Predicated region
      $region82: #{critic_forward.3} parent=5 // pred_check
        %p1336 = pneg %p1335
      $region83: #{critic_forward.3} parent=5 // pred_check_branch
        %1338 = sbr.rel (%p1336) target = $region85
      $region84: #{critic_forward.3} parent=5 // pred_region
        %s1339 = ssub.s32 %s10, 2
        // Predicated region
        $region86: #{critic_forward.3} parent=84 // pred_check
          %p1340 = pneg %p128
        $region87: #{critic_forward.3} parent=84 // pred_check_branch
          %1342 = sbr.rel (%p1340) target = $region89
        $region88: #{critic_forward.3} parent=84 // pred_region
          %s1343 = smul.u32 8, %s16
          %p1344 = scmp.lt.s32.totalorder %s1343, 15
          %s1345 = scalar_select %p1344, %s1343, 15
          %s1346 = smul.addr %s1345, 8
          %s1347 = scalar_lea.vmem %s4, %s1346
        $region89: #{critic_forward.3} parent=84 // pred_fallthru
          _
      $region85: #{critic_forward.3} parent=5 // pred_fallthru
        _
    $region6: #{critic_forward.3} parent=1 // loop_footer
      %s14 = sadd.s32 1, %s10
    $region7: #{critic_forward.3} parent=1 // loop_footer_branch
      %9 = sbr.rel target = $region3
    $region8: #{critic_forward.3} parent=1 // loop_exit
      _

// kernel: critic_forward.4
$region0: #{critic_forward.4}
  #allocation0 [shape = 'u32[]', space=smem, size = 0x4, offset = 0x4, fixed_abs, tag = 'smem constant byte address 0x4 - core index']
  #allocation1 [shape = 'u32[72,128]{1,0:T(1,128)}', space=vmem, size = 0x9000, scoped, tag = 'internal scratch']
  %s0 = inlined_call_operand.vmem [shape: bf16[8,16,256], index: 0, kind: input, shape index: {}]
  %s1 = inlined_call_operand.vmem [shape: bf16[256,128], index: 1, kind: input, shape index: {}]
  %s2 = inlined_call_operand.vmem [shape: f32[1,128], index: 2, kind: input, shape index: {}]
  %s3 = inlined_call_operand.vmem [shape: f32[1,128], index: 3, kind: input, shape index: {}]
  %s4 = inlined_call_operand.vmem [shape: f32[16,128], index: 4, kind: output, shape index: {}]
  %s5 = sld [smem:[#allocation0]]
  $region87: #{critic_forward.4} parent=0
    _
  %s7 = ssub.s32 1, %s5
  %s8 = scalar_select 0, %s7, %s5
  $region1: #{critic_forward.4} parent=0
    #allocation2 [shape = 'u8[65536]{0}', space=vmem, size = 0x10000, scoped, tag = 'input window, operand 0']
    loop: start=0, step=1, limit=4
    $region2: #{critic_forward.4} parent=1 // loop_pre_header
      _
    $region3: #{critic_forward.4} parent=1 // loop_header
      %s10 = sphi 0, %s14
      %p11 = scmp.ge.s32.totalorder %s10, 4
      %s20 = sphi 0, %s22
      %s23 = sphi 0, %s20
      %s24 = sphi 0, %s23
      %s40 = sphi 0, %s24
      %s44 = sphi 0, %s44
      %s46 = sphi 0, %s44
      %s47 = sphi 0, %s46
      %s61 = sphi 0, %s47
      %s65 = sphi 0, %s65
      %s67 = sphi 0, %s65
      %s68 = sphi 0, %s67
      %s82 = sphi 0, %s68
      %s86 = sphi 0, %s86
      %s88 = sphi 0, %s86
      %s89 = sphi 0, %s88
      %s103 = sphi 0, %s89
      %s109 = sphi 0, %s111
      %s112 = sphi 0, %s109
      %s113 = sphi 0, %s112
      %s129 = sphi 0, %s113
    $region4: #{critic_forward.4} parent=1 // loop_header_branch
      %13 = sbr.rel (%p11) target = $region8
    $region5: #{critic_forward.4} parent=1 // loop_body
      %s15 = ssub.s32 %s10, 1
      %s16 = ssub.s32 %s10, 2
      %s17 = sadd.s32 %s10, 1
      %s18 = ssub.s32 %s10, %s17
      %p19 = scmp.eq.s32.totalorder %s18, 0
      %s21 = sadd.s32 %s20, 1
      %s22 = scalar_select %p19, %s20, %s21
      %p25 = pneg %p19
      %p26 = scmp.eq.s32.totalorder %s10, 1
      %p27 = por %p25, %p26
      %p28 = scmp.ne.s32.totalorder %s20, %s23
      %p29 = scmp.eq.s32.totalorder %s10, 0
      %p30 = por %p28, %p29
      %p31 = scmp.ne.s32.totalorder %s20, %s23
      %p32 = scmp.eq.s32.totalorder %s15, 1
      %p33 = por %p31, %p32
      %p34 = scmp.ne.s32.totalorder %s23, %s24
      %p35 = scmp.eq.s32.totalorder %s15, 0
      %p36 = por %p34, %p35
      %p37 = scmp.ne.s32.totalorder %s23, %s24
      %p38 = scmp.eq.s32.totalorder %s16, 1
      %p39 = por %p37, %p38
      %p41 = scmp.ne.s32.totalorder %s24, %s40
      %p42 = scmp.eq.s32.totalorder %s16, 0
      %p43 = por %p41, %p42
      %s45 = sadd.s32 %s44, 1
      %p48 = scmp.eq.s32.totalorder %s10, 1
      %p49 = scmp.ne.s32.totalorder %s44, %s46
      %p50 = scmp.eq.s32.totalorder %s10, 0
      %p51 = por %p49, %p50
      %p52 = scmp.ne.s32.totalorder %s44, %s46
      %p53 = scmp.eq.s32.totalorder %s15, 1
      %p54 = por %p52, %p53
      %p55 = scmp.ne.s32.totalorder %s46, %s47
      %p56 = scmp.eq.s32.totalorder %s15, 0
      %p57 = por %p55, %p56
      %p58 = scmp.ne.s32.totalorder %s46, %s47
      %p59 = scmp.eq.s32.totalorder %s16, 1
      %p60 = por %p58, %p59
      %p62 = scmp.ne.s32.totalorder %s47, %s61
      %p63 = scmp.eq.s32.totalorder %s16, 0
      %p64 = por %p62, %p63
      %s66 = sadd.s32 %s65, 1
      %p69 = scmp.eq.s32.totalorder %s10, 1
      %p70 = scmp.ne.s32.totalorder %s65, %s67
      %p71 = scmp.eq.s32.totalorder %s10, 0
      %p72 = por %p70, %p71
      %p73 = scmp.ne.s32.totalorder %s65, %s67
      %p74 = scmp.eq.s32.totalorder %s15, 1
      %p75 = por %p73, %p74
      %p76 = scmp.ne.s32.totalorder %s67, %s68
      %p77 = scmp.eq.s32.totalorder %s15, 0
      %p78 = por %p76, %p77
      %p79 = scmp.ne.s32.totalorder %s67, %s68
      %p80 = scmp.eq.s32.totalorder %s16, 1
      %p81 = por %p79, %p80
      %p83 = scmp.ne.s32.totalorder %s68, %s82
      %p84 = scmp.eq.s32.totalorder %s16, 0
      %p85 = por %p83, %p84
      %s87 = sadd.s32 %s86, 1
      %p90 = scmp.eq.s32.totalorder %s10, 1
      %p91 = scmp.ne.s32.totalorder %s86, %s88
      %p92 = scmp.eq.s32.totalorder %s10, 0
      %p93 = por %p91, %p92
      %p94 = scmp.ne.s32.totalorder %s86, %s88
      %p95 = scmp.eq.s32.totalorder %s15, 1
      %p96 = por %p94, %p95
      %p97 = scmp.ne.s32.totalorder %s88, %s89
      %p98 = scmp.eq.s32.totalorder %s15, 0
      %p99 = por %p97, %p98
      %p100 = scmp.ne.s32.totalorder %s88, %s89
      %p101 = scmp.eq.s32.totalorder %s16, 1
      %p102 = por %p100, %p101
      %p104 = scmp.ne.s32.totalorder %s89, %s103
      %p105 = scmp.eq.s32.totalorder %s16, 0
      %p106 = por %p104, %p105
      %s107 = ssub.s32 %s10, %s17
      %p108 = scmp.eq.s32.totalorder %s107, 0
      %s110 = sadd.s32 %s109, 1
      %s111 = scalar_select %p108, %s109, %s110
      %p114 = pneg %p108
      %p115 = scmp.eq.s32.totalorder %s10, 1
      %p116 = por %p114, %p115
      %p117 = scmp.ne.s32.totalorder %s109, %s112
      %p118 = scmp.eq.s32.totalorder %s10, 0
      %p119 = por %p117, %p118
      %p120 = scmp.ne.s32.totalorder %s109, %s112
      %p121 = scmp.eq.s32.totalorder %s15, 1
      %p122 = por %p120, %p121
      %p123 = scmp.ne.s32.totalorder %s112, %s113
      %p124 = scmp.eq.s32.totalorder %s15, 0
      %p125 = por %p123, %p124
      %p126 = scmp.ne.s32.totalorder %s112, %s113
      %p127 = scmp.eq.s32.totalorder %s16, 1
      %p128 = por %p126, %p127
      %p130 = scmp.ne.s32.totalorder %s113, %s129
      %p131 = scmp.eq.s32.totalorder %s16, 0
      %p132 = por %p130, %p131
      %p133 = scmp.le.s32.totalorder 1, %s10
      %p134 = scmp.lt.s32.totalorder %s10, 3
      %p135 = pnand %p133, %p134
      %p136 = pneg %p135
      // Predicated region
      $region9: #{critic_forward.4} parent=5 // pred_check
        _
      $region10: #{critic_forward.4} parent=5 // pred_check_branch
        %138 = sbr.rel (%p135) target = $region12
      $region11: #{critic_forward.4} parent=5 // pred_region
        %s139 = ssub.s32 %s10, 1
        // Predicated region
        $region13: #{critic_forward.4} parent=11 // pred_check
          %p140 = pneg %p57
        $region14: #{critic_forward.4} parent=11 // pred_check_branch
          %142 = sbr.rel (%p140) target = $region16
        $region15: #{critic_forward.4} parent=11 // pred_region
          _
        $region16: #{critic_forward.4} parent=11 // pred_fallthru
          _
        // Predicated region
        $region17: #{critic_forward.4} parent=11 // pred_check
          %p143 = pneg %p78
        $region18: #{critic_forward.4} parent=11 // pred_check_branch
          %145 = sbr.rel (%p143) target = $region20
        $region19: #{critic_forward.4} parent=11 // pred_region
          _
        $region20: #{critic_forward.4} parent=11 // pred_fallthru
          _
        // Predicated region
        $region21: #{critic_forward.4} parent=11 // pred_check
          %p146 = pneg %p99
        $region22: #{critic_forward.4} parent=11 // pred_check_branch
          %148 = sbr.rel (%p146) target = $region24
        $region23: #{critic_forward.4} parent=11 // pred_region
          _
        $region24: #{critic_forward.4} parent=11 // pred_fallthru
          _
      $region12: #{critic_forward.4} parent=5 // pred_fallthru
        _
      %p149 = scmp.lt.s32.totalorder %s10, 2
      // Predicated region
      $region25: #{critic_forward.4} parent=5 // pred_check
        %p150 = pneg %p149
      $region26: #{critic_forward.4} parent=5 // pred_check_branch
        %152 = sbr.rel (%p150) target = $region28
      $region27: #{critic_forward.4} parent=5 // pred_region
        // Predicated region
        $region29: #{critic_forward.4} parent=27 // pred_check
          %p153 = pneg %p30
        $region30: #{critic_forward.4} parent=27 // pred_check_branch
          %155 = sbr.rel (%p153) target = $region32
        $region31: #{critic_forward.4} parent=27 // pred_region
          %s156 = sand.u32 %s20, 1
          %s157 = sand.u32 %s20, 1
          %s158 = smul.addr %s157, 64
          %s159 = scalar_lea.vmem [#allocation2], %s158
          %s160 = smul.addr %s10, 2
          %s161 = smul.addr %s160, 4
          %s162 = scalar_lea.vmem %s0, %s161
          // Predicated region
          $region33: #{critic_forward.4} parent=31 // pred_check
            _
          $region34: #{critic_forward.4} parent=31 // pred_check_branch
            %164 = sbr.rel (0) target = $region36
          $region35: #{critic_forward.4} parent=31 // pred_region
            // Predicated region
            $region37: #{critic_forward.4} parent=35 // pred_check
              _
            $region38: #{critic_forward.4} parent=35 // pred_check_branch
              %166 = sbr.rel (0) target = $region40
            $region39: #{critic_forward.4} parent=35 // pred_region
              // Predicated region
              $region52: #{critic_forward.4} parent=39 // pred_check
                _
              $region53: #{critic_forward.4} parent=39 // pred_check_branch
                %196 = sbr.rel (0) target = $region55
              $region54: #{critic_forward.4} parent=39 // pred_region
                loop: start=0, step=1, limit=1
                $region56: #{critic_forward.4} parent=54 // loop_pre_header
                  _
                $region57: #{critic_forward.4} parent=54 // loop_header
                  %s198 = sphi 0, %s202
                  %p199 = scmp.ge.s32.totalorder %s198, 1
                  %s203 = sphi %s162, %s162
                  %s204 = sphi %s159, %s159
                $region58: #{critic_forward.4} parent=54 // loop_header_branch
                  %201 = sbr.rel (%p199) target = $region62
                $region59: #{critic_forward.4} parent=54 // loop_body
                  %v205 = vld [vmem:[%s203] sm:$0xff]
                  %206 = vst [vmem:[%s204] sm:$0xff] %v205
                  %v207 = vld [vmem:[%s203 + $0x10] sm:$0xff]
                  %208 = vst [vmem:[%s204 + $0x8] sm:$0xff] %v207
                  %v209 = vld [vmem:[%s203 + $0x20] sm:$0xff]
                  %210 = vst [vmem:[%s204 + $0x10] sm:$0xff] %v209
                  %v211 = vld [vmem:[%s203 + $0x30] sm:$0xff]
                  %212 = vst [vmem:[%s204 + $0x18] sm:$0xff] %v211
                  %v213 = vld [vmem:[%s203 + $0x40] sm:$0xff]
                  %214 = vst [vmem:[%s204 + $0x20] sm:$0xff] %v213
                  %v215 = vld [vmem:[%s203 + $0x50] sm:$0xff]
                  %216 = vst [vmem:[%s204 + $0x28] sm:$0xff] %v215
                  %v217 = vld [vmem:[%s203 + $0x60] sm:$0xff]
                  %218 = vst [vmem:[%s204 + $0x30] sm:$0xff] %v217
                  %v219 = vld [vmem:[%s203 + $0x70] sm:$0xff]
                  %220 = vst [vmem:[%s204 + $0x38] sm:$0xff] %v219
                $region60: #{critic_forward.4} parent=54 // loop_footer
                  %s202 = sadd.s32 1, %s198
                $region61: #{critic_forward.4} parent=54 // loop_footer_branch
                  %197 = sbr.rel target = $region57
                $region62: #{critic_forward.4} parent=54 // loop_exit
                  _
              $region55: #{critic_forward.4} parent=39 // pred_fallthru
                _
              // Predicated region
              $region63: #{critic_forward.4} parent=39 // pred_check
                _
              $region64: #{critic_forward.4} parent=39 // pred_check_branch
                %222 = sbr.rel target = $region66
              $region65: #{critic_forward.4} parent=39 // pred_region
                _
              $region66: #{critic_forward.4} parent=39 // pred_fallthru
                _
            $region40: #{critic_forward.4} parent=35 // pred_fallthru
              _
            // Predicated region
            $region41: #{critic_forward.4} parent=35 // pred_check
              _
            $region42: #{critic_forward.4} parent=35 // pred_check_branch
              %168 = sbr.rel target = $region44
            $region43: #{critic_forward.4} parent=35 // pred_region
              %s170 = ssub.s32 256, 1
              loop: start=0, step=1, limit=1
              $region45: #{critic_forward.4} parent=43 // loop_pre_header
                _
              $region46: #{critic_forward.4} parent=43 // loop_header
                %s172 = sphi 0, %s176
                %p173 = scmp.ge.s32.totalorder %s172, 1
                %s177 = sphi %s162, %s162
                %s178 = sphi %s159, %s159
              $region47: #{critic_forward.4} parent=43 // loop_header_branch
                %175 = sbr.rel (%p173) target = $region51
              $region48: #{critic_forward.4} parent=43 // loop_body
                %v179 = vld [vmem:[%s177] sm:%s170]
                %180 = vst [vmem:[%s178] sm:%s170] %v179
                %v181 = vld [vmem:[%s177 + $0x10] sm:%s170]
                %182 = vst [vmem:[%s178 + $0x8] sm:%s170] %v181
                %v183 = vld [vmem:[%s177 + $0x20] sm:%s170]
                %184 = vst [vmem:[%s178 + $0x10] sm:%s170] %v183
                %v185 = vld [vmem:[%s177 + $0x30] sm:%s170]
                %186 = vst [vmem:[%s178 + $0x18] sm:%s170] %v185
                %v187 = vld [vmem:[%s177 + $0x40] sm:%s170]
                %188 = vst [vmem:[%s178 + $0x20] sm:%s170] %v187
                %v189 = vld [vmem:[%s177 + $0x50] sm:%s170]
                %190 = vst [vmem:[%s178 + $0x28] sm:%s170] %v189
                %v191 = vld [vmem:[%s177 + $0x60] sm:%s170]
                %192 = vst [vmem:[%s178 + $0x30] sm:%s170] %v191
                %v193 = vld [vmem:[%s177 + $0x70] sm:%s170]
                %194 = vst [vmem:[%s178 + $0x38] sm:%s170] %v193
              $region49: #{critic_forward.4} parent=43 // loop_footer
                %s176 = sadd.s32 1, %s172
              $region50: #{critic_forward.4} parent=43 // loop_footer_branch
                %171 = sbr.rel target = $region46
              $region51: #{critic_forward.4} parent=43 // loop_exit
                _
            $region44: #{critic_forward.4} parent=35 // pred_fallthru
              _
          $region36: #{critic_forward.4} parent=31 // pred_fallthru
            _
          %223 = vnop
        $region32: #{critic_forward.4} parent=27 // pred_fallthru
          _
      $region28: #{critic_forward.4} parent=5 // pred_fallthru
        _
      %p224 = scmp.le.s32.totalorder 1, %s10
      %p225 = scmp.lt.s32.totalorder %s10, 3
      %p226 = pnand %p224, %p225
      %p227 = pneg %p226
      // Predicated region
      $region67: #{critic_forward.4} parent=5 // pred_check
        _
      $region68: #{critic_forward.4} parent=5 // pred_check_branch
        %229 = sbr.rel (%p226) target = $region70
      $region69: #{critic_forward.4} parent=5 // pred_region
        %s230 = ssub.s32 %s10, 1
        %s231 = sand.u32 %s23, 1
        %s232 = sand.u32 %s23, 1
        %s233 = smul.addr %s232, 64
        %s234 = scalar_lea.vmem [#allocation2], %s233
        // Predicated region
        $region71: #{critic_forward.4} parent=69 // pred_check
          %p235 = pneg %p36
        $region72: #{critic_forward.4} parent=69 // pred_check_branch
          %237 = sbr.rel (%p235) target = $region74
        $region73: #{critic_forward.4} parent=69 // pred_region
          _
        $region74: #{critic_forward.4} parent=69 // pred_fallthru
          _
        %s238 = sand.u32 %s23, 1
        %s239 = sand.u32 %s23, 1
        %s240 = smul.addr %s239, 64
        %s241 = scalar_lea.vmem [#allocation2], %s240
        %p242 = pneg %p36
        %p243 = pneg %p33
        %p244 = pneg %p57
        %p245 = pneg %p54
        %p246 = pneg %p78
        %p247 = pneg %p75
        %p248 = pneg %p99
        %p249 = pneg %p96
        %p250 = pneg %p125
        %p251 = pneg %p122
        %p252 = scmp.lt.s32.totalorder %s15, 1
        %s253 = scalar_select %p252, %s15, 1
        %s254 = smul.addr %s253, 8
        %s255 = scalar_lea.vmem %s4, %s254
        %p256 = scmp.lt.s32.totalorder %s15, 1
        %s257 = scalar_select %p256, %s15, 1
        %s258 = smul.addr %s257, 8
        %s259 = scalar_lea.vmem %s4, %s258
        %v260 = vld [vmem:[%s1] sm:$0xf]
        %v261 = vld [vmem:[%s1 + $0x4] sm:$0xf]
        %v262 = vld [vmem:[%s1 + $0x8] sm:$0xf]
        %v263 = vld [vmem:[%s1 + $0xc] sm:$0xf]
        %v264 = vld [vmem:[%s1 + $0x10] sm:$0xf]
        %v265 = vld [vmem:[%s1 + $0x14] sm:$0xf]
        %v266 = vld [vmem:[%s1 + $0x18] sm:$0xf]
        %v267 = vld [vmem:[%s1 + $0x1c] sm:$0xf]
        %v268 = vld [vmem:[%s1 + $0x20] sm:$0xf]
        %v269 = vld [vmem:[%s1 + $0x24] sm:$0xf]
        %v270 = vld [vmem:[%s1 + $0x28] sm:$0xf]
        %v271 = vld [vmem:[%s1 + $0x2c] sm:$0xf]
        %v272 = vld [vmem:[%s1 + $0x30] sm:$0xf]
        %v273 = vld [vmem:[%s1 + $0x34] sm:$0xf]
        %v274 = vld [vmem:[%s1 + $0x38] sm:$0xf]
        %v275 = vld [vmem:[%s1 + $0x3c] sm:$0xf]
        %v276 = vld [vmem:[%s1 + $0x40] sm:$0xf]
        %v277 = vld [vmem:[%s1 + $0x44] sm:$0xf]
        %v278 = vld [vmem:[%s1 + $0x48] sm:$0xf]
        %v279 = vld [vmem:[%s1 + $0x4c] sm:$0xf]
        %v280 = vld [vmem:[%s1 + $0x50] sm:$0xf]
        %v281 = vld [vmem:[%s1 + $0x54] sm:$0xf]
        %v282 = vld [vmem:[%s1 + $0x58] sm:$0xf]
        %v283 = vld [vmem:[%s1 + $0x5c] sm:$0xf]
        %v284 = vld [vmem:[%s1 + $0x60] sm:$0xf]
        %v285 = vld [vmem:[%s1 + $0x64] sm:$0xf]
        %v286 = vld [vmem:[%s1 + $0x68] sm:$0xf]
        %v287 = vld [vmem:[%s1 + $0x6c] sm:$0xf]
        %v288 = vld [vmem:[%s1 + $0x70] sm:$0xf]
        %v289 = vld [vmem:[%s1 + $0x74] sm:$0xf]
        %v290 = vld [vmem:[%s1 + $0x78] sm:$0xf]
        %v291 = vld [vmem:[%s1 + $0x7c] sm:$0xf]
        %v292 = vld [vmem:[%s2] sm:$0x1]
        %v293 = vld [vmem:[%s3] sm:$0x1]
        %v294 = vld [vmem:[%s234] sm:$0xff]
        %v296 = vunpack.c.l.b16 %v294
        %v297 = vunpack.c.h.b16 %v294
        %v298 = vpack.c.b16 %v296, %v296
        %v299 = vpack.c.b16 %v297, %v297
        %v334 = vunpack.c.l.b16 %v260
        %v335 = vunpack.c.l.b16 %v261
        %v336 = vunpack.c.l.b16 %v262
        %v337 = vunpack.c.l.b16 %v263
        %v338 = vunpack.c.l.b16 %v264
        %v339 = vunpack.c.l.b16 %v265
        %v340 = vunpack.c.l.b16 %v266
        %v341 = vunpack.c.l.b16 %v267
        %v342 = vunpack.c.l.b16 %v268
        %v343 = vunpack.c.l.b16 %v269
        %v344 = vunpack.c.l.b16 %v270
        %v345 = vunpack.c.l.b16 %v271
        %v346 = vunpack.c.l.b16 %v272
        %v347 = vunpack.c.l.b16 %v273
        %v348 = vunpack.c.l.b16 %v274
        %v349 = vunpack.c.l.b16 %v275
        %v350 = vunpack.c.l.b16 %v276
        %v351 = vunpack.c.l.b16 %v277
        %v352 = vunpack.c.l.b16 %v278
        %v353 = vunpack.c.l.b16 %v279
        %v354 = vunpack.c.l.b16 %v280
        %v355 = vunpack.c.l.b16 %v281
        %v356 = vunpack.c.l.b16 %v282
        %v357 = vunpack.c.l.b16 %v283
        %v358 = vunpack.c.l.b16 %v284
        %v359 = vunpack.c.l.b16 %v285
        %v360 = vunpack.c.l.b16 %v286
        %v361 = vunpack.c.l.b16 %v287
        %v362 = vunpack.c.l.b16 %v288
        %v363 = vunpack.c.l.b16 %v289
        %v364 = vunpack.c.l.b16 %v290
        %v365 = vunpack.c.l.b16 %v291
        %v366 = vpack.c.b16 %v335, %v334
        %v367 = vpack.c.b16 %v337, %v336
        %v368 = vpack.c.b16 %v339, %v338
        %v369 = vpack.c.b16 %v341, %v340
        %v370 = vpack.c.b16 %v343, %v342
        %v371 = vpack.c.b16 %v345, %v344
        %v372 = vpack.c.b16 %v347, %v346
        %v373 = vpack.c.b16 %v349, %v348
        %v374 = vpack.c.b16 %v351, %v350
        %v375 = vpack.c.b16 %v353, %v352
        %v376 = vpack.c.b16 %v355, %v354
        %v377 = vpack.c.b16 %v357, %v356
        %v378 = vpack.c.b16 %v359, %v358
        %v379 = vpack.c.b16 %v361, %v360
        %v380 = vpack.c.b16 %v363, %v362
        %v381 = vpack.c.b16 %v365, %v364
        %398 = vmatpush.bf16.msra.mxu0 %v373
        %399 = vmatpush.bf16.msra.mxu0 %v372
        %400 = vmatpush.bf16.msra.mxu0 %v371
        %401 = vmatpush.bf16.msra.mxu0 %v370
        %402 = vmatpush.bf16.msra.mxu0 %v369
        %403 = vmatpush.bf16.msra.mxu0 %v368
        %404 = vmatpush.bf16.msra.mxu0 %v367
        %405 = vmatpush.bf16.msra.mxu0 %v366
        %406 = vmatmul.bf16.gmra.mxu0 %v298
        %v407 = vpop.f32.mrf.mxu0
        %v408 = vadd.f32 0.0, %v407
        %v409 = vpop.f32.mrf.mxu0
        %410 = vdwg.mxu0
        %411 = vmatpush.bf16.msra.mxu0 %v381
        %412 = vmatpush.bf16.msra.mxu0 %v380
        %413 = vmatpush.bf16.msra.mxu0 %v379
        %414 = vmatpush.bf16.msra.mxu0 %v378
        %415 = vmatpush.bf16.msra.mxu0 %v377
        %416 = vmatpush.bf16.msra.mxu0 %v376
        %417 = vmatpush.bf16.msra.mxu0 %v375
        %418 = vmatpush.bf16.msra.mxu0 %v374
        %419 = vmatmul.bf16.gmra.mxu0 %v299
        %v420 = vpop.f32.mrf.mxu0
        %v421 = vadd.f32 %v408, %v420
        %v422 = vpop.f32.mrf.mxu0
        %423 = vdwg.mxu0
        %v425 = vperm.slane %v292, 0
        %v427 = vmul.f32 %v421, %v425
        %v429 = vperm.slane %v293, 0
        %v431 = vadd.f32 %v427, %v429
        %v432 = vmax.f32 %v431, 0.0
        %s433 = scalar_lea.vmem %s234, 8 [#allocation2]
        %v434 = vld [vmem:[%s433] sm:$0xff]
        %v436 = vunpack.c.l.b16 %v434
        %v437 = vunpack.c.h.b16 %v434
        %v438 = vpack.c.b16 %v436, %v436
        %v439 = vpack.c.b16 %v437, %v437
        %442 = vmatpush.bf16.msra.mxu0 %v373
        %443 = vmatpush.bf16.msra.mxu0 %v372
        %444 = vmatpush.bf16.msra.mxu0 %v371
        %445 = vmatpush.bf16.msra.mxu0 %v370
        %446 = vmatpush.bf16.msra.mxu0 %v369
        %447 = vmatpush.bf16.msra.mxu0 %v368
        %448 = vmatpush.bf16.msra.mxu0 %v367
        %449 = vmatpush.bf16.msra.mxu0 %v366
        %450 = vmatmul.bf16.gmra.mxu0 %v438
        %v451 = vpop.f32.mrf.mxu0
        %v452 = vadd.f32 0.0, %v451
        %v453 = vpop.f32.mrf.mxu0
        %454 = vdwg.mxu0
        %455 = vmatpush.bf16.msra.mxu0 %v381
        %456 = vmatpush.bf16.msra.mxu0 %v380
        %457 = vmatpush.bf16.msra.mxu0 %v379
        %458 = vmatpush.bf16.msra.mxu0 %v378
        %459 = vmatpush.bf16.msra.mxu0 %v377
        %460 = vmatpush.bf16.msra.mxu0 %v376
        %461 = vmatpush.bf16.msra.mxu0 %v375
        %462 = vmatpush.bf16.msra.mxu0 %v374
        %463 = vmatmul.bf16.gmra.mxu0 %v439
        %v464 = vpop.f32.mrf.mxu0
        %v465 = vadd.f32 %v452, %v464
        %v466 = vpop.f32.mrf.mxu0
        %467 = vdwg.mxu0
        %v468 = vmul.f32 %v465, %v425
        %v469 = vadd.f32 %v468, %v429
        %v470 = vmax.f32 %v469, 0.0
        %v471 = vmax.f32 %v432, %v470
        %s472 = scalar_lea.vmem %s234, 16 [#allocation2]
        %v473 = vld [vmem:[%s472] sm:$0xff]
        %v475 = vunpack.c.l.b16 %v473
        %v476 = vunpack.c.h.b16 %v473
        %v477 = vpack.c.b16 %v475, %v475
        %v478 = vpack.c.b16 %v476, %v476
        %481 = vmatpush.bf16.msra.mxu0 %v373
        %482 = vmatpush.bf16.msra.mxu0 %v372
        %483 = vmatpush.bf16.msra.mxu0 %v371
        %484 = vmatpush.bf16.msra.mxu0 %v370
        %485 = vmatpush.bf16.msra.mxu0 %v369
        %486 = vmatpush.bf16.msra.mxu0 %v368
        %487 = vmatpush.bf16.msra.mxu0 %v367
        %488 = vmatpush.bf16.msra.mxu0 %v366
        %489 = vmatmul.bf16.gmra.mxu0 %v477
        %v490 = vpop.f32.mrf.mxu0
        %v491 = vadd.f32 0.0, %v490
        %v492 = vpop.f32.mrf.mxu0
        %493 = vdwg.mxu0
        %494 = vmatpush.bf16.msra.mxu0 %v381
        %495 = vmatpush.bf16.msra.mxu0 %v380
        %496 = vmatpush.bf16.msra.mxu0 %v379
        %497 = vmatpush.bf16.msra.mxu0 %v378
        %498 = vmatpush.bf16.msra.mxu0 %v377
        %499 = vmatpush.bf16.msra.mxu0 %v376
        %500 = vmatpush.bf16.msra.mxu0 %v375
        %501 = vmatpush.bf16.msra.mxu0 %v374
        %502 = vmatmul.bf16.gmra.mxu0 %v478
        %v503 = vpop.f32.mrf.mxu0
        %v504 = vadd.f32 %v491, %v503
        %v505 = vpop.f32.mrf.mxu0
        %506 = vdwg.mxu0
        %v507 = vmul.f32 %v504, %v425
        %v508 = vadd.f32 %v507, %v429
        %v509 = vmax.f32 %v508, 0.0
        %v510 = vmax.f32 %v471, %v509
        %s511 = scalar_lea.vmem %s234, 24 [#allocation2]
        %v512 = vld [vmem:[%s511] sm:$0xff]
        %v514 = vunpack.c.l.b16 %v512
        %v515 = vunpack.c.h.b16 %v512
        %v516 = vpack.c.b16 %v514, %v514
        %v517 = vpack.c.b16 %v515, %v515
        %520 = vmatpush.bf16.msra.mxu0 %v373
        %521 = vmatpush.bf16.msra.mxu0 %v372
        %522 = vmatpush.bf16.msra.mxu0 %v371
        %523 = vmatpush.bf16.msra.mxu0 %v370
        %524 = vmatpush.bf16.msra.mxu0 %v369
        %525 = vmatpush.bf16.msra.mxu0 %v368
        %526 = vmatpush.bf16.msra.mxu0 %v367
        %527 = vmatpush.bf16.msra.mxu0 %v366
        %528 = vmatmul.bf16.gmra.mxu0 %v516
        %v529 = vpop.f32.mrf.mxu0
        %v530 = vadd.f32 0.0, %v529
        %v531 = vpop.f32.mrf.mxu0
        %532 = vdwg.mxu0
        %533 = vmatpush.bf16.msra.mxu0 %v381
        %534 = vmatpush.bf16.msra.mxu0 %v380
        %535 = vmatpush.bf16.msra.mxu0 %v379
        %536 = vmatpush.bf16.msra.mxu0 %v378
        %537 = vmatpush.bf16.msra.mxu0 %v377
        %538 = vmatpush.bf16.msra.mxu0 %v376
        %539 = vmatpush.bf16.msra.mxu0 %v375
        %540 = vmatpush.bf16.msra.mxu0 %v374
        %541 = vmatmul.bf16.gmra.mxu0 %v517
        %v542 = vpop.f32.mrf.mxu0
        %v543 = vadd.f32 %v530, %v542
        %v544 = vpop.f32.mrf.mxu0
        %545 = vdwg.mxu0
        %v546 = vmul.f32 %v543, %v425
        %v547 = vadd.f32 %v546, %v429
        %v548 = vmax.f32 %v547, 0.0
        %v549 = vmax.f32 %v510, %v548
        %s550 = scalar_lea.vmem %s234, 32 [#allocation2]
        %v551 = vld [vmem:[%s550] sm:$0xff]
        %v553 = vunpack.c.l.b16 %v551
        %v554 = vunpack.c.h.b16 %v551
        %v555 = vpack.c.b16 %v553, %v553
        %v556 = vpack.c.b16 %v554, %v554
        %559 = vmatpush.bf16.msra.mxu0 %v373
        %560 = vmatpush.bf16.msra.mxu0 %v372
        %561 = vmatpush.bf16.msra.mxu0 %v371
        %562 = vmatpush.bf16.msra.mxu0 %v370
        %563 = vmatpush.bf16.msra.mxu0 %v369
        %564 = vmatpush.bf16.msra.mxu0 %v368
        %565 = vmatpush.bf16.msra.mxu0 %v367
        %566 = vmatpush.bf16.msra.mxu0 %v366
        %567 = vmatmul.bf16.gmra.mxu0 %v555
        %v568 = vpop.f32.mrf.mxu0
        %v569 = vadd.f32 0.0, %v568
        %v570 = vpop.f32.mrf.mxu0
        %571 = vdwg.mxu0
        %572 = vmatpush.bf16.msra.mxu0 %v381
        %573 = vmatpush.bf16.msra.mxu0 %v380
        %574 = vmatpush.bf16.msra.mxu0 %v379
        %575 = vmatpush.bf16.msra.mxu0 %v378
        %576 = vmatpush.bf16.msra.mxu0 %v377
        %577 = vmatpush.bf16.msra.mxu0 %v376
        %578 = vmatpush.bf16.msra.mxu0 %v375
        %579 = vmatpush.bf16.msra.mxu0 %v374
        %580 = vmatmul.bf16.gmra.mxu0 %v556
        %v581 = vpop.f32.mrf.mxu0
        %v582 = vadd.f32 %v569, %v581
        %v583 = vpop.f32.mrf.mxu0
        %584 = vdwg.mxu0
        %v585 = vmul.f32 %v582, %v425
        %v586 = vadd.f32 %v585, %v429
        %v587 = vmax.f32 %v586, 0.0
        %v588 = vmax.f32 %v549, %v587
        %s589 = scalar_lea.vmem %s234, 40 [#allocation2]
        %v590 = vld [vmem:[%s589] sm:$0xff]
        %v592 = vunpack.c.l.b16 %v590
        %v593 = vunpack.c.h.b16 %v590
        %v594 = vpack.c.b16 %v592, %v592
        %v595 = vpack.c.b16 %v593, %v593
        %598 = vmatpush.bf16.msra.mxu0 %v373
        %599 = vmatpush.bf16.msra.mxu0 %v372
        %600 = vmatpush.bf16.msra.mxu0 %v371
        %601 = vmatpush.bf16.msra.mxu0 %v370
        %602 = vmatpush.bf16.msra.mxu0 %v369
        %603 = vmatpush.bf16.msra.mxu0 %v368
        %604 = vmatpush.bf16.msra.mxu0 %v367
        %605 = vmatpush.bf16.msra.mxu0 %v366
        %606 = vmatmul.bf16.gmra.mxu0 %v594
        %v607 = vpop.f32.mrf.mxu0
        %v608 = vadd.f32 0.0, %v607
        %v609 = vpop.f32.mrf.mxu0
        %610 = vdwg.mxu0
        %611 = vmatpush.bf16.msra.mxu0 %v381
        %612 = vmatpush.bf16.msra.mxu0 %v380
        %613 = vmatpush.bf16.msra.mxu0 %v379
        %614 = vmatpush.bf16.msra.mxu0 %v378
        %615 = vmatpush.bf16.msra.mxu0 %v377
        %616 = vmatpush.bf16.msra.mxu0 %v376
        %617 = vmatpush.bf16.msra.mxu0 %v375
        %618 = vmatpush.bf16.msra.mxu0 %v374
        %619 = vmatmul.bf16.gmra.mxu0 %v595
        %v620 = vpop.f32.mrf.mxu0
        %v621 = vadd.f32 %v608, %v620
        %v622 = vpop.f32.mrf.mxu0
        %623 = vdwg.mxu0
        %v624 = vmul.f32 %v621, %v425
        %v625 = vadd.f32 %v624, %v429
        %v626 = vmax.f32 %v625, 0.0
        %v627 = vmax.f32 %v588, %v626
        %s628 = scalar_lea.vmem %s234, 48 [#allocation2]
        %v629 = vld [vmem:[%s628] sm:$0xff]
        %v631 = vunpack.c.l.b16 %v629
        %v632 = vunpack.c.h.b16 %v629
        %v633 = vpack.c.b16 %v631, %v631
        %v634 = vpack.c.b16 %v632, %v632
        %637 = vmatpush.bf16.msra.mxu0 %v373
        %638 = vmatpush.bf16.msra.mxu0 %v372
        %639 = vmatpush.bf16.msra.mxu0 %v371
        %640 = vmatpush.bf16.msra.mxu0 %v370
        %641 = vmatpush.bf16.msra.mxu0 %v369
        %642 = vmatpush.bf16.msra.mxu0 %v368
        %643 = vmatpush.bf16.msra.mxu0 %v367
        %644 = vmatpush.bf16.msra.mxu0 %v366
        %645 = vmatmul.bf16.gmra.mxu0 %v633
        %v646 = vpop.f32.mrf.mxu0
        %v647 = vadd.f32 0.0, %v646
        %v648 = vpop.f32.mrf.mxu0
        %649 = vdwg.mxu0
        %650 = vmatpush.bf16.msra.mxu0 %v381
        %651 = vmatpush.bf16.msra.mxu0 %v380
        %652 = vmatpush.bf16.msra.mxu0 %v379
        %653 = vmatpush.bf16.msra.mxu0 %v378
        %654 = vmatpush.bf16.msra.mxu0 %v377
        %655 = vmatpush.bf16.msra.mxu0 %v376
        %656 = vmatpush.bf16.msra.mxu0 %v375
        %657 = vmatpush.bf16.msra.mxu0 %v374
        %658 = vmatmul.bf16.gmra.mxu0 %v634
        %v659 = vpop.f32.mrf.mxu0
        %v660 = vadd.f32 %v647, %v659
        %v661 = vpop.f32.mrf.mxu0
        %662 = vdwg.mxu0
        %v663 = vmul.f32 %v660, %v425
        %v664 = vadd.f32 %v663, %v429
        %v665 = vmax.f32 %v664, 0.0
        %v666 = vmax.f32 %v627, %v665
        %s667 = scalar_lea.vmem %s234, 56 [#allocation2]
        %v668 = vld [vmem:[%s667] sm:$0xff]
        %v670 = vunpack.c.l.b16 %v668
        %v671 = vunpack.c.h.b16 %v668
        %v672 = vpack.c.b16 %v670, %v670
        %v673 = vpack.c.b16 %v671, %v671
        %676 = vmatpush.bf16.msra.mxu0 %v373
        %677 = vmatpush.bf16.msra.mxu0 %v372
        %678 = vmatpush.bf16.msra.mxu0 %v371
        %679 = vmatpush.bf16.msra.mxu0 %v370
        %680 = vmatpush.bf16.msra.mxu0 %v369
        %681 = vmatpush.bf16.msra.mxu0 %v368
        %682 = vmatpush.bf16.msra.mxu0 %v367
        %683 = vmatpush.bf16.msra.mxu0 %v366
        %684 = vmatmul.bf16.gmra.mxu0 %v672
        %v685 = vpop.f32.mrf.mxu0
        %v686 = vadd.f32 0.0, %v685
        %v687 = vpop.f32.mrf.mxu0
        %688 = vdwg.mxu0
        %689 = vmatpush.bf16.msra.mxu0 %v381
        %690 = vmatpush.bf16.msra.mxu0 %v380
        %691 = vmatpush.bf16.msra.mxu0 %v379
        %692 = vmatpush.bf16.msra.mxu0 %v378
        %693 = vmatpush.bf16.msra.mxu0 %v377
        %694 = vmatpush.bf16.msra.mxu0 %v376
        %695 = vmatpush.bf16.msra.mxu0 %v375
        %696 = vmatpush.bf16.msra.mxu0 %v374
        %697 = vmatmul.bf16.gmra.mxu0 %v673
        %v698 = vpop.f32.mrf.mxu0
        %v699 = vadd.f32 %v686, %v698
        %v700 = vpop.f32.mrf.mxu0
        %701 = vdwg.mxu0
        %v702 = vmul.f32 %v699, %v425
        %v703 = vadd.f32 %v702, %v429
        %v704 = vmax.f32 %v703, 0.0
        %v705 = vmax.f32 %v666, %v704
        %706 = vst [vmem:[%s259] sm:$0xff] %v705
        %p707 = scmp.lt.s32.totalorder %s15, 1
        %s708 = scalar_select %p707, %s15, 1
        %s709 = smul.addr %s708, 8
        %s710 = scalar_lea.vmem %s4, %s709
        // Predicated region
        $region75: #{critic_forward.4} parent=69 // pred_check
          %p711 = pneg %p122
        $region76: #{critic_forward.4} parent=69 // pred_check_branch
          %713 = sbr.rel (%p711) target = $region78
        $region77: #{critic_forward.4} parent=69 // pred_region
          _
        $region78: #{critic_forward.4} parent=69 // pred_fallthru
          _
      $region70: #{critic_forward.4} parent=5 // pred_fallthru
        _
      %p714 = scmp.le.s32.totalorder 2, %s10
      // Predicated region
      $region79: #{critic_forward.4} parent=5 // pred_check
        %p715 = pneg %p714
      $region80: #{critic_forward.4} parent=5 // pred_check_branch
        %717 = sbr.rel (%p715) target = $region82
      $region81: #{critic_forward.4} parent=5 // pred_region
        %s718 = ssub.s32 %s10, 2
        // Predicated region
        $region83: #{critic_forward.4} parent=81 // pred_check
          %p719 = pneg %p128
        $region84: #{critic_forward.4} parent=81 // pred_check_branch
          %721 = sbr.rel (%p719) target = $region86
        $region85: #{critic_forward.4} parent=81 // pred_region
          %p722 = scmp.lt.s32.totalorder %s16, 1
          %s723 = scalar_select %p722, %s16, 1
          %s724 = smul.addr %s723, 8
          %s725 = scalar_lea.vmem %s4, %s724
        $region86: #{critic_forward.4} parent=81 // pred_fallthru
          _
      $region82: #{critic_forward.4} parent=5 // pred_fallthru
        _
    $region6: #{critic_forward.4} parent=1 // loop_footer
      %s14 = sadd.s32 1, %s10
    $region7: #{critic_forward.4} parent=1 // loop_footer_branch
      %9 = sbr.rel target = $region3
    $region8: #{critic_forward.4} parent=1 // loop_exit
      _

// kernel: critic_forward.5
$region0: #{critic_forward.5}
  #allocation0 [shape = 'u32[]', space=smem, size = 0x4, offset = 0x4, fixed_abs, tag = 'smem constant byte address 0x4 - core index']
  #allocation1 [shape = 'u32[72,128]{1,0:T(1,128)}', space=vmem, size = 0x9000, scoped, tag = 'internal scratch']
  #allocation2 [shape = 'f32[1,1]{1,0:T(1,128)S(1)}', space=vmem, size = 0x200, scoped, tag = 'scoped memory for critic_forward.5']
  %s0 = inlined_call_operand.vmem [shape: bf16[2,512], index: 0, kind: input, shape index: {}]
  %s1 = inlined_call_operand.vmem [shape: bf16[2,9], index: 1, kind: input, shape index: {}]
  %s2 = inlined_call_operand.vmem [shape: bf16[9,256], index: 2, kind: input, shape index: {}]
  %s3 = inlined_call_operand.vmem [shape: f32[1,256], index: 3, kind: input, shape index: {}]
  %s4 = inlined_call_operand.vmem [shape: bf16[512,32], index: 4, kind: input, shape index: {}]
  %s5 = inlined_call_operand.vmem [shape: bf16[256,32], index: 5, kind: input, shape index: {}]
  %s6 = inlined_call_operand.vmem [shape: f32[1,32], index: 6, kind: input, shape index: {}]
  %s7 = inlined_call_operand.vmem [shape: bf16[32,1], index: 7, kind: input, shape index: {}]
  %s8 = inlined_call_operand.<no memory space> [shape: f32[1,1], index: 8, kind: input, shape index: {}]
  %s9 = inlined_call_operand.vmem [shape: f32[2,1], index: 9, kind: output, shape index: {}]
  %s10 = sld [smem:[#allocation0]]
  $region46: #{critic_forward.5} parent=0
    _
  %s12 = ssub.s32 1, %s10
  %s13 = scalar_select 0, %s12, %s10
  %v14 = vstv %s8
  %15 = vst [vmem:[#allocation2] sm:$0x1] %v14
  // Predicated region
  $region2: #{critic_forward.5} parent=0 // pred_check
    _
  $region3: #{critic_forward.5} parent=0 // pred_check_branch
    %17 = sbr.rel (0) target = $region5
  $region4: #{critic_forward.5} parent=0 // pred_region
    _
  $region5: #{critic_forward.5} parent=0 // pred_fallthru
    _
  // Predicated region
  $region6: #{critic_forward.5} parent=0 // pred_check
    _
  $region7: #{critic_forward.5} parent=0 // pred_check_branch
    %19 = sbr.rel (0) target = $region9
  $region8: #{critic_forward.5} parent=0 // pred_region
    _
  $region9: #{critic_forward.5} parent=0 // pred_fallthru
    _
  // Predicated region
  $region10: #{critic_forward.5} parent=0 // pred_check
    _
  $region11: #{critic_forward.5} parent=0 // pred_check_branch
    %21 = sbr.rel (0) target = $region13
  $region12: #{critic_forward.5} parent=0 // pred_region
    _
  $region13: #{critic_forward.5} parent=0 // pred_fallthru
    _
  // Predicated region
  $region14: #{critic_forward.5} parent=0 // pred_check
    _
  $region15: #{critic_forward.5} parent=0 // pred_check_branch
    %23 = sbr.rel (0) target = $region17
  $region16: #{critic_forward.5} parent=0 // pred_region
    _
  $region17: #{critic_forward.5} parent=0 // pred_fallthru
    _
  // Predicated region
  $region18: #{critic_forward.5} parent=0 // pred_check
    _
  $region19: #{critic_forward.5} parent=0 // pred_check_branch
    %25 = sbr.rel (0) target = $region21
  $region20: #{critic_forward.5} parent=0 // pred_region
    _
  $region21: #{critic_forward.5} parent=0 // pred_fallthru
    _
  // Predicated region
  $region22: #{critic_forward.5} parent=0 // pred_check
    _
  $region23: #{critic_forward.5} parent=0 // pred_check_branch
    %27 = sbr.rel (0) target = $region25
  $region24: #{critic_forward.5} parent=0 // pred_region
    _
  $region25: #{critic_forward.5} parent=0 // pred_fallthru
    _
  // Predicated region
  $region26: #{critic_forward.5} parent=0 // pred_check
    _
  $region27: #{critic_forward.5} parent=0 // pred_check_branch
    %29 = sbr.rel (0) target = $region29
  $region28: #{critic_forward.5} parent=0 // pred_region
    _
  $region29: #{critic_forward.5} parent=0 // pred_fallthru
    _
  // Predicated region
  $region30: #{critic_forward.5} parent=0 // pred_check
    _
  $region31: #{critic_forward.5} parent=0 // pred_check_branch
    %31 = sbr.rel (0) target = $region33
  $region32: #{critic_forward.5} parent=0 // pred_region
    _
  $region33: #{critic_forward.5} parent=0 // pred_fallthru
    _
  // Predicated region
  $region34: #{critic_forward.5} parent=0 // pred_check
    _
  $region35: #{critic_forward.5} parent=0 // pred_check_branch
    %33 = sbr.rel (0) target = $region37
  $region36: #{critic_forward.5} parent=0 // pred_region
    _
  $region37: #{critic_forward.5} parent=0 // pred_fallthru
    _
  %v35 = vld [vmem:[%s1] sm:$0x1]
  %v36 = vld [vmem:[%s2] sm:$0xff]
  %v37 = vld [vmem:[%s2 + $0x8] sm:$0x11]
  %v38 = vld [vmem:[%s3] sm:$0x3]
  %v40 = vperm.slane %v38, 0
  %v41 = vperm.slane %v38, 1
  %v46 = vunpack.c.l.b16 %v36
  %v47 = vunpack.c.h.b16 %v36
  %v48 = vunpack.c.l.b16 %v37
  %v49 = vunpack.c.h.b16 %v37
  %v50 = vpack.c.b16 %v48, %v46
  %v51 = vpack.c.b16 %v49, %v47
  %vm52 = vcmask 72704
  %v54 = vsel %vm52, %v35, 0
  %vm56 = vcmask 1043456
  %vm57 = vcmask 1044480
  %v58 = vsel %vm56, 4294967295, 65535
  %v59 = vsel %vm57, %v58, 0
  %v61 = vand.u32 %v50, %v59
  %v64 = vand.u32 %v51, %v59
  %66 = vmatpush.bf16.msra.mxu0 0
  %67 = vmatpush.bf16.msra.mxu0 0
  %68 = vmatpush.bf16.msra.mxu0 0
  %69 = vmatpush.bf16.msra.mxu0 0
  %70 = vmatpush.bf16.msra.mxu0 0
  %71 = vmatpush.bf16.msra.mxu0 0
  %72 = vmatpush.bf16.msra.mxu0 0
  %73 = vmatpush.bf16.msra.mxu0 %v61
  %74 = vmatmul.bf16.gmra.mxu0 %v54
  %v75 = vpop.f32.mrf.mxu0
  %v76 = vadd.f32 %v40, %v75
  %v77 = vpop.f32.mrf.mxu0
  %78 = vdwg.mxu0
  %79 = vmatpush.bf16.msra.mxu0 0
  %80 = vmatpush.bf16.msra.mxu0 0
  %81 = vmatpush.bf16.msra.mxu0 0
  %82 = vmatpush.bf16.msra.mxu0 0
  %83 = vmatpush.bf16.msra.mxu0 0
  %84 = vmatpush.bf16.msra.mxu0 0
  %85 = vmatpush.bf16.msra.mxu0 0
  %86 = vmatpush.bf16.msra.mxu0 %v64
  %87 = vmatmul.bf16.gmra.mxu0 %v54
  %v88 = vpop.f32.mrf.mxu0
  %v89 = vadd.f32 %v41, %v88
  %v90 = vpop.f32.mrf.mxu0
  %91 = vdwg.mxu0
  %v92 = vmax.f32 %v76, 0.0
  %v93 = vmax.f32 %v89, 0.0
  %v94 = vld [vmem:[%s0] sm:$0xf]
  %v95 = vld [vmem:[%s4] sm:$0xf]
  %v96 = vld [vmem:[%s4 + $0x4] sm:$0xf]
  %v97 = vld [vmem:[%s4 + $0x8] sm:$0xf]
  %v98 = vld [vmem:[%s4 + $0xc] sm:$0xf]
  %v99 = vld [vmem:[%s4 + $0x10] sm:$0xf]
  %v100 = vld [vmem:[%s4 + $0x14] sm:$0xf]
  %v101 = vld [vmem:[%s4 + $0x18] sm:$0xf]
  %v102 = vld [vmem:[%s4 + $0x1c] sm:$0xf]
  %v103 = vld [vmem:[%s4 + $0x20] sm:$0xf]
  %v104 = vld [vmem:[%s4 + $0x24] sm:$0xf]
  %v105 = vld [vmem:[%s4 + $0x28] sm:$0xf]
  %v106 = vld [vmem:[%s4 + $0x2c] sm:$0xf]
  %v107 = vld [vmem:[%s4 + $0x30] sm:$0xf]
  %v108 = vld [vmem:[%s4 + $0x34] sm:$0xf]
  %v109 = vld [vmem:[%s4 + $0x38] sm:$0xf]
  %v110 = vld [vmem:[%s4 + $0x3c] sm:$0xf]
  %v111 = vld [vmem:[%s4 + $0x40] sm:$0xf]
  %v112 = vld [vmem:[%s4 + $0x44] sm:$0xf]
  %v113 = vld [vmem:[%s4 + $0x48] sm:$0xf]
  %v114 = vld [vmem:[%s4 + $0x4c] sm:$0xf]
  %v115 = vld [vmem:[%s4 + $0x50] sm:$0xf]
  %v116 = vld [vmem:[%s4 + $0x54] sm:$0xf]
  %v117 = vld [vmem:[%s4 + $0x58] sm:$0xf]
  %v118 = vld [vmem:[%s4 + $0x5c] sm:$0xf]
  %v119 = vld [vmem:[%s4 + $0x60] sm:$0xf]
  %v120 = vld [vmem:[%s4 + $0x64] sm:$0xf]
  %v121 = vld [vmem:[%s4 + $0x68] sm:$0xf]
  %v122 = vld [vmem:[%s4 + $0x6c] sm:$0xf]
  %v123 = vld [vmem:[%s4 + $0x70] sm:$0xf]
  %v124 = vld [vmem:[%s4 + $0x74] sm:$0xf]
  %v125 = vld [vmem:[%s4 + $0x78] sm:$0xf]
  %v126 = vld [vmem:[%s4 + $0x7c] sm:$0xf]
  %v127 = vld [vmem:[%s4 + $0x80] sm:$0xf]
  %v128 = vld [vmem:[%s4 + $0x84] sm:$0xf]
  %v129 = vld [vmem:[%s4 + $0x88] sm:$0xf]
  %v130 = vld [vmem:[%s4 + $0x8c] sm:$0xf]
  %v131 = vld [vmem:[%s4 + $0x90] sm:$0xf]
  %v132 = vld [vmem:[%s4 + $0x94] sm:$0xf]
  %v133 = vld [vmem:[%s4 + $0x98] sm:$0xf]
  %v134 = vld [vmem:[%s4 + $0x9c] sm:$0xf]
  %v135 = vld [vmem:[%s4 + $0xa0] sm:$0xf]
  %v136 = vld [vmem:[%s4 + $0xa4] sm:$0xf]
  %v137 = vld [vmem:[%s4 + $0xa8] sm:$0xf]
  %v138 = vld [vmem:[%s4 + $0xac] sm:$0xf]
  %v139 = vld [vmem:[%s4 + $0xb0] sm:$0xf]
  %v140 = vld [vmem:[%s4 + $0xb4] sm:$0xf]
  %v141 = vld [vmem:[%s4 + $0xb8] sm:$0xf]
  %v142 = vld [vmem:[%s4 + $0xbc] sm:$0xf]
  %v143 = vld [vmem:[%s4 + $0xc0] sm:$0xf]
  %v144 = vld [vmem:[%s4 + $0xc4] sm:$0xf]
  %v145 = vld [vmem:[%s4 + $0xc8] sm:$0xf]
  %v146 = vld [vmem:[%s4 + $0xcc] sm:$0xf]
  %v147 = vld [vmem:[%s4 + $0xd0] sm:$0xf]
  %v148 = vld [vmem:[%s4 + $0xd4] sm:$0xf]
  %v149 = vld [vmem:[%s4 + $0xd8] sm:$0xf]
  %v150 = vld [vmem:[%s4 + $0xdc] sm:$0xf]
  %v151 = vld [vmem:[%s4 + $0xe0] sm:$0xf]
  %v152 = vld [vmem:[%s4 + $0xe4] sm:$0xf]
  %v153 = vld [vmem:[%s4 + $0xe8] sm:$0xf]
  %v154 = vld [vmem:[%s4 + $0xec] sm:$0xf]
  %v155 = vld [vmem:[%s4 + $0xf0] sm:$0xf]
  %v156 = vld [vmem:[%s4 + $0xf4] sm:$0xf]
  %v157 = vld [vmem:[%s4 + $0xf8] sm:$0xf]
  %v158 = vld [vmem:[%s4 + $0xfc] sm:$0xf]
  %v159 = vpack.c.bf16 %v92, %v92
  %v160 = vpack.c.bf16 %v93, %v93
  %v161 = vld [vmem:[%s5] sm:$0xf]
  %v162 = vld [vmem:[%s5 + $0x4] sm:$0xf]
  %v163 = vld [vmem:[%s5 + $0x8] sm:$0xf]
  %v164 = vld [vmem:[%s5 + $0xc] sm:$0xf]
  %v165 = vld [vmem:[%s5 + $0x10] sm:$0xf]
  %v166 = vld [vmem:[%s5 + $0x14] sm:$0xf]
  %v167 = vld [vmem:[%s5 + $0x18] sm:$0xf]
  %v168 = vld [vmem:[%s5 + $0x1c] sm:$0xf]
  %v169 = vld [vmem:[%s5 + $0x20] sm:$0xf]
  %v170 = vld [vmem:[%s5 + $0x24] sm:$0xf]
  %v171 = vld [vmem:[%s5 + $0x28] sm:$0xf]
  %v172 = vld [vmem:[%s5 + $0x2c] sm:$0xf]
  %v173 = vld [vmem:[%s5 + $0x30] sm:$0xf]
  %v174 = vld [vmem:[%s5 + $0x34] sm:$0xf]
  %v175 = vld [vmem:[%s5 + $0x38] sm:$0xf]
  %v176 = vld [vmem:[%s5 + $0x3c] sm:$0xf]
  %v177 = vld [vmem:[%s5 + $0x40] sm:$0xf]
  %v178 = vld [vmem:[%s5 + $0x44] sm:$0xf]
  %v179 = vld [vmem:[%s5 + $0x48] sm:$0xf]
  %v180 = vld [vmem:[%s5 + $0x4c] sm:$0xf]
  %v181 = vld [vmem:[%s5 + $0x50] sm:$0xf]
  %v182 = vld [vmem:[%s5 + $0x54] sm:$0xf]
  %v183 = vld [vmem:[%s5 + $0x58] sm:$0xf]
  %v184 = vld [vmem:[%s5 + $0x5c] sm:$0xf]
  %v185 = vld [vmem:[%s5 + $0x60] sm:$0xf]
  %v186 = vld [vmem:[%s5 + $0x64] sm:$0xf]
  %v187 = vld [vmem:[%s5 + $0x68] sm:$0xf]
  %v188 = vld [vmem:[%s5 + $0x6c] sm:$0xf]
  %v189 = vld [vmem:[%s5 + $0x70] sm:$0xf]
  %v190 = vld [vmem:[%s5 + $0x74] sm:$0xf]
  %v191 = vld [vmem:[%s5 + $0x78] sm:$0xf]
  %v192 = vld [vmem:[%s5 + $0x7c] sm:$0xf]
  %v225 = vunpack.c.l.b16 %v161
  %v226 = vunpack.c.l.b16 %v162
  %v227 = vunpack.c.l.b16 %v163
  %v228 = vunpack.c.l.b16 %v164
  %v229 = vunpack.c.l.b16 %v165
  %v230 = vunpack.c.l.b16 %v166
  %v231 = vunpack.c.l.b16 %v167
  %v232 = vunpack.c.l.b16 %v168
  %v233 = vunpack.c.l.b16 %v169
  %v234 = vunpack.c.l.b16 %v170
  %v235 = vunpack.c.l.b16 %v171
  %v236 = vunpack.c.l.b16 %v172
  %v237 = vunpack.c.l.b16 %v173
  %v238 = vunpack.c.l.b16 %v174
  %v239 = vunpack.c.l.b16 %v175
  %v240 = vunpack.c.l.b16 %v176
  %v241 = vunpack.c.l.b16 %v177
  %v242 = vunpack.c.l.b16 %v178
  %v243 = vunpack.c.l.b16 %v179
  %v244 = vunpack.c.l.b16 %v180
  %v245 = vunpack.c.l.b16 %v181
  %v246 = vunpack.c.l.b16 %v182
  %v247 = vunpack.c.l.b16 %v183
  %v248 = vunpack.c.l.b16 %v184
  %v249 = vunpack.c.l.b16 %v185
  %v250 = vunpack.c.l.b16 %v186
  %v251 = vunpack.c.l.b16 %v187
  %v252 = vunpack.c.l.b16 %v188
  %v253 = vunpack.c.l.b16 %v189
  %v254 = vunpack.c.l.b16 %v190
  %v255 = vunpack.c.l.b16 %v191
  %v256 = vunpack.c.l.b16 %v192
  %v257 = vpack.c.b16 %v226, %v225
  %v258 = vpack.c.b16 %v228, %v227
  %v259 = vpack.c.b16 %v230, %v229
  %v260 = vpack.c.b16 %v232, %v231
  %v261 = vpack.c.b16 %v234, %v233
  %v262 = vpack.c.b16 %v236, %v235
  %v263 = vpack.c.b16 %v238, %v237
  %v264 = vpack.c.b16 %v240, %v239
  %v265 = vpack.c.b16 %v242, %v241
  %v266 = vpack.c.b16 %v244, %v243
  %v267 = vpack.c.b16 %v246, %v245
  %v268 = vpack.c.b16 %v248, %v247
  %v269 = vpack.c.b16 %v250, %v249
  %v270 = vpack.c.b16 %v252, %v251
  %v271 = vpack.c.b16 %v254, %v253
  %v272 = vpack.c.b16 %v256, %v255
  %289 = vmatpush.bf16.msra.mxu0 %v264
  %290 = vmatpush.bf16.msra.mxu0 %v263
  %291 = vmatpush.bf16.msra.mxu0 %v262
  %292 = vmatpush.bf16.msra.mxu0 %v261
  %293 = vmatpush.bf16.msra.mxu0 %v260
  %294 = vmatpush.bf16.msra.mxu0 %v259
  %295 = vmatpush.bf16.msra.mxu0 %v258
  %296 = vmatpush.bf16.msra.mxu0 %v257
  %297 = vmatmul.bf16.gmra.mxu0 %v159
  %v298 = vpop.f32.mrf.mxu0
  %v299 = vadd.f32 0.0, %v298
  %v300 = vpop.f32.mrf.mxu0
  %301 = vdwg.mxu0
  %302 = vmatpush.bf16.msra.mxu0 %v272
  %303 = vmatpush.bf16.msra.mxu0 %v271
  %304 = vmatpush.bf16.msra.mxu0 %v270
  %305 = vmatpush.bf16.msra.mxu0 %v269
  %306 = vmatpush.bf16.msra.mxu0 %v268
  %307 = vmatpush.bf16.msra.mxu0 %v267
  %308 = vmatpush.bf16.msra.mxu0 %v266
  %309 = vmatpush.bf16.msra.mxu0 %v265
  %310 = vmatmul.bf16.gmra.mxu0 %v160
  %v311 = vpop.f32.mrf.mxu0
  %v312 = vadd.f32 %v299, %v311
  %v313 = vpop.f32.mrf.mxu0
  %314 = vdwg.mxu0
  %316 = vst [vmem:[#allocation1] ss:$9 sm:$0xff] %v94
  %v317 = vld [vmem:[#allocation1] sm:$0xff]
  %v318 = vld [vmem:[#allocation1 + $0x9] sm:$0xff]
  %v319 = vld [vmem:[#allocation1 + $0x12] sm:$0xff]
  %v320 = vld [vmem:[#allocation1 + $0x1b] sm:$0xff]
  %v389 = vunpack.c.l.b16 %v95
  %v390 = vunpack.c.l.b16 %v96
  %v391 = vunpack.c.l.b16 %v97
  %v392 = vunpack.c.l.b16 %v98
  %v393 = vunpack.c.l.b16 %v99
  %v394 = vunpack.c.l.b16 %v100
  %v395 = vunpack.c.l.b16 %v101
  %v396 = vunpack.c.l.b16 %v102
  %v397 = vunpack.c.l.b16 %v103
  %v398 = vunpack.c.l.b16 %v104
  %v399 = vunpack.c.l.b16 %v105
  %v400 = vunpack.c.l.b16 %v106
  %v401 = vunpack.c.l.b16 %v107
  %v402 = vunpack.c.l.b16 %v108
  %v403 = vunpack.c.l.b16 %v109
  %v404 = vunpack.c.l.b16 %v110
  %v405 = vunpack.c.l.b16 %v111
  %v406 = vunpack.c.l.b16 %v112
  %v407 = vunpack.c.l.b16 %v113
  %v408 = vunpack.c.l.b16 %v114
  %v409 = vunpack.c.l.b16 %v115
  %v410 = vunpack.c.l.b16 %v116
  %v411 = vunpack.c.l.b16 %v117
  %v412 = vunpack.c.l.b16 %v118
  %v413 = vunpack.c.l.b16 %v119
  %v414 = vunpack.c.l.b16 %v120
  %v415 = vunpack.c.l.b16 %v121
  %v416 = vunpack.c.l.b16 %v122
  %v417 = vunpack.c.l.b16 %v123
  %v418 = vunpack.c.l.b16 %v124
  %v419 = vunpack.c.l.b16 %v125
  %v420 = vunpack.c.l.b16 %v126
  %v421 = vunpack.c.l.b16 %v127
  %v422 = vunpack.c.l.b16 %v128
  %v423 = vunpack.c.l.b16 %v129
  %v424 = vunpack.c.l.b16 %v130
  %v425 = vunpack.c.l.b16 %v131
  %v426 = vunpack.c.l.b16 %v132
  %v427 = vunpack.c.l.b16 %v133
  %v428 = vunpack.c.l.b16 %v134
  %v429 = vunpack.c.l.b16 %v135
  %v430 = vunpack.c.l.b16 %v136
  %v431 = vunpack.c.l.b16 %v137
  %v432 = vunpack.c.l.b16 %v138
  %v433 = vunpack.c.l.b16 %v139
  %v434 = vunpack.c.l.b16 %v140
  %v435 = vunpack.c.l.b16 %v141
  %v436 = vunpack.c.l.b16 %v142
  %v437 = vunpack.c.l.b16 %v143
  %v438 = vunpack.c.l.b16 %v144
  %v439 = vunpack.c.l.b16 %v145
  %v440 = vunpack.c.l.b16 %v146
  %v441 = vunpack.c.l.b16 %v147
  %v442 = vunpack.c.l.b16 %v148
  %v443 = vunpack.c.l.b16 %v149
  %v444 = vunpack.c.l.b16 %v150
  %v445 = vunpack.c.l.b16 %v151
  %v446 = vunpack.c.l.b16 %v152
  %v447 = vunpack.c.l.b16 %v153
  %v448 = vunpack.c.l.b16 %v154
  %v449 = vunpack.c.l.b16 %v155
  %v450 = vunpack.c.l.b16 %v156
  %v451 = vunpack.c.l.b16 %v157
  %v452 = vunpack.c.l.b16 %v158
  %v453 = vpack.c.b16 %v390, %v389
  %v454 = vpack.c.b16 %v392, %v391
  %v455 = vpack.c.b16 %v394, %v393
  %v456 = vpack.c.b16 %v396, %v395
  %v457 = vpack.c.b16 %v398, %v397
  %v458 = vpack.c.b16 %v400, %v399
  %v459 = vpack.c.b16 %v402, %v401
  %v460 = vpack.c.b16 %v404, %v403
  %v461 = vpack.c.b16 %v406, %v405
  %v462 = vpack.c.b16 %v408, %v407
  %v463 = vpack.c.b16 %v410, %v409
  %v464 = vpack.c.b16 %v412, %v411
  %v465 = vpack.c.b16 %v414, %v413
  %v466 = vpack.c.b16 %v416, %v415
  %v467 = vpack.c.b16 %v418, %v417
  %v468 = vpack.c.b16 %v420, %v419
  %v469 = vpack.c.b16 %v422, %v421
  %v470 = vpack.c.b16 %v424, %v423
  %v471 = vpack.c.b16 %v426, %v425
  %v472 = vpack.c.b16 %v428, %v427
  %v473 = vpack.c.b16 %v430, %v429
  %v474 = vpack.c.b16 %v432, %v431
  %v475 = vpack.c.b16 %v434, %v433
  %v476 = vpack.c.b16 %v436, %v435
  %v477 = vpack.c.b16 %v438, %v437
  %v478 = vpack.c.b16 %v440, %v439
  %v479 = vpack.c.b16 %v442, %v441
  %v480 = vpack.c.b16 %v444, %v443
  %v481 = vpack.c.b16 %v446, %v445
  %v482 = vpack.c.b16 %v448, %v447
  %v483 = vpack.c.b16 %v450, %v449
  %v484 = vpack.c.b16 %v452, %v451
  %517 = vmatpush.bf16.msra.mxu0 %v460
  %518 = vmatpush.bf16.msra.mxu0 %v459
  %519 = vmatpush.bf16.msra.mxu0 %v458
  %520 = vmatpush.bf16.msra.mxu0 %v457
  %521 = vmatpush.bf16.msra.mxu0 %v456
  %522 = vmatpush.bf16.msra.mxu0 %v455
  %523 = vmatpush.bf16.msra.mxu0 %v454
  %524 = vmatpush.bf16.msra.mxu0 %v453
  %525 = vmatmul.bf16.gmra.mxu0 %v317
  %v526 = vpop.f32.mrf.mxu0
  %v527 = vadd.f32 %v312, %v526
  %v528 = vpop.f32.mrf.mxu0
  %529 = vdwg.mxu0
  %530 = vmatpush.bf16.msra.mxu0 %v468
  %531 = vmatpush.bf16.msra.mxu0 %v467
  %532 = vmatpush.bf16.msra.mxu0 %v466
  %533 = vmatpush.bf16.msra.mxu0 %v465
  %534 = vmatpush.bf16.msra.mxu0 %v464
  %535 = vmatpush.bf16.msra.mxu0 %v463
  %536 = vmatpush.bf16.msra.mxu0 %v462
  %537 = vmatpush.bf16.msra.mxu0 %v461
  %538 = vmatmul.bf16.gmra.mxu0 %v318
  %v539 = vpop.f32.mrf.mxu0
  %v540 = vadd.f32 %v527, %v539
  %v541 = vpop.f32.mrf.mxu0
  %542 = vdwg.mxu0
  %543 = vmatpush.bf16.msra.mxu0 %v476
  %544 = vmatpush.bf16.msra.mxu0 %v475
  %545 = vmatpush.bf16.msra.mxu0 %v474
  %546 = vmatpush.bf16.msra.mxu0 %v473
  %547 = vmatpush.bf16.msra.mxu0 %v472
  %548 = vmatpush.bf16.msra.mxu0 %v471
  %549 = vmatpush.bf16.msra.mxu0 %v470
  %550 = vmatpush.bf16.msra.mxu0 %v469
  %551 = vmatmul.bf16.gmra.mxu0 %v319
  %v552 = vpop.f32.mrf.mxu0
  %v553 = vadd.f32 %v540, %v552
  %v554 = vpop.f32.mrf.mxu0
  %555 = vdwg.mxu0
  %556 = vmatpush.bf16.msra.mxu0 %v484
  %557 = vmatpush.bf16.msra.mxu0 %v483
  %558 = vmatpush.bf16.msra.mxu0 %v482
  %559 = vmatpush.bf16.msra.mxu0 %v481
  %560 = vmatpush.bf16.msra.mxu0 %v480
  %561 = vmatpush.bf16.msra.mxu0 %v479
  %562 = vmatpush.bf16.msra.mxu0 %v478
  %563 = vmatpush.bf16.msra.mxu0 %v477
  %564 = vmatmul.bf16.gmra.mxu0 %v320
  %v565 = vpop.f32.mrf.mxu0
  %v566 = vadd.f32 %v553, %v565
  %v567 = vpop.f32.mrf.mxu0
  %568 = vdwg.mxu0
  %v569 = vld [vmem:[%s6] sm:$0x1]
  %v571 = vperm.slane %v569, 0
  %v573 = vadd.f32 %v566, %v571
  %v574 = vmax.f32 %v573, 0.0
  %v575 = vpack.c.bf16 %v574, %v574
  %v576 = vld [vmem:[%s7] sm:$0xf]
  %v577 = vld [vmem:[%s7 + $0x4] sm:$0xf]
  %v578 = vld [vmem:[%s7 + $0x8] sm:$0xf]
  %v579 = vld [vmem:[%s7 + $0xc] sm:$0xf]
  %v580 = vld [vmem:[#allocation2] sm:$0x1]
  %v582 = vperm.slane %v580, 0
  %v588 = vunpack.c.l.b16 %v576
  %v589 = vunpack.c.l.b16 %v577
  %v590 = vunpack.c.l.b16 %v578
  %v591 = vunpack.c.l.b16 %v579
  %v592 = vpack.c.b16 %v589, %v588
  %v593 = vpack.c.b16 %v591, %v590
  %vm596 = vcmask 261120
  %v598 = vsel %vm596, %v575, 0
  %600 = vmatpush.bf16.msra.mxu0 0
  %601 = vmatpush.bf16.msra.mxu0 0
  %602 = vmatpush.bf16.msra.mxu0 0
  %603 = vmatpush.bf16.msra.mxu0 0
  %604 = vmatpush.bf16.msra.mxu0 0
  %605 = vmatpush.bf16.msra.mxu0 0
  %606 = vmatpush.bf16.msra.mxu0 %v593
  %607 = vmatpush.bf16.msra.mxu0 %v592
  %608 = vmatmul.bf16.gmra.mxu0 %v598
  %v609 = vpop.f32.mrf.mxu0
  %v610 = vadd.f32 %v582, %v609
  %v611 = vpop.f32.mrf.mxu0
  %612 = vdwg.mxu0
  %vm613 = vcmask 1024
  %614 = vst.msk [vmem:[%s9] sm:$0x3] %vm613, %v610
  // Predicated region
  $region38: #{critic_forward.5} parent=0 // pred_check
    _
  $region39: #{critic_forward.5} parent=0 // pred_check_branch
    %616 = sbr.rel (0) target = $region41
  $region40: #{critic_forward.5} parent=0 // pred_region
    _
  $region41: #{critic_forward.5} parent=0 // pred_fallthru
    _
  // Predicated region
  $region42: #{critic_forward.5} parent=0 // pred_check
    _
  $region43: #{critic_forward.5} parent=0 // pred_check_branch
    %618 = sbr.rel (0) target = $region45
  $region44: #{critic_forward.5} parent=0 // pred_region
    _
  $region45: #{critic_forward.5} parent=0 // pred_fallthru
    _

</llo_original>
